<compile_context>
chip_gen: v7x
topology: tpu7x:2x2x1
jax: 0.10.0
libtpu: 0.0.40
codegen_flags: <defaults>
</compile_context>

<pallas_src>
import functools

import jax
import jax.numpy as jnp
import numpy as np
from jax.experimental import pallas as pl
from jax.experimental.pallas import tpu as pltpu


def _round_up(x, m):
    return ((x + m - 1) // m) * m


def _pad2(x, rows, cols):
    r, c = x.shape
    return jnp.pad(x.astype(jnp.float32), ((0, rows - r), (0, cols - c)))


# ---------------------------------------------------------------------------
# Fused whole-forward kernel: all layers, all relations, one launch.
# ---------------------------------------------------------------------------
def _hetero_gcn_kernel(xp_ref, xl_ref, app_ref, alp_ref, apl_ref,
                       wgcn_ref, wrevrel_ref, wrevroot_ref,
                       wisrel_ref, wisroot_ref,
                       bgcn_ref, brev_ref, bis_ref,
                       zp_ref, zl_ref, *, num_layers):
    dot = functools.partial(jnp.dot, preferred_element_type=jnp.float32)

    xp = xp_ref[...]          # (NP, F)  padded paper features, f32 in VMEM
    xl = xl_ref[...]          # (NL, F)  padded label features
    app = app_ref[...]        # (NP, NP) gcn-normalized 'cites' adjacency
    alp = alp_ref[...]        # (NL, NP) 'is'      (paper -> label)
    apl = apl_ref[...]        # (NP, NL) 'rev_is'  (label -> paper)

    for layer in range(num_layers):          # unrolled: 2 or 3 layers
        w_gcn = wgcn_ref[layer]              # (F, F)
        w_rev_rel = wrevrel_ref[layer]
        w_rev_root = wrevroot_ref[layer]
        w_is_rel = wisrel_ref[layer]
        w_is_root = wisroot_ref[layer]
        b_gcn = bgcn_ref[layer]              # (1, F)
        b_rev = brev_ref[layer]
        b_is = bis_ref[layer]

        # GCNConv ('paper','cites','paper'):  A_hat @ (x_p @ W) + b
        gcn_out = dot(app, dot(xp, w_gcn)) + b_gcn
        # GraphConv ('label','rev_is','paper'): (A_pl @ x_l) @ W_rel + x_p @ W_root + b
        rev_out = dot(dot(apl, xl), w_rev_rel) + dot(xp, w_rev_root) + b_rev
        # HeteroConv aggr='mean' over the 2 relations hitting 'paper'
        new_p = 0.5 * (gcn_out + rev_out)
        # GraphConv ('paper','is','label'): (A_lp @ x_p) @ W_rel + x_l @ W_root + b
        new_l = dot(dot(alp, xp), w_is_rel) + dot(xl, w_is_root) + b_is

        if layer < num_layers - 1:           # ReLU after every layer except last
            new_p = jnp.maximum(new_p, 0.0)
            new_l = jnp.maximum(new_l, 0.0)
        xp, xl = new_p, new_l

    zp_ref[...] = xp
    zl_ref[...] = xl


def fused_forward(packed, xp_pad, xl_pad, app, alp, apl, *,
                  num_layers, n_paper, n_label, emb):
    """Single pallas_call for the whole HeteroGCN forward (== LinkPredictor.forward)."""
    vmem = pl.BlockSpec(memory_space=pltpu.MemorySpace.VMEM)
    n_inputs = 5 + len(packed)
    zp_pad, zl_pad = pl.pallas_call(
        functools.partial(_hetero_gcn_kernel, num_layers=num_layers),
        out_shape=(jax.ShapeDtypeStruct(xp_pad.shape, jnp.float32),
                   jax.ShapeDtypeStruct(xl_pad.shape, jnp.float32)),
        in_specs=[vmem] * n_inputs,
        out_specs=(vmem, vmem),
    )(xp_pad, xl_pad, app, alp, apl, *packed)
    return {"paper": zp_pad[:n_paper, :emb], "label": zl_pad[:n_label, :emb]}


# ---------------------------------------------------------------------------
# Pure-jnp f32 reference (mirrors the PyTorch/PyG semantics exactly)
# ---------------------------------------------------------------------------
def ref_forward(params_list, x_p, x_l, a_pp, a_lp, a_pl):
    n = len(params_list)
    for i, p in enumerate(params_list):
        gcn_out = a_pp @ (x_p @ p["w_gcn"]) + p["b_gcn"]
        rev_out = (a_pl @ x_l) @ p["w_rev_rel"] + x_p @ p["w_rev_root"] + p["b_rev"]
        new_p = 0.5 * (gcn_out + rev_out)
        new_l = (a_lp @ x_p) @ p["w_is_rel"] + x_l @ p["w_is_root"] + p["b_is"]
        if i < n - 1:
            new_p = jnp.maximum(new_p, 0.0)
            new_l = jnp.maximum(new_l, 0.0)
        x_p, x_l = new_p, new_l
    return {"paper": x_p, "label": x_l}


# ---------------------------------------------------------------------------
# Parameter / graph construction (JAX glue matching the PyTorch layer defs)
# ---------------------------------------------------------------------------
def _glorot(key, shape):
    return jax.random.normal(key, shape, jnp.float32) / jnp.sqrt(shape[0])


def make_layer_params(key, fp, fl, d):
    ks = jax.random.split(key, 8)
    return {
        # GCNConv ('paper','cites','paper')
        "w_gcn": _glorot(ks[0], (fp, d)),
        "b_gcn": 0.01 * jax.random.normal(ks[1], (d,), jnp.float32),
        # GraphConv ('paper','is','label')
        "w_is_rel": _glorot(ks[2], (fp, d)),
        "w_is_root": _glorot(ks[3], (fl, d)),
        "b_is": 0.01 * jax.random.normal(ks[4], (d,), jnp.float32),
        # GraphConv ('label','rev_is','paper')
        "w_rev_rel": _glorot(ks[5], (fl, d)),
        "w_rev_root": _glorot(ks[6], (fp, d)),
        "b_rev": 0.01 * jax.random.normal(ks[7], (d,), jnp.float32),
    }


def pack_params(params_list, F):
    """Pad & stack per-layer weights/biases ONCE (statics; outside the jitted fwd)."""
    def w(name):
        return jnp.stack([_pad2(p[name], F, F) for p in params_list])
    def b(name):
        return jnp.stack([_pad2(p[name].reshape(1, -1), 1, F) for p in params_list])
    return (w("w_gcn"), w("w_rev_rel"), w("w_rev_root"),
            w("w_is_rel"), w("w_is_root"),
            b("b_gcn"), b("b_rev"), b("b_is"))


def dense_adj(src, dst, n_dst, n_src):
    return jnp.zeros((n_dst, n_src), jnp.float32).at[dst, src].add(1.0)


def gcn_norm_dense(src, dst, n):
    # PyG gcn_norm: add self-loops + symmetric D^-1/2 (A + I) D^-1/2.
    a = dense_adj(src, dst, n, n) + jnp.eye(n, dtype=jnp.float32)
    deg = a.sum(axis=1)
    dis = jnp.where(deg > 0.0, jax.lax.rsqrt(deg), 0.0)
    return a * dis[:, None] * dis[None, :]


# ---------------------------------------------------------------------------
if __name__ == "__main__":
    key = jax.random.PRNGKey(0)
    k_xp, k_xl, k_e1, k_e2, k_e3, k_l1, k_l2, k_l3 = jax.random.split(key, 8)

    # Small hetero graph: 'paper' and 'label' node types.
    n_paper, n_label = 64, 12
    f_paper, f_label = 96, 20
    hidden, emb = 32, 16
    two_layers = False                         # exercise the 3-layer branch

    x_paper = jax.random.normal(k_xp, (n_paper, f_paper), jnp.float32)
    x_label = jax.random.normal(k_xl, (n_label, f_label), jnp.float32)

    # ('paper','cites','paper') edges
    cites_src = jax.random.randint(k_e1, (256,), 0, n_paper)
    cites_dst = jax.random.randint(k_e2, (256,), 0, n_paper)
    # ('paper','is','label') edges (one label per paper); 'rev_is' is the reverse.
    is_src = jnp.arange(n_paper)
    is_dst = jax.random.randint(k_e3, (n_paper,), 0, n_label)

    a_pp = gcn_norm_dense(cites_src, cites_dst, n_paper)   # GCNConv, normalized
    a_lp = dense_adj(is_src, is_dst, n_label, n_paper)     # paper -> label
    a_pl = dense_adj(is_dst, is_src, n_paper, n_label)     # label -> paper

    if two_layers:
        out_dims = (hidden, emb)
        layer_keys = (k_l1, k_l2)
    else:
        out_dims = (hidden, 48, emb)
        layer_keys = (k_l1, k_l2, k_l3)

    params_list = []
    fp, fl = f_paper, f_label
    for lk, d in zip(layer_keys, out_dims):
        params_list.append(make_layer_params(lk, fp, fl, d))
        fp = fl = d

    # --- one-time lane-dense padding of every static operand (outside jit) ---
    F = _round_up(max(f_paper, f_label, *out_dims), 128)   # 128
    NP = _round_up(n_paper, 8)                              # 64
    NL = _round_up(n_label, 8)                              # 16
    packed = pack_params(params_list, F)
    xp_pad = _pad2(x_paper, NP, F)
    xl_pad = _pad2(x_label, NL, F)
    app_pad = _pad2(a_pp, NP, NP)
    alp_pad = _pad2(a_lp, NL, NP)
    apl_pad = _pad2(a_pl, NP, NL)

    fwd = jax.jit(functools.partial(
        fused_forward, num_layers=len(out_dims),
        n_paper=n_paper, n_label=n_label, emb=emb))
    z = fwd(packed, xp_pad, xl_pad, app_pad, alp_pad, apl_pad)
    jax.block_until_ready(z)

    z_ref = ref_forward(params_list, x_paper, x_label, a_pp, a_lp, a_pl)
    for name in ("paper", "label"):
        np.testing.assert_allclose(np.asarray(z[name], np.float32),
                                   np.asarray(z_ref[name], np.float32),
                                   rtol=5e-2, atol=5e-2)

    print("KERNEL_OK")
</pallas_src>

<mosaic_0001>
module attributes {stable_mosaic.version = 11 : i64} {
  func.func @_hetero_gcn_kernel(%arg0: memref<64x128xf32, #tpu.memory_space<vmem>>, %arg1: memref<16x128xf32, #tpu.memory_space<vmem>>, %arg2: memref<64x64xf32, #tpu.memory_space<vmem>>, %arg3: memref<16x64xf32, #tpu.memory_space<vmem>>, %arg4: memref<64x16xf32, #tpu.memory_space<vmem>>, %arg5: memref<3x128x128xf32, #tpu.memory_space<vmem>>, %arg6: memref<3x128x128xf32, #tpu.memory_space<vmem>>, %arg7: memref<3x128x128xf32, #tpu.memory_space<vmem>>, %arg8: memref<3x128x128xf32, #tpu.memory_space<vmem>>, %arg9: memref<3x128x128xf32, #tpu.memory_space<vmem>>, %arg10: memref<3x1x128xf32, #tpu.memory_space<vmem>>, %arg11: memref<3x1x128xf32, #tpu.memory_space<vmem>>, %arg12: memref<3x1x128xf32, #tpu.memory_space<vmem>>, %arg13: memref<64x128xf32, #tpu.memory_space<vmem>>, %arg14: memref<16x128xf32, #tpu.memory_space<vmem>>) attributes {dimension_semantics = [], scalar_prefetch = 0 : i64, scratch_operands = 0 : i64, tpu.core_type = #tpu.core_type<tc>} {
    %c0 = arith.constant 0 : index
    %c0_0 = arith.constant 0 : index
    %0 = vector.load %arg0[%c0, %c0_0] : memref<64x128xf32, #tpu.memory_space<vmem>>, vector<64x128xf32>
    %c0_1 = arith.constant 0 : index
    %c0_2 = arith.constant 0 : index
    %1 = vector.load %arg1[%c0_1, %c0_2] : memref<16x128xf32, #tpu.memory_space<vmem>>, vector<16x128xf32>
    %c0_3 = arith.constant 0 : index
    %c0_4 = arith.constant 0 : index
    %2 = vector.load %arg2[%c0_3, %c0_4] : memref<64x64xf32, #tpu.memory_space<vmem>>, vector<64x64xf32>
    %c0_5 = arith.constant 0 : index
    %c0_6 = arith.constant 0 : index
    %3 = vector.load %arg3[%c0_5, %c0_6] : memref<16x64xf32, #tpu.memory_space<vmem>>, vector<16x64xf32>
    %c0_7 = arith.constant 0 : index
    %c0_8 = arith.constant 0 : index
    %4 = vector.load %arg4[%c0_7, %c0_8] : memref<64x16xf32, #tpu.memory_space<vmem>>, vector<64x16xf32>
    %c0_9 = arith.constant 0 : index
    %c0_10 = arith.constant 0 : index
    %c0_11 = arith.constant 0 : index
    %5 = vector.load %arg5[%c0_9, %c0_10, %c0_11] : memref<3x128x128xf32, #tpu.memory_space<vmem>>, vector<1x128x128xf32>
    %6 = vector.shape_cast %5 : vector<1x128x128xf32> to vector<128x128xf32>
    %c0_12 = arith.constant 0 : index
    %c0_13 = arith.constant 0 : index
    %c0_14 = arith.constant 0 : index
    %7 = vector.load %arg6[%c0_12, %c0_13, %c0_14] : memref<3x128x128xf32, #tpu.memory_space<vmem>>, vector<1x128x128xf32>
    %8 = vector.shape_cast %7 : vector<1x128x128xf32> to vector<128x128xf32>
    %c0_15 = arith.constant 0 : index
    %c0_16 = arith.constant 0 : index
    %c0_17 = arith.constant 0 : index
    %9 = vector.load %arg7[%c0_15, %c0_16, %c0_17] : memref<3x128x128xf32, #tpu.memory_space<vmem>>, vector<1x128x128xf32>
    %10 = vector.shape_cast %9 : vector<1x128x128xf32> to vector<128x128xf32>
    %c0_18 = arith.constant 0 : index
    %c0_19 = arith.constant 0 : index
    %c0_20 = arith.constant 0 : index
    %11 = vector.load %arg8[%c0_18, %c0_19, %c0_20] : memref<3x128x128xf32, #tpu.memory_space<vmem>>, vector<1x128x128xf32>
    %12 = vector.shape_cast %11 : vector<1x128x128xf32> to vector<128x128xf32>
    %c0_21 = arith.constant 0 : index
    %c0_22 = arith.constant 0 : index
    %c0_23 = arith.constant 0 : index
    %13 = vector.load %arg9[%c0_21, %c0_22, %c0_23] : memref<3x128x128xf32, #tpu.memory_space<vmem>>, vector<1x128x128xf32>
    %14 = vector.shape_cast %13 : vector<1x128x128xf32> to vector<128x128xf32>
    %c0_24 = arith.constant 0 : index
    %c0_25 = arith.constant 0 : index
    %c0_26 = arith.constant 0 : index
    %15 = vector.load %arg10[%c0_24, %c0_25, %c0_26] : memref<3x1x128xf32, #tpu.memory_space<vmem>>, vector<1x1x128xf32>
    %16 = vector.shape_cast %15 : vector<1x1x128xf32> to vector<1x128xf32>
    %c0_27 = arith.constant 0 : index
    %c0_28 = arith.constant 0 : index
    %c0_29 = arith.constant 0 : index
    %17 = vector.load %arg11[%c0_27, %c0_28, %c0_29] : memref<3x1x128xf32, #tpu.memory_space<vmem>>, vector<1x1x128xf32>
    %18 = vector.shape_cast %17 : vector<1x1x128xf32> to vector<1x128xf32>
    %c0_30 = arith.constant 0 : index
    %c0_31 = arith.constant 0 : index
    %c0_32 = arith.constant 0 : index
    %19 = vector.load %arg12[%c0_30, %c0_31, %c0_32] : memref<3x1x128xf32, #tpu.memory_space<vmem>>, vector<1x1x128xf32>
    %20 = vector.shape_cast %19 : vector<1x1x128xf32> to vector<1x128xf32>
    %cst = arith.constant dense<0.000000e+00> : vector<64x128xf32>
    %21 = tpu.matmul %0, %6, %cst {dimension_numbers = #tpu.dot_dimension_numbers<[1], [0], [0], [1], [0, 0, 1, 1], [], []>} : vector<64x128xf32>, vector<128x128xf32>, vector<64x128xf32> -> vector<64x128xf32>
    %cst_33 = arith.constant dense<0.000000e+00> : vector<64x128xf32>
    %22 = tpu.matmul %2, %21, %cst_33 {dimension_numbers = #tpu.dot_dimension_numbers<[1], [0], [0], [1], [0, 0, 1, 1], [], []>} : vector<64x64xf32>, vector<64x128xf32>, vector<64x128xf32> -> vector<64x128xf32>
    %23 = vector.broadcast %16 : vector<1x128xf32> to vector<64x128xf32>
    %24 = arith.addf %22, %23 : vector<64x128xf32>
    %cst_34 = arith.constant dense<0.000000e+00> : vector<64x128xf32>
    %25 = tpu.matmul %4, %1, %cst_34 {dimension_numbers = #tpu.dot_dimension_numbers<[1], [0], [0], [1], [0, 0, 1, 1], [], []>} : vector<64x16xf32>, vector<16x128xf32>, vector<64x128xf32> -> vector<64x128xf32>
    %cst_35 = arith.constant dense<0.000000e+00> : vector<64x128xf32>
    %26 = tpu.matmul %25, %8, %cst_35 {dimension_numbers = #tpu.dot_dimension_numbers<[1], [0], [0], [1], [0, 0, 1, 1], [], []>} : vector<64x128xf32>, vector<128x128xf32>, vector<64x128xf32> -> vector<64x128xf32>
    %cst_36 = arith.constant dense<0.000000e+00> : vector<64x128xf32>
    %27 = tpu.matmul %0, %10, %cst_36 {dimension_numbers = #tpu.dot_dimension_numbers<[1], [0], [0], [1], [0, 0, 1, 1], [], []>} : vector<64x128xf32>, vector<128x128xf32>, vector<64x128xf32> -> vector<64x128xf32>
    %28 = arith.addf %26, %27 : vector<64x128xf32>
    %29 = vector.broadcast %18 : vector<1x128xf32> to vector<64x128xf32>
    %30 = arith.addf %28, %29 : vector<64x128xf32>
    %31 = arith.addf %24, %30 : vector<64x128xf32>
    %cst_37 = arith.constant 5.000000e-01 : f32
    %32 = vector.broadcast %cst_37 : f32 to vector<64x128xf32>
    %33 = arith.mulf %32, %31 : vector<64x128xf32>
    %cst_38 = arith.constant dense<0.000000e+00> : vector<16x128xf32>
    %34 = tpu.matmul %3, %0, %cst_38 {dimension_numbers = #tpu.dot_dimension_numbers<[1], [0], [0], [1], [0, 0, 1, 1], [], []>} : vector<16x64xf32>, vector<64x128xf32>, vector<16x128xf32> -> vector<16x128xf32>
    %cst_39 = arith.constant dense<0.000000e+00> : vector<16x128xf32>
    %35 = tpu.matmul %34, %12, %cst_39 {dimension_numbers = #tpu.dot_dimension_numbers<[1], [0], [0], [1], [0, 0, 1, 1], [], []>} : vector<16x128xf32>, vector<128x128xf32>, vector<16x128xf32> -> vector<16x128xf32>
    %cst_40 = arith.constant dense<0.000000e+00> : vector<16x128xf32>
    %36 = tpu.matmul %1, %14, %cst_40 {dimension_numbers = #tpu.dot_dimension_numbers<[1], [0], [0], [1], [0, 0, 1, 1], [], []>} : vector<16x128xf32>, vector<128x128xf32>, vector<16x128xf32> -> vector<16x128xf32>
    %37 = arith.addf %35, %36 : vector<16x128xf32>
    %38 = vector.broadcast %20 : vector<1x128xf32> to vector<16x128xf32>
    %39 = arith.addf %37, %38 : vector<16x128xf32>
    %cst_41 = arith.constant 0.000000e+00 : f32
    %40 = vector.broadcast %cst_41 : f32 to vector<64x128xf32>
    %41 = arith.maximumf %33, %40 : vector<64x128xf32>
    %cst_42 = arith.constant 0.000000e+00 : f32
    %42 = vector.broadcast %cst_42 : f32 to vector<16x128xf32>
    %43 = arith.maximumf %39, %42 : vector<16x128xf32>
    %c1 = arith.constant 1 : index
    %c0_43 = arith.constant 0 : index
    %c0_44 = arith.constant 0 : index
    %44 = vector.load %arg5[%c1, %c0_43, %c0_44] : memref<3x128x128xf32, #tpu.memory_space<vmem>>, vector<1x128x128xf32>
    %45 = vector.shape_cast %44 : vector<1x128x128xf32> to vector<128x128xf32>
    %c1_45 = arith.constant 1 : index
    %c0_46 = arith.constant 0 : index
    %c0_47 = arith.constant 0 : index
    %46 = vector.load %arg6[%c1_45, %c0_46, %c0_47] : memref<3x128x128xf32, #tpu.memory_space<vmem>>, vector<1x128x128xf32>
    %47 = vector.shape_cast %46 : vector<1x128x128xf32> to vector<128x128xf32>
    %c1_48 = arith.constant 1 : index
    %c0_49 = arith.constant 0 : index
    %c0_50 = arith.constant 0 : index
    %48 = vector.load %arg7[%c1_48, %c0_49, %c0_50] : memref<3x128x128xf32, #tpu.memory_space<vmem>>, vector<1x128x128xf32>
    %49 = vector.shape_cast %48 : vector<1x128x128xf32> to vector<128x128xf32>
    %c1_51 = arith.constant 1 : index
    %c0_52 = arith.constant 0 : index
    %c0_53 = arith.constant 0 : index
    %50 = vector.load %arg8[%c1_51, %c0_52, %c0_53] : memref<3x128x128xf32, #tpu.memory_space<vmem>>, vector<1x128x128xf32>
    %51 = vector.shape_cast %50 : vector<1x128x128xf32> to vector<128x128xf32>
    %c1_54 = arith.constant 1 : index
    %c0_55 = arith.constant 0 : index
    %c0_56 = arith.constant 0 : index
    %52 = vector.load %arg9[%c1_54, %c0_55, %c0_56] : memref<3x128x128xf32, #tpu.memory_space<vmem>>, vector<1x128x128xf32>
    %53 = vector.shape_cast %52 : vector<1x128x128xf32> to vector<128x128xf32>
    %c1_57 = arith.constant 1 : index
    %c0_58 = arith.constant 0 : index
    %c0_59 = arith.constant 0 : index
    %54 = vector.load %arg10[%c1_57, %c0_58, %c0_59] : memref<3x1x128xf32, #tpu.memory_space<vmem>>, vector<1x1x128xf32>
    %55 = vector.shape_cast %54 : vector<1x1x128xf32> to vector<1x128xf32>
    %c1_60 = arith.constant 1 : index
    %c0_61 = arith.constant 0 : index
    %c0_62 = arith.constant 0 : index
    %56 = vector.load %arg11[%c1_60, %c0_61, %c0_62] : memref<3x1x128xf32, #tpu.memory_space<vmem>>, vector<1x1x128xf32>
    %57 = vector.shape_cast %56 : vector<1x1x128xf32> to vector<1x128xf32>
    %c1_63 = arith.constant 1 : index
    %c0_64 = arith.constant 0 : index
    %c0_65 = arith.constant 0 : index
    %58 = vector.load %arg12[%c1_63, %c0_64, %c0_65] : memref<3x1x128xf32, #tpu.memory_space<vmem>>, vector<1x1x128xf32>
    %59 = vector.shape_cast %58 : vector<1x1x128xf32> to vector<1x128xf32>
    %cst_66 = arith.constant dense<0.000000e+00> : vector<64x128xf32>
    %60 = tpu.matmul %41, %45, %cst_66 {dimension_numbers = #tpu.dot_dimension_numbers<[1], [0], [0], [1], [0, 0, 1, 1], [], []>} : vector<64x128xf32>, vector<128x128xf32>, vector<64x128xf32> -> vector<64x128xf32>
    %cst_67 = arith.constant dense<0.000000e+00> : vector<64x128xf32>
    %61 = tpu.matmul %2, %60, %cst_67 {dimension_numbers = #tpu.dot_dimension_numbers<[1], [0], [0], [1], [0, 0, 1, 1], [], []>} : vector<64x64xf32>, vector<64x128xf32>, vector<64x128xf32> -> vector<64x128xf32>
    %62 = vector.broadcast %55 : vector<1x128xf32> to vector<64x128xf32>
    %63 = arith.addf %61, %62 : vector<64x128xf32>
    %cst_68 = arith.constant dense<0.000000e+00> : vector<64x128xf32>
    %64 = tpu.matmul %4, %43, %cst_68 {dimension_numbers = #tpu.dot_dimension_numbers<[1], [0], [0], [1], [0, 0, 1, 1], [], []>} : vector<64x16xf32>, vector<16x128xf32>, vector<64x128xf32> -> vector<64x128xf32>
    %cst_69 = arith.constant dense<0.000000e+00> : vector<64x128xf32>
    %65 = tpu.matmul %64, %47, %cst_69 {dimension_numbers = #tpu.dot_dimension_numbers<[1], [0], [0], [1], [0, 0, 1, 1], [], []>} : vector<64x128xf32>, vector<128x128xf32>, vector<64x128xf32> -> vector<64x128xf32>
    %cst_70 = arith.constant dense<0.000000e+00> : vector<64x128xf32>
    %66 = tpu.matmul %41, %49, %cst_70 {dimension_numbers = #tpu.dot_dimension_numbers<[1], [0], [0], [1], [0, 0, 1, 1], [], []>} : vector<64x128xf32>, vector<128x128xf32>, vector<64x128xf32> -> vector<64x128xf32>
    %67 = arith.addf %65, %66 : vector<64x128xf32>
    %68 = vector.broadcast %57 : vector<1x128xf32> to vector<64x128xf32>
    %69 = arith.addf %67, %68 : vector<64x128xf32>
    %70 = arith.addf %63, %69 : vector<64x128xf32>
    %cst_71 = arith.constant 5.000000e-01 : f32
    %71 = vector.broadcast %cst_71 : f32 to vector<64x128xf32>
    %72 = arith.mulf %71, %70 : vector<64x128xf32>
    %cst_72 = arith.constant dense<0.000000e+00> : vector<16x128xf32>
    %73 = tpu.matmul %3, %41, %cst_72 {dimension_numbers = #tpu.dot_dimension_numbers<[1], [0], [0], [1], [0, 0, 1, 1], [], []>} : vector<16x64xf32>, vector<64x128xf32>, vector<16x128xf32> -> vector<16x128xf32>
    %cst_73 = arith.constant dense<0.000000e+00> : vector<16x128xf32>
    %74 = tpu.matmul %73, %51, %cst_73 {dimension_numbers = #tpu.dot_dimension_numbers<[1], [0], [0], [1], [0, 0, 1, 1], [], []>} : vector<16x128xf32>, vector<128x128xf32>, vector<16x128xf32> -> vector<16x128xf32>
    %cst_74 = arith.constant dense<0.000000e+00> : vector<16x128xf32>
    %75 = tpu.matmul %43, %53, %cst_74 {dimension_numbers = #tpu.dot_dimension_numbers<[1], [0], [0], [1], [0, 0, 1, 1], [], []>} : vector<16x128xf32>, vector<128x128xf32>, vector<16x128xf32> -> vector<16x128xf32>
    %76 = arith.addf %74, %75 : vector<16x128xf32>
    %77 = vector.broadcast %59 : vector<1x128xf32> to vector<16x128xf32>
    %78 = arith.addf %76, %77 : vector<16x128xf32>
    %cst_75 = arith.constant 0.000000e+00 : f32
    %79 = vector.broadcast %cst_75 : f32 to vector<64x128xf32>
    %80 = arith.maximumf %72, %79 : vector<64x128xf32>
    %cst_76 = arith.constant 0.000000e+00 : f32
    %81 = vector.broadcast %cst_76 : f32 to vector<16x128xf32>
    %82 = arith.maximumf %78, %81 : vector<16x128xf32>
    %c2 = arith.constant 2 : index
    %c0_77 = arith.constant 0 : index
    %c0_78 = arith.constant 0 : index
    %83 = vector.load %arg5[%c2, %c0_77, %c0_78] : memref<3x128x128xf32, #tpu.memory_space<vmem>>, vector<1x128x128xf32>
    %84 = vector.shape_cast %83 : vector<1x128x128xf32> to vector<128x128xf32>
    %c2_79 = arith.constant 2 : index
    %c0_80 = arith.constant 0 : index
    %c0_81 = arith.constant 0 : index
    %85 = vector.load %arg6[%c2_79, %c0_80, %c0_81] : memref<3x128x128xf32, #tpu.memory_space<vmem>>, vector<1x128x128xf32>
    %86 = vector.shape_cast %85 : vector<1x128x128xf32> to vector<128x128xf32>
    %c2_82 = arith.constant 2 : index
    %c0_83 = arith.constant 0 : index
    %c0_84 = arith.constant 0 : index
    %87 = vector.load %arg7[%c2_82, %c0_83, %c0_84] : memref<3x128x128xf32, #tpu.memory_space<vmem>>, vector<1x128x128xf32>
    %88 = vector.shape_cast %87 : vector<1x128x128xf32> to vector<128x128xf32>
    %c2_85 = arith.constant 2 : index
    %c0_86 = arith.constant 0 : index
    %c0_87 = arith.constant 0 : index
    %89 = vector.load %arg8[%c2_85, %c0_86, %c0_87] : memref<3x128x128xf32, #tpu.memory_space<vmem>>, vector<1x128x128xf32>
    %90 = vector.shape_cast %89 : vector<1x128x128xf32> to vector<128x128xf32>
    %c2_88 = arith.constant 2 : index
    %c0_89 = arith.constant 0 : index
    %c0_90 = arith.constant 0 : index
    %91 = vector.load %arg9[%c2_88, %c0_89, %c0_90] : memref<3x128x128xf32, #tpu.memory_space<vmem>>, vector<1x128x128xf32>
    %92 = vector.shape_cast %91 : vector<1x128x128xf32> to vector<128x128xf32>
    %c2_91 = arith.constant 2 : index
    %c0_92 = arith.constant 0 : index
    %c0_93 = arith.constant 0 : index
    %93 = vector.load %arg10[%c2_91, %c0_92, %c0_93] : memref<3x1x128xf32, #tpu.memory_space<vmem>>, vector<1x1x128xf32>
    %94 = vector.shape_cast %93 : vector<1x1x128xf32> to vector<1x128xf32>
    %c2_94 = arith.constant 2 : index
    %c0_95 = arith.constant 0 : index
    %c0_96 = arith.constant 0 : index
    %95 = vector.load %arg11[%c2_94, %c0_95, %c0_96] : memref<3x1x128xf32, #tpu.memory_space<vmem>>, vector<1x1x128xf32>
    %96 = vector.shape_cast %95 : vector<1x1x128xf32> to vector<1x128xf32>
    %c2_97 = arith.constant 2 : index
    %c0_98 = arith.constant 0 : index
    %c0_99 = arith.constant 0 : index
    %97 = vector.load %arg12[%c2_97, %c0_98, %c0_99] : memref<3x1x128xf32, #tpu.memory_space<vmem>>, vector<1x1x128xf32>
    %98 = vector.shape_cast %97 : vector<1x1x128xf32> to vector<1x128xf32>
    %cst_100 = arith.constant dense<0.000000e+00> : vector<64x128xf32>
    %99 = tpu.matmul %80, %84, %cst_100 {dimension_numbers = #tpu.dot_dimension_numbers<[1], [0], [0], [1], [0, 0, 1, 1], [], []>} : vector<64x128xf32>, vector<128x128xf32>, vector<64x128xf32> -> vector<64x128xf32>
    %cst_101 = arith.constant dense<0.000000e+00> : vector<64x128xf32>
    %100 = tpu.matmul %2, %99, %cst_101 {dimension_numbers = #tpu.dot_dimension_numbers<[1], [0], [0], [1], [0, 0, 1, 1], [], []>} : vector<64x64xf32>, vector<64x128xf32>, vector<64x128xf32> -> vector<64x128xf32>
    %101 = vector.broadcast %94 : vector<1x128xf32> to vector<64x128xf32>
    %102 = arith.addf %100, %101 : vector<64x128xf32>
    %cst_102 = arith.constant dense<0.000000e+00> : vector<64x128xf32>
    %103 = tpu.matmul %4, %82, %cst_102 {dimension_numbers = #tpu.dot_dimension_numbers<[1], [0], [0], [1], [0, 0, 1, 1], [], []>} : vector<64x16xf32>, vector<16x128xf32>, vector<64x128xf32> -> vector<64x128xf32>
    %cst_103 = arith.constant dense<0.000000e+00> : vector<64x128xf32>
    %104 = tpu.matmul %103, %86, %cst_103 {dimension_numbers = #tpu.dot_dimension_numbers<[1], [0], [0], [1], [0, 0, 1, 1], [], []>} : vector<64x128xf32>, vector<128x128xf32>, vector<64x128xf32> -> vector<64x128xf32>
    %cst_104 = arith.constant dense<0.000000e+00> : vector<64x128xf32>
    %105 = tpu.matmul %80, %88, %cst_104 {dimension_numbers = #tpu.dot_dimension_numbers<[1], [0], [0], [1], [0, 0, 1, 1], [], []>} : vector<64x128xf32>, vector<128x128xf32>, vector<64x128xf32> -> vector<64x128xf32>
    %106 = arith.addf %104, %105 : vector<64x128xf32>
    %107 = vector.broadcast %96 : vector<1x128xf32> to vector<64x128xf32>
    %108 = arith.addf %106, %107 : vector<64x128xf32>
    %109 = arith.addf %102, %108 : vector<64x128xf32>
    %cst_105 = arith.constant 5.000000e-01 : f32
    %110 = vector.broadcast %cst_105 : f32 to vector<64x128xf32>
    %111 = arith.mulf %110, %109 : vector<64x128xf32>
    %cst_106 = arith.constant dense<0.000000e+00> : vector<16x128xf32>
    %112 = tpu.matmul %3, %80, %cst_106 {dimension_numbers = #tpu.dot_dimension_numbers<[1], [0], [0], [1], [0, 0, 1, 1], [], []>} : vector<16x64xf32>, vector<64x128xf32>, vector<16x128xf32> -> vector<16x128xf32>
    %cst_107 = arith.constant dense<0.000000e+00> : vector<16x128xf32>
    %113 = tpu.matmul %112, %90, %cst_107 {dimension_numbers = #tpu.dot_dimension_numbers<[1], [0], [0], [1], [0, 0, 1, 1], [], []>} : vector<16x128xf32>, vector<128x128xf32>, vector<16x128xf32> -> vector<16x128xf32>
    %cst_108 = arith.constant dense<0.000000e+00> : vector<16x128xf32>
    %114 = tpu.matmul %82, %92, %cst_108 {dimension_numbers = #tpu.dot_dimension_numbers<[1], [0], [0], [1], [0, 0, 1, 1], [], []>} : vector<16x128xf32>, vector<128x128xf32>, vector<16x128xf32> -> vector<16x128xf32>
    %115 = arith.addf %113, %114 : vector<16x128xf32>
    %116 = vector.broadcast %98 : vector<1x128xf32> to vector<16x128xf32>
    %117 = arith.addf %115, %116 : vector<16x128xf32>
    %c0_109 = arith.constant 0 : index
    %c0_110 = arith.constant 0 : index
    %118 = vector.load %arg13[%c0_109, %c0_110] : memref<64x128xf32, #tpu.memory_space<vmem>>, vector<64x128xf32>
    tpu.vector_store %arg13[%c0_109, %c0_110], %111 {strides = array<i32>} : memref<64x128xf32, #tpu.memory_space<vmem>>, vector<64x128xf32>,
    %c0_111 = arith.constant 0 : index
    %c0_112 = arith.constant 0 : index
    %119 = vector.load %arg14[%c0_111, %c0_112] : memref<16x128xf32, #tpu.memory_space<vmem>>, vector<16x128xf32>
    tpu.vector_store %arg14[%c0_111, %c0_112], %117 {strides = array<i32>} : memref<16x128xf32, #tpu.memory_space<vmem>>, vector<16x128xf32>,
    return
  }
}

</mosaic_0001>

<llo_original>
// kernel: fused_forward.1
$region0: #{fused_forward.1}
  #allocation0 [shape = 'u32[]', space=smem, size = 0x4, offset = 0x4, fixed_abs, tag = 'smem constant byte address 0x4 - core index']
  #allocation1 [shape = 'u32[144,128]{1,0:T(1,128)}', space=vmem, size = 0x12000, scoped, tag = 'internal scratch']
  %s0 = inlined_call_operand.vmem [shape: f32[64,128], index: 0, kind: input, shape index: {}]
  %s1 = inlined_call_operand.vmem [shape: f32[16,128], index: 1, kind: input, shape index: {}]
  %s2 = inlined_call_operand.hbm [shape: f32[64,64], index: 2, kind: input, shape index: {}]
  %s3 = inlined_call_operand.vmem [shape: f32[16,64], index: 3, kind: input, shape index: {}]
  %s4 = inlined_call_operand.vmem [shape: f32[64,16], index: 4, kind: input, shape index: {}]
  %s5 = inlined_call_operand.hbm [shape: f32[3,128,128], index: 5, kind: input, shape index: {}]
  %s6 = inlined_call_operand.hbm [shape: f32[3,128,128], index: 6, kind: input, shape index: {}]
  %s7 = inlined_call_operand.hbm [shape: f32[3,128,128], index: 7, kind: input, shape index: {}]
  %s8 = inlined_call_operand.hbm [shape: f32[3,128,128], index: 8, kind: input, shape index: {}]
  %s9 = inlined_call_operand.hbm [shape: f32[3,128,128], index: 9, kind: input, shape index: {}]
  %s10 = inlined_call_operand.hbm [shape: f32[3,1,128], index: 10, kind: input, shape index: {}]
  %s11 = inlined_call_operand.hbm [shape: f32[3,1,128], index: 11, kind: input, shape index: {}]
  %s12 = inlined_call_operand.hbm [shape: f32[3,1,128], index: 12, kind: input, shape index: {}]
  %s13 = inlined_call_operand.vmem [shape: f32[64,128], index: 13, kind: output, shape index: {0}]
  %s14 = inlined_call_operand.hbm [shape: f32[16,128], index: 14, kind: output, shape index: {1}]
  %15 = xla_tuple %s13, %s14
  %s16 = sld [smem:[#allocation0]]
  $region106: #{fused_forward.1} parent=0
    _
  %s18 = ssub.s32 1, %s16
  %s19 = scalar_select 0, %s18, %s16
  $region1: #{fused_forward.1} parent=0
    #allocation2 [shape = 'u8[32768]{0}', space=vmem, size = 0x8000, scoped, tag = 'input window, operand 2, single buffered']
    #allocation3 [shape = 's32[1]{0}', space=sflag, size = 0x4, scoped, tag = 'scoped memory for fused_forward.1']
    #allocation4 [shape = 's32[1]{0}', space=sflag, size = 0x4, scoped, tag = 'scoped memory for fused_forward.1']
    #allocation5 [shape = 'u8[196608]{0}', space=vmem, size = 0x30000, scoped, tag = 'input window, operand 5, single buffered']
    #allocation6 [shape = 's32[1]{0}', space=sflag, size = 0x4, scoped, tag = 'scoped memory for fused_forward.1']
    #allocation7 [shape = 'u8[196608]{0}', space=vmem, size = 0x30000, scoped, tag = 'input window, operand 6, single buffered']
    #allocation8 [shape = 'u8[196608]{0}', space=vmem, size = 0x30000, scoped, tag = 'input window, operand 7, single buffered']
    #allocation9 [shape = 's32[1]{0}', space=sflag, size = 0x4, scoped, tag = 'scoped memory for fused_forward.1']
    #allocation10 [shape = 'u8[196608]{0}', space=vmem, size = 0x30000, scoped, tag = 'input window, operand 8, single buffered']
    #allocation11 [shape = 'u8[196608]{0}', space=vmem, size = 0x30000, scoped, tag = 'input window, operand 9, single buffered']
    #allocation12 [shape = 's32[1]{0}', space=sflag, size = 0x4, scoped, tag = 'scoped memory for fused_forward.1']
    #allocation13 [shape = 'u8[1536]{0}', space=vmem, size = 0x800, scoped, tag = 'input window, operand 10, single buffered']
    #allocation14 [shape = 'u8[1536]{0}', space=vmem, size = 0x800, scoped, tag = 'input window, operand 11, single buffered']
    #allocation15 [shape = 's32[1]{0}', space=sflag, size = 0x4, scoped, tag = 'scoped memory for fused_forward.1']
    #allocation16 [shape = 'u8[1536]{0}', space=vmem, size = 0x800, scoped, tag = 'input window, operand 12, single buffered']
    #allocation17 [shape = 'u8[8192]{0}', space=vmem, size = 0x2000, scoped, tag = 'output window, operand 1, single buffered']
    %20 = vsyncpa [#allocation3], 0
    %21 = vsyncpa [#allocation6], 0
    %22 = vsyncpa [#allocation9], 0
    %23 = vsyncpa [#allocation12], 0
    %24 = vsyncpa [#allocation15], 0
    %25 = vsyncpa [#allocation4], 0
    // Predicated region
    $region2: #{fused_forward.1} parent=1 // pred_check
      _
    $region3: #{fused_forward.1} parent=1 // pred_check_branch
      %27 = sbr.rel (0) target = $region5
    $region4: #{fused_forward.1} parent=1 // pred_region
      _
    $region5: #{fused_forward.1} parent=1 // pred_fallthru
      _
    // Predicated region
    $region6: #{fused_forward.1} parent=1 // pred_check
      _
    $region7: #{fused_forward.1} parent=1 // pred_check_branch
      %29 = sbr.rel (0) target = $region9
    $region8: #{fused_forward.1} parent=1 // pred_region
      _
    $region9: #{fused_forward.1} parent=1 // pred_fallthru
      _
    // Predicated region
    $region10: #{fused_forward.1} parent=1 // pred_check
      _
    $region11: #{fused_forward.1} parent=1 // pred_check_branch
      %31 = sbr.rel (0) target = $region13
    $region12: #{fused_forward.1} parent=1 // pred_region
      %s33 = ssub.s32 1024, 1024
      %34 = vsyncadd [#allocation3], %s33
      %s35 = sshll.u32 [#allocation2], 4
      %s36 = int_to_ptr.vmem [resolvable:$true] %s35
      %41 = dma.hbm_to_vmem [thread:$0]  %s2, 1024, %s36, [#allocation3], 128, 128, 8
    $region13: #{fused_forward.1} parent=1 // pred_fallthru
      _
    // Predicated region
    $region14: #{fused_forward.1} parent=1 // pred_check
      _
    $region15: #{fused_forward.1} parent=1 // pred_check_branch
      %43 = sbr.rel (0) target = $region17
    $region16: #{fused_forward.1} parent=1 // pred_region
      _
    $region17: #{fused_forward.1} parent=1 // pred_fallthru
      _
    // Predicated region
    $region18: #{fused_forward.1} parent=1 // pred_check
      _
    $region19: #{fused_forward.1} parent=1 // pred_check_branch
      %45 = sbr.rel (0) target = $region21
    $region20: #{fused_forward.1} parent=1 // pred_region
      _
    $region21: #{fused_forward.1} parent=1 // pred_fallthru
      _
    // Predicated region
    $region22: #{fused_forward.1} parent=1 // pred_check
      _
    $region23: #{fused_forward.1} parent=1 // pred_check_branch
      %47 = sbr.rel (0) target = $region25
    $region24: #{fused_forward.1} parent=1 // pred_region
      %s49 = ssub.s32 6144, 6144
      %50 = vsyncadd [#allocation6], %s49
      %s51 = sshll.u32 [#allocation5], 4
      %s52 = int_to_ptr.vmem [resolvable:$true] %s51
      %57 = dma.hbm_to_vmem [thread:$0]  %s5, 6144, %s52, [#allocation6], 128, 128, 8
    $region25: #{fused_forward.1} parent=1 // pred_fallthru
      _
    // Predicated region
    $region26: #{fused_forward.1} parent=1 // pred_check
      _
    $region27: #{fused_forward.1} parent=1 // pred_check_branch
      %59 = sbr.rel (0) target = $region29
    $region28: #{fused_forward.1} parent=1 // pred_region
      %s61 = ssub.s32 6144, 6144
      %62 = vsyncadd [#allocation6], %s61
      %s63 = sshll.u32 [#allocation7], 4
      %s64 = int_to_ptr.vmem [resolvable:$true] %s63
      %69 = dma.hbm_to_vmem [thread:$0]  %s6, 6144, %s64, [#allocation6], 128, 128, 8
    $region29: #{fused_forward.1} parent=1 // pred_fallthru
      _
    // Predicated region
    $region30: #{fused_forward.1} parent=1 // pred_check
      _
    $region31: #{fused_forward.1} parent=1 // pred_check_branch
      %71 = sbr.rel (0) target = $region33
    $region32: #{fused_forward.1} parent=1 // pred_region
      %s73 = ssub.s32 6144, 6144
      %74 = vsyncadd [#allocation9], %s73
      %s75 = sshll.u32 [#allocation8], 4
      %s76 = int_to_ptr.vmem [resolvable:$true] %s75
      %81 = dma.hbm_to_vmem [thread:$0]  %s7, 6144, %s76, [#allocation9], 128, 128, 8
    $region33: #{fused_forward.1} parent=1 // pred_fallthru
      _
    // Predicated region
    $region34: #{fused_forward.1} parent=1 // pred_check
      _
    $region35: #{fused_forward.1} parent=1 // pred_check_branch
      %83 = sbr.rel (0) target = $region37
    $region36: #{fused_forward.1} parent=1 // pred_region
      %s85 = ssub.s32 6144, 6144
      %86 = vsyncadd [#allocation9], %s85
      %s87 = sshll.u32 [#allocation10], 4
      %s88 = int_to_ptr.vmem [resolvable:$true] %s87
      %93 = dma.hbm_to_vmem [thread:$0]  %s8, 6144, %s88, [#allocation9], 128, 128, 8
    $region37: #{fused_forward.1} parent=1 // pred_fallthru
      _
    // Predicated region
    $region38: #{fused_forward.1} parent=1 // pred_check
      _
    $region39: #{fused_forward.1} parent=1 // pred_check_branch
      %95 = sbr.rel (0) target = $region41
    $region40: #{fused_forward.1} parent=1 // pred_region
      %s97 = ssub.s32 6144, 6144
      %98 = vsyncadd [#allocation12], %s97
      %s99 = sshll.u32 [#allocation11], 4
      %s100 = int_to_ptr.vmem [resolvable:$true] %s99
      %105 = dma.hbm_to_vmem [thread:$0]  %s9, 6144, %s100, [#allocation12], 128, 128, 8
    $region41: #{fused_forward.1} parent=1 // pred_fallthru
      _
    // Predicated region
    $region42: #{fused_forward.1} parent=1 // pred_check
      _
    $region43: #{fused_forward.1} parent=1 // pred_check_branch
      %107 = sbr.rel (0) target = $region45
    $region44: #{fused_forward.1} parent=1 // pred_region
      %s109 = ssub.s32 48, 48
      %110 = vsyncadd [#allocation12], %s109
      %s111 = sshll.u32 [#allocation13], 4
      %s112 = int_to_ptr.vmem [resolvable:$true] %s111
      %117 = dma.hbm_to_vmem [thread:$0]  %s10, 48, %s112, [#allocation12], 16, 16, 1
    $region45: #{fused_forward.1} parent=1 // pred_fallthru
      _
    // Predicated region
    $region46: #{fused_forward.1} parent=1 // pred_check
      _
    $region47: #{fused_forward.1} parent=1 // pred_check_branch
      %119 = sbr.rel (0) target = $region49
    $region48: #{fused_forward.1} parent=1 // pred_region
      %s121 = ssub.s32 48, 48
      %122 = vsyncadd [#allocation15], %s121
      %s123 = sshll.u32 [#allocation14], 4
      %s124 = int_to_ptr.vmem [resolvable:$true] %s123
      %129 = dma.hbm_to_vmem [thread:$0]  %s11, 48, %s124, [#allocation15], 16, 16, 1
    $region49: #{fused_forward.1} parent=1 // pred_fallthru
      _
    // Predicated region
    $region50: #{fused_forward.1} parent=1 // pred_check
      _
    $region51: #{fused_forward.1} parent=1 // pred_check_branch
      %131 = sbr.rel (0) target = $region53
    $region52: #{fused_forward.1} parent=1 // pred_region
      %s133 = ssub.s32 48, 48
      %134 = vsyncadd [#allocation15], %s133
      %s135 = sshll.u32 [#allocation16], 4
      %s136 = int_to_ptr.vmem [resolvable:$true] %s135
      %141 = dma.hbm_to_vmem [thread:$0]  %s12, 48, %s136, [#allocation15], 16, 16, 1
    $region53: #{fused_forward.1} parent=1 // pred_fallthru
      _
    // Predicated region
    $region54: #{fused_forward.1} parent=1 // pred_check
      _
    $region55: #{fused_forward.1} parent=1 // pred_check_branch
      %143 = sbr.rel (0) target = $region57
    $region56: #{fused_forward.1} parent=1 // pred_region
      %144 = dma.done [#allocation3], 1024
    $region57: #{fused_forward.1} parent=1 // pred_fallthru
      _
    // Predicated region
    $region58: #{fused_forward.1} parent=1 // pred_check
      _
    $region59: #{fused_forward.1} parent=1 // pred_check_branch
      %146 = sbr.rel (0) target = $region61
    $region60: #{fused_forward.1} parent=1 // pred_region
      %147 = dma.done [#allocation6], 6144
    $region61: #{fused_forward.1} parent=1 // pred_fallthru
      _
    // Predicated region
    $region62: #{fused_forward.1} parent=1 // pred_check
      _
    $region63: #{fused_forward.1} parent=1 // pred_check_branch
      %149 = sbr.rel (0) target = $region65
    $region64: #{fused_forward.1} parent=1 // pred_region
      %150 = dma.done [#allocation6], 6144
    $region65: #{fused_forward.1} parent=1 // pred_fallthru
      _
    // Predicated region
    $region66: #{fused_forward.1} parent=1 // pred_check
      _
    $region67: #{fused_forward.1} parent=1 // pred_check_branch
      %152 = sbr.rel (0) target = $region69
    $region68: #{fused_forward.1} parent=1 // pred_region
      %153 = dma.done [#allocation9], 6144
    $region69: #{fused_forward.1} parent=1 // pred_fallthru
      _
    // Predicated region
    $region70: #{fused_forward.1} parent=1 // pred_check
      _
    $region71: #{fused_forward.1} parent=1 // pred_check_branch
      %155 = sbr.rel (0) target = $region73
    $region72: #{fused_forward.1} parent=1 // pred_region
      %156 = dma.done [#allocation9], 6144
    $region73: #{fused_forward.1} parent=1 // pred_fallthru
      _
    // Predicated region
    $region74: #{fused_forward.1} parent=1 // pred_check
      _
    $region75: #{fused_forward.1} parent=1 // pred_check_branch
      %158 = sbr.rel (0) target = $region77
    $region76: #{fused_forward.1} parent=1 // pred_region
      %159 = dma.done [#allocation12], 6144
    $region77: #{fused_forward.1} parent=1 // pred_fallthru
      _
    // Predicated region
    $region78: #{fused_forward.1} parent=1 // pred_check
      _
    $region79: #{fused_forward.1} parent=1 // pred_check_branch
      %161 = sbr.rel (0) target = $region81
    $region80: #{fused_forward.1} parent=1 // pred_region
      %162 = dma.done [#allocation12], 48
    $region81: #{fused_forward.1} parent=1 // pred_fallthru
      _
    // Predicated region
    $region82: #{fused_forward.1} parent=1 // pred_check
      _
    $region83: #{fused_forward.1} parent=1 // pred_check_branch
      %164 = sbr.rel (0) target = $region85
    $region84: #{fused_forward.1} parent=1 // pred_region
      %165 = dma.done [#allocation15], 48
    $region85: #{fused_forward.1} parent=1 // pred_fallthru
      _
    // Predicated region
    $region86: #{fused_forward.1} parent=1 // pred_check
      _
    $region87: #{fused_forward.1} parent=1 // pred_check_branch
      %167 = sbr.rel (0) target = $region89
    $region88: #{fused_forward.1} parent=1 // pred_region
      %168 = dma.done [#allocation15], 48
    $region89: #{fused_forward.1} parent=1 // pred_fallthru
      _
    %v169 = vld [vmem:[%s0] sm:$0xff]
    %v170 = vld [vmem:[%s0 + $0x8] sm:$0xff]
    %v171 = vld [vmem:[%s0 + $0x10] sm:$0xff]
    %v172 = vld [vmem:[%s0 + $0x18] sm:$0xff]
    %v173 = vld [vmem:[%s0 + $0x20] sm:$0xff]
    %v174 = vld [vmem:[%s0 + $0x28] sm:$0xff]
    %v175 = vld [vmem:[%s0 + $0x30] sm:$0xff]
    %v176 = vld [vmem:[%s0 + $0x38] sm:$0xff]
    %v177 = vld [vmem:[%s1] sm:$0xff]
    %v178 = vld [vmem:[%s1 + $0x8] sm:$0xff]
    %v179 = vld [vmem:[#allocation2] sm:$0xff]
    %v180 = vld [vmem:[#allocation2 + $0x8] sm:$0xff]
    %v181 = vld [vmem:[#allocation2 + $0x10] sm:$0xff]
    %v182 = vld [vmem:[#allocation2 + $0x18] sm:$0xff]
    %v183 = vld [vmem:[#allocation2 + $0x20] sm:$0xff]
    %v184 = vld [vmem:[#allocation2 + $0x28] sm:$0xff]
    %v185 = vld [vmem:[#allocation2 + $0x30] sm:$0xff]
    %v186 = vld [vmem:[#allocation2 + $0x38] sm:$0xff]
    %v187 = vld [vmem:[%s3] sm:$0xff]
    %v188 = vld [vmem:[%s3 + $0x8] sm:$0xff]
    %v189 = vld [vmem:[%s4] sm:$0xff]
    %v190 = vld [vmem:[%s4 + $0x8] sm:$0xff]
    %v191 = vld [vmem:[%s4 + $0x10] sm:$0xff]
    %v192 = vld [vmem:[%s4 + $0x18] sm:$0xff]
    %v193 = vld [vmem:[%s4 + $0x20] sm:$0xff]
    %v194 = vld [vmem:[%s4 + $0x28] sm:$0xff]
    %v195 = vld [vmem:[%s4 + $0x30] sm:$0xff]
    %v196 = vld [vmem:[%s4 + $0x38] sm:$0xff]
    %v197 = vld [vmem:[#allocation5] sm:$0xff]
    %v198 = vld [vmem:[#allocation5 + $0x8] sm:$0xff]
    %v199 = vld [vmem:[#allocation5 + $0x10] sm:$0xff]
    %v200 = vld [vmem:[#allocation5 + $0x18] sm:$0xff]
    %v201 = vld [vmem:[#allocation5 + $0x20] sm:$0xff]
    %v202 = vld [vmem:[#allocation5 + $0x28] sm:$0xff]
    %v203 = vld [vmem:[#allocation5 + $0x30] sm:$0xff]
    %v204 = vld [vmem:[#allocation5 + $0x38] sm:$0xff]
    %v205 = vld [vmem:[#allocation5 + $0x40] sm:$0xff]
    %v206 = vld [vmem:[#allocation5 + $0x48] sm:$0xff]
    %v207 = vld [vmem:[#allocation5 + $0x50] sm:$0xff]
    %v208 = vld [vmem:[#allocation5 + $0x58] sm:$0xff]
    %v209 = vld [vmem:[#allocation5 + $0x60] sm:$0xff]
    %v210 = vld [vmem:[#allocation5 + $0x68] sm:$0xff]
    %v211 = vld [vmem:[#allocation5 + $0x70] sm:$0xff]
    %v212 = vld [vmem:[#allocation5 + $0x78] sm:$0xff]
    %v213 = vld [vmem:[#allocation7] sm:$0xff]
    %v214 = vld [vmem:[#allocation7 + $0x8] sm:$0xff]
    %v215 = vld [vmem:[#allocation7 + $0x10] sm:$0xff]
    %v216 = vld [vmem:[#allocation7 + $0x18] sm:$0xff]
    %v217 = vld [vmem:[#allocation7 + $0x20] sm:$0xff]
    %v218 = vld [vmem:[#allocation7 + $0x28] sm:$0xff]
    %v219 = vld [vmem:[#allocation7 + $0x30] sm:$0xff]
    %v220 = vld [vmem:[#allocation7 + $0x38] sm:$0xff]
    %v221 = vld [vmem:[#allocation7 + $0x40] sm:$0xff]
    %v222 = vld [vmem:[#allocation7 + $0x48] sm:$0xff]
    %v223 = vld [vmem:[#allocation7 + $0x50] sm:$0xff]
    %v224 = vld [vmem:[#allocation7 + $0x58] sm:$0xff]
    %v225 = vld [vmem:[#allocation7 + $0x60] sm:$0xff]
    %v226 = vld [vmem:[#allocation7 + $0x68] sm:$0xff]
    %v227 = vld [vmem:[#allocation7 + $0x70] sm:$0xff]
    %v228 = vld [vmem:[#allocation7 + $0x78] sm:$0xff]
    %v229 = vld [vmem:[#allocation8] sm:$0xff]
    %v230 = vld [vmem:[#allocation8 + $0x8] sm:$0xff]
    %v231 = vld [vmem:[#allocation8 + $0x10] sm:$0xff]
    %v232 = vld [vmem:[#allocation8 + $0x18] sm:$0xff]
    %v233 = vld [vmem:[#allocation8 + $0x20] sm:$0xff]
    %v234 = vld [vmem:[#allocation8 + $0x28] sm:$0xff]
    %v235 = vld [vmem:[#allocation8 + $0x30] sm:$0xff]
    %v236 = vld [vmem:[#allocation8 + $0x38] sm:$0xff]
    %v237 = vld [vmem:[#allocation8 + $0x40] sm:$0xff]
    %v238 = vld [vmem:[#allocation8 + $0x48] sm:$0xff]
    %v239 = vld [vmem:[#allocation8 + $0x50] sm:$0xff]
    %v240 = vld [vmem:[#allocation8 + $0x58] sm:$0xff]
    %v241 = vld [vmem:[#allocation8 + $0x60] sm:$0xff]
    %v242 = vld [vmem:[#allocation8 + $0x68] sm:$0xff]
    %v243 = vld [vmem:[#allocation8 + $0x70] sm:$0xff]
    %v244 = vld [vmem:[#allocation8 + $0x78] sm:$0xff]
    %v245 = vld [vmem:[#allocation10] sm:$0xff]
    %v246 = vld [vmem:[#allocation10 + $0x8] sm:$0xff]
    %v247 = vld [vmem:[#allocation10 + $0x10] sm:$0xff]
    %v248 = vld [vmem:[#allocation10 + $0x18] sm:$0xff]
    %v249 = vld [vmem:[#allocation10 + $0x20] sm:$0xff]
    %v250 = vld [vmem:[#allocation10 + $0x28] sm:$0xff]
    %v251 = vld [vmem:[#allocation10 + $0x30] sm:$0xff]
    %v252 = vld [vmem:[#allocation10 + $0x38] sm:$0xff]
    %v253 = vld [vmem:[#allocation10 + $0x40] sm:$0xff]
    %v254 = vld [vmem:[#allocation10 + $0x48] sm:$0xff]
    %v255 = vld [vmem:[#allocation10 + $0x50] sm:$0xff]
    %v256 = vld [vmem:[#allocation10 + $0x58] sm:$0xff]
    %v257 = vld [vmem:[#allocation10 + $0x60] sm:$0xff]
    %v258 = vld [vmem:[#allocation10 + $0x68] sm:$0xff]
    %v259 = vld [vmem:[#allocation10 + $0x70] sm:$0xff]
    %v260 = vld [vmem:[#allocation10 + $0x78] sm:$0xff]
    %v261 = vld [vmem:[#allocation11] sm:$0xff]
    %v262 = vld [vmem:[#allocation11 + $0x8] sm:$0xff]
    %v263 = vld [vmem:[#allocation11 + $0x10] sm:$0xff]
    %v264 = vld [vmem:[#allocation11 + $0x18] sm:$0xff]
    %v265 = vld [vmem:[#allocation11 + $0x20] sm:$0xff]
    %v266 = vld [vmem:[#allocation11 + $0x28] sm:$0xff]
    %v267 = vld [vmem:[#allocation11 + $0x30] sm:$0xff]
    %v268 = vld [vmem:[#allocation11 + $0x38] sm:$0xff]
    %v269 = vld [vmem:[#allocation11 + $0x40] sm:$0xff]
    %v270 = vld [vmem:[#allocation11 + $0x48] sm:$0xff]
    %v271 = vld [vmem:[#allocation11 + $0x50] sm:$0xff]
    %v272 = vld [vmem:[#allocation11 + $0x58] sm:$0xff]
    %v273 = vld [vmem:[#allocation11 + $0x60] sm:$0xff]
    %v274 = vld [vmem:[#allocation11 + $0x68] sm:$0xff]
    %v275 = vld [vmem:[#allocation11 + $0x70] sm:$0xff]
    %v276 = vld [vmem:[#allocation11 + $0x78] sm:$0xff]
    %v277 = vld [vmem:[#allocation13] sm:$0x1]
    %v278 = vld [vmem:[#allocation14] sm:$0x1]
    %v279 = vld [vmem:[#allocation16] sm:$0x1]
    %280 = vmatprep.subr.mxu0 0.0
    %281 = vmatpush1.msra.mxu0 %v197
    %282 = vmatprep.subr.mxu0 0.0
    %283 = vmatpush1.msra.mxu0 %v198
    %284 = vmatprep.subr.mxu0 0.0
    %285 = vmatpush1.msra.mxu0 %v199
    %286 = vmatprep.subr.mxu0 0.0
    %287 = vmatpush1.msra.mxu0 %v200
    %288 = vmatprep.subr.mxu0 0.0
    %289 = vmatpush1.msra.mxu0 %v201
    %290 = vmatprep.subr.mxu0 0.0
    %291 = vmatpush1.msra.mxu0 %v202
    %292 = vmatprep.subr.mxu0 0.0
    %293 = vmatpush1.msra.mxu0 %v203
    %294 = vmatprep.subr.mxu0 0.0
    %295 = vmatpush1.msra.mxu0 %v204
    %296 = vmatprep.subr.mxu0 0.0
    %297 = vmatpush1.msra.mxu0 %v205
    %298 = vmatprep.subr.mxu0 0.0
    %299 = vmatpush1.msra.mxu0 %v206
    %300 = vmatprep.subr.mxu0 0.0
    %301 = vmatpush1.msra.mxu0 %v207
    %302 = vmatprep.subr.mxu0 0.0
    %303 = vmatpush1.msra.mxu0 %v208
    %304 = vmatprep.subr.mxu0 0.0
    %305 = vmatpush1.msra.mxu0 %v209
    %306 = vmatprep.subr.mxu0 0.0
    %307 = vmatpush1.msra.mxu0 %v210
    %308 = vmatprep.subr.mxu0 0.0
    %309 = vmatpush1.msra.mxu0 %v211
    %310 = vmatprep.subr.mxu0 0.0
    %311 = vmatpush1.msra.mxu0 %v212
    %312 = vmatprep.subr.mxu0 0.0
    %313 = vmatpush1.msra.mxu0 0.0
    %314 = vmatprep.subr.mxu0 0.0
    %315 = vmatpush1.msra.mxu0 0.0
    %316 = vmatprep.subr.mxu0 0.0
    %317 = vmatpush1.msra.mxu0 0.0
    %318 = vmatprep.subr.mxu0 0.0
    %319 = vmatpush1.msra.mxu0 0.0
    %320 = vmatprep.subr.mxu0 0.0
    %321 = vmatpush1.msra.mxu0 0.0
    %322 = vmatprep.subr.mxu0 0.0
    %323 = vmatpush1.msra.mxu0 0.0
    %324 = vmatprep.subr.mxu0 0.0
    %325 = vmatpush1.msra.mxu0 0.0
    %326 = vmatprep.subr.mxu0 0.0
    %327 = vmatpush1.msra.mxu0 0.0
    %328 = vmatprep.subr.mxu0 0.0
    %329 = vmatpush1.msra.mxu0 0.0
    %330 = vmatprep.subr.mxu0 0.0
    %331 = vmatpush1.msra.mxu0 0.0
    %332 = vmatprep.subr.mxu0 0.0
    %333 = vmatpush1.msra.mxu0 0.0
    %334 = vmatprep.subr.mxu0 0.0
    %335 = vmatpush1.msra.mxu0 0.0
    %336 = vmatprep.subr.mxu0 0.0
    %337 = vmatpush1.msra.mxu0 0.0
    %338 = vmatprep.subr.mxu0 0.0
    %339 = vmatpush1.msra.mxu0 0.0
    %340 = vmatprep.subr.mxu0 0.0
    %341 = vmatpush1.msra.mxu0 0.0
    %342 = vmatprep.subr.mxu0 0.0
    %343 = vmatpush1.msra.mxu0 0.0
    %344 = vmatprep.mubr.f32.mxu0 0.0
    %345 = vmatmul.mubr.f32.gmra.mrb[0].mxu0 %v169
    %v346 = vpop.f32.mrb[0].mxu0
    %v347 = vadd.f32 0.0, %v346
    %v348 = vpop.f32.mrb[0].mxu0
    %349 = vmatprep.mubr.f32.mxu0 0.0
    %350 = vmatmul.mubr.f32.gmra.mrb[0].mxu0 %v170
    %v351 = vpop.f32.mrb[0].mxu0
    %v352 = vadd.f32 0.0, %v351
    %v353 = vpop.f32.mrb[0].mxu0
    %354 = vmatprep.mubr.f32.mxu0 0.0
    %355 = vmatmul.mubr.f32.gmra.mrb[0].mxu0 %v171
    %v356 = vpop.f32.mrb[0].mxu0
    %v357 = vadd.f32 0.0, %v356
    %v358 = vpop.f32.mrb[0].mxu0
    %359 = vmatprep.mubr.f32.mxu0 0.0
    %360 = vmatmul.mubr.f32.gmra.mrb[0].mxu0 %v172
    %v361 = vpop.f32.mrb[0].mxu0
    %v362 = vadd.f32 0.0, %v361
    %v363 = vpop.f32.mrb[0].mxu0
    %364 = vmatprep.mubr.f32.mxu0 0.0
    %365 = vmatmul.mubr.f32.gmra.mrb[0].mxu0 %v173
    %v366 = vpop.f32.mrb[0].mxu0
    %v367 = vadd.f32 0.0, %v366
    %v368 = vpop.f32.mrb[0].mxu0
    %369 = vmatprep.mubr.f32.mxu0 0.0
    %370 = vmatmul.mubr.f32.gmra.mrb[0].mxu0 %v174
    %v371 = vpop.f32.mrb[0].mxu0
    %v372 = vadd.f32 0.0, %v371
    %v373 = vpop.f32.mrb[0].mxu0
    %374 = vmatprep.mubr.f32.mxu0 0.0
    %375 = vmatmul.mubr.f32.gmra.mrb[0].mxu0 %v175
    %v376 = vpop.f32.mrb[0].mxu0
    %v377 = vadd.f32 0.0, %v376
    %v378 = vpop.f32.mrb[0].mxu0
    %379 = vmatprep.mubr.f32.mxu0 0.0
    %380 = vmatmul.mubr.f32.gmra.mrb[0].mxu0 %v176
    %v381 = vpop.f32.mrb[0].mxu0
    %v382 = vadd.f32 0.0, %v381
    %v383 = vpop.f32.mrb[0].mxu0
    %384 = vdwg.mxu0
    %v386 = vlaneseq
    %v387 = vshrl.u32 %v386, 7
    %v388 = vsub.s32 0, %v387
    %v389 = vrot.slane %v277, %v388
    %vm391 = vcmask 523264
    %v393 = vsel %vm391, %v179, 0
    %v396 = vsel %vm391, %v180, 0
    %v399 = vsel %vm391, %v181, 0
    %v402 = vsel %vm391, %v182, 0
    %v405 = vsel %vm391, %v183, 0
    %v408 = vsel %vm391, %v184, 0
    %v411 = vsel %vm391, %v185, 0
    %v414 = vsel %vm391, %v186, 0
    %416 = vmatprep.subr.mxu0 0.0
    %417 = vmatpush1.msra.mxu0 %v347
    %418 = vmatprep.subr.mxu0 0.0
    %419 = vmatpush1.msra.mxu0 %v352
    %420 = vmatprep.subr.mxu0 0.0
    %421 = vmatpush1.msra.mxu0 %v357
    %422 = vmatprep.subr.mxu0 0.0
    %423 = vmatpush1.msra.mxu0 %v362
    %424 = vmatprep.subr.mxu0 0.0
    %425 = vmatpush1.msra.mxu0 %v367
    %426 = vmatprep.subr.mxu0 0.0
    %427 = vmatpush1.msra.mxu0 %v372
    %428 = vmatprep.subr.mxu0 0.0
    %429 = vmatpush1.msra.mxu0 %v377
    %430 = vmatprep.subr.mxu0 0.0
    %431 = vmatpush1.msra.mxu0 %v382
    %432 = vmatprep.subr.mxu0 0.0
    %433 = vmatpush1.msra.mxu0 0.0
    %434 = vmatprep.subr.mxu0 0.0
    %435 = vmatpush1.msra.mxu0 0.0
    %436 = vmatprep.subr.mxu0 0.0
    %437 = vmatpush1.msra.mxu0 0.0
    %438 = vmatprep.subr.mxu0 0.0
    %439 = vmatpush1.msra.mxu0 0.0
    %440 = vmatprep.subr.mxu0 0.0
    %441 = vmatpush1.msra.mxu0 0.0
    %442 = vmatprep.subr.mxu0 0.0
    %443 = vmatpush1.msra.mxu0 0.0
    %444 = vmatprep.subr.mxu0 0.0
    %445 = vmatpush1.msra.mxu0 0.0
    %446 = vmatprep.subr.mxu0 0.0
    %447 = vmatpush1.msra.mxu0 0.0
    %448 = vmatprep.subr.mxu0 0.0
    %449 = vmatpush1.msra.mxu0 0.0
    %450 = vmatprep.subr.mxu0 0.0
    %451 = vmatpush1.msra.mxu0 0.0
    %452 = vmatprep.subr.mxu0 0.0
    %453 = vmatpush1.msra.mxu0 0.0
    %454 = vmatprep.subr.mxu0 0.0
    %455 = vmatpush1.msra.mxu0 0.0
    %456 = vmatprep.subr.mxu0 0.0
    %457 = vmatpush1.msra.mxu0 0.0
    %458 = vmatprep.subr.mxu0 0.0
    %459 = vmatpush1.msra.mxu0 0.0
    %460 = vmatprep.subr.mxu0 0.0
    %461 = vmatpush1.msra.mxu0 0.0
    %462 = vmatprep.subr.mxu0 0.0
    %463 = vmatpush1.msra.mxu0 0.0
    %464 = vmatprep.subr.mxu0 0.0
    %465 = vmatpush1.msra.mxu0 0.0
    %466 = vmatprep.subr.mxu0 0.0
    %467 = vmatpush1.msra.mxu0 0.0
    %468 = vmatprep.subr.mxu0 0.0
    %469 = vmatpush1.msra.mxu0 0.0
    %470 = vmatprep.subr.mxu0 0.0
    %471 = vmatpush1.msra.mxu0 0.0
    %472 = vmatprep.subr.mxu0 0.0
    %473 = vmatpush1.msra.mxu0 0.0
    %474 = vmatprep.subr.mxu0 0.0
    %475 = vmatpush1.msra.mxu0 0.0
    %476 = vmatprep.subr.mxu0 0.0
    %477 = vmatpush1.msra.mxu0 0.0
    %478 = vmatprep.subr.mxu0 0.0
    %479 = vmatpush1.msra.mxu0 0.0
    %480 = vmatprep.mubr.f32.mxu0 0.0
    %481 = vmatmul.mubr.f32.gmra.mrb[0].mxu0 %v393
    %v482 = vpop.f32.mrb[0].mxu0
    %v483 = vadd.f32 %v389, %v482
    %v484 = vpop.f32.mrb[0].mxu0
    %485 = vmatprep.mubr.f32.mxu0 0.0
    %486 = vmatmul.mubr.f32.gmra.mrb[0].mxu0 %v396
    %v487 = vpop.f32.mrb[0].mxu0
    %v488 = vadd.f32 %v389, %v487
    %v489 = vpop.f32.mrb[0].mxu0
    %490 = vmatprep.mubr.f32.mxu0 0.0
    %491 = vmatmul.mubr.f32.gmra.mrb[0].mxu0 %v399
    %v492 = vpop.f32.mrb[0].mxu0
    %v493 = vadd.f32 %v389, %v492
    %v494 = vpop.f32.mrb[0].mxu0
    %495 = vmatprep.mubr.f32.mxu0 0.0
    %496 = vmatmul.mubr.f32.gmra.mrb[0].mxu0 %v402
    %v497 = vpop.f32.mrb[0].mxu0
    %v498 = vadd.f32 %v389, %v497
    %v499 = vpop.f32.mrb[0].mxu0
    %500 = vmatprep.mubr.f32.mxu0 0.0
    %501 = vmatmul.mubr.f32.gmra.mrb[0].mxu0 %v405
    %v502 = vpop.f32.mrb[0].mxu0
    %v503 = vadd.f32 %v389, %v502
    %v504 = vpop.f32.mrb[0].mxu0
    %505 = vmatprep.mubr.f32.mxu0 0.0
    %506 = vmatmul.mubr.f32.gmra.mrb[0].mxu0 %v408
    %v507 = vpop.f32.mrb[0].mxu0
    %v508 = vadd.f32 %v389, %v507
    %v509 = vpop.f32.mrb[0].mxu0
    %510 = vmatprep.mubr.f32.mxu0 0.0
    %511 = vmatmul.mubr.f32.gmra.mrb[0].mxu0 %v411
    %v512 = vpop.f32.mrb[0].mxu0
    %v513 = vadd.f32 %v389, %v512
    %v514 = vpop.f32.mrb[0].mxu0
    %515 = vmatprep.mubr.f32.mxu0 0.0
    %516 = vmatmul.mubr.f32.gmra.mrb[0].mxu0 %v414
    %v517 = vpop.f32.mrb[0].mxu0
    %v518 = vadd.f32 %v389, %v517
    %v519 = vpop.f32.mrb[0].mxu0
    %520 = vdwg.mxu0
    %vm521 = vcmask 130048
    %v523 = vsel %vm521, %v189, 0
    %v526 = vsel %vm521, %v190, 0
    %v529 = vsel %vm521, %v191, 0
    %v532 = vsel %vm521, %v192, 0
    %v535 = vsel %vm521, %v193, 0
    %v538 = vsel %vm521, %v194, 0
    %v541 = vsel %vm521, %v195, 0
    %v544 = vsel %vm521, %v196, 0
    %546 = vmatprep.subr.mxu0 0.0
    %547 = vmatpush1.msra.mxu0 %v177
    %548 = vmatprep.subr.mxu0 0.0
    %549 = vmatpush1.msra.mxu0 %v178
    %550 = vmatprep.subr.mxu0 0.0
    %551 = vmatpush1.msra.mxu0 0.0
    %552 = vmatprep.subr.mxu0 0.0
    %553 = vmatpush1.msra.mxu0 0.0
    %554 = vmatprep.subr.mxu0 0.0
    %555 = vmatpush1.msra.mxu0 0.0
    %556 = vmatprep.subr.mxu0 0.0
    %557 = vmatpush1.msra.mxu0 0.0
    %558 = vmatprep.subr.mxu0 0.0
    %559 = vmatpush1.msra.mxu0 0.0
    %560 = vmatprep.subr.mxu0 0.0
    %561 = vmatpush1.msra.mxu0 0.0
    %562 = vmatprep.subr.mxu0 0.0
    %563 = vmatpush1.msra.mxu0 0.0
    %564 = vmatprep.subr.mxu0 0.0
    %565 = vmatpush1.msra.mxu0 0.0
    %566 = vmatprep.subr.mxu0 0.0
    %567 = vmatpush1.msra.mxu0 0.0
    %568 = vmatprep.subr.mxu0 0.0
    %569 = vmatpush1.msra.mxu0 0.0
    %570 = vmatprep.subr.mxu0 0.0
    %571 = vmatpush1.msra.mxu0 0.0
    %572 = vmatprep.subr.mxu0 0.0
    %573 = vmatpush1.msra.mxu0 0.0
    %574 = vmatprep.subr.mxu0 0.0
    %575 = vmatpush1.msra.mxu0 0.0
    %576 = vmatprep.subr.mxu0 0.0
    %577 = vmatpush1.msra.mxu0 0.0
    %578 = vmatprep.subr.mxu0 0.0
    %579 = vmatpush1.msra.mxu0 0.0
    %580 = vmatprep.subr.mxu0 0.0
    %581 = vmatpush1.msra.mxu0 0.0
    %582 = vmatprep.subr.mxu0 0.0
    %583 = vmatpush1.msra.mxu0 0.0
    %584 = vmatprep.subr.mxu0 0.0
    %585 = vmatpush1.msra.mxu0 0.0
    %586 = vmatprep.subr.mxu0 0.0
    %587 = vmatpush1.msra.mxu0 0.0
    %588 = vmatprep.subr.mxu0 0.0
    %589 = vmatpush1.msra.mxu0 0.0
    %590 = vmatprep.subr.mxu0 0.0
    %591 = vmatpush1.msra.mxu0 0.0
    %592 = vmatprep.subr.mxu0 0.0
    %593 = vmatpush1.msra.mxu0 0.0
    %594 = vmatprep.subr.mxu0 0.0
    %595 = vmatpush1.msra.mxu0 0.0
    %596 = vmatprep.subr.mxu0 0.0
    %597 = vmatpush1.msra.mxu0 0.0
    %598 = vmatprep.subr.mxu0 0.0
    %599 = vmatpush1.msra.mxu0 0.0
    %600 = vmatprep.subr.mxu0 0.0
    %601 = vmatpush1.msra.mxu0 0.0
    %602 = vmatprep.subr.mxu0 0.0
    %603 = vmatpush1.msra.mxu0 0.0
    %604 = vmatprep.subr.mxu0 0.0
    %605 = vmatpush1.msra.mxu0 0.0
    %606 = vmatprep.subr.mxu0 0.0
    %607 = vmatpush1.msra.mxu0 0.0
    %608 = vmatprep.subr.mxu0 0.0
    %609 = vmatpush1.msra.mxu0 0.0
    %610 = vmatprep.mubr.f32.mxu0 0.0
    %611 = vmatmul.mubr.f32.gmra.mrb[0].mxu0 %v523
    %v612 = vpop.f32.mrb[0].mxu0
    %v613 = vadd.f32 0.0, %v612
    %v614 = vpop.f32.mrb[0].mxu0
    %615 = vmatprep.mubr.f32.mxu0 0.0
    %616 = vmatmul.mubr.f32.gmra.mrb[0].mxu0 %v526
    %v617 = vpop.f32.mrb[0].mxu0
    %v618 = vadd.f32 0.0, %v617
    %v619 = vpop.f32.mrb[0].mxu0
    %620 = vmatprep.mubr.f32.mxu0 0.0
    %621 = vmatmul.mubr.f32.gmra.mrb[0].mxu0 %v529
    %v622 = vpop.f32.mrb[0].mxu0
    %v623 = vadd.f32 0.0, %v622
    %v624 = vpop.f32.mrb[0].mxu0
    %625 = vmatprep.mubr.f32.mxu0 0.0
    %626 = vmatmul.mubr.f32.gmra.mrb[0].mxu0 %v532
    %v627 = vpop.f32.mrb[0].mxu0
    %v628 = vadd.f32 0.0, %v627
    %v629 = vpop.f32.mrb[0].mxu0
    %630 = vmatprep.mubr.f32.mxu0 0.0
    %631 = vmatmul.mubr.f32.gmra.mrb[0].mxu0 %v535
    %v632 = vpop.f32.mrb[0].mxu0
    %v633 = vadd.f32 0.0, %v632
    %v634 = vpop.f32.mrb[0].mxu0
    %635 = vmatprep.mubr.f32.mxu0 0.0
    %636 = vmatmul.mubr.f32.gmra.mrb[0].mxu0 %v538
    %v637 = vpop.f32.mrb[0].mxu0
    %v638 = vadd.f32 0.0, %v637
    %v639 = vpop.f32.mrb[0].mxu0
    %640 = vmatprep.mubr.f32.mxu0 0.0
    %641 = vmatmul.mubr.f32.gmra.mrb[0].mxu0 %v541
    %v642 = vpop.f32.mrb[0].mxu0
    %v643 = vadd.f32 0.0, %v642
    %v644 = vpop.f32.mrb[0].mxu0
    %645 = vmatprep.mubr.f32.mxu0 0.0
    %646 = vmatmul.mubr.f32.gmra.mrb[0].mxu0 %v544
    %v647 = vpop.f32.mrb[0].mxu0
    %v648 = vadd.f32 0.0, %v647
    %v649 = vpop.f32.mrb[0].mxu0
    %650 = vdwg.mxu0
    %651 = vmatprep.subr.mxu0 0.0
    %652 = vmatpush1.msra.mxu0 %v229
    %653 = vmatprep.subr.mxu0 0.0
    %654 = vmatpush1.msra.mxu0 %v230
    %655 = vmatprep.subr.mxu0 0.0
    %656 = vmatpush1.msra.mxu0 %v231
    %657 = vmatprep.subr.mxu0 0.0
    %658 = vmatpush1.msra.mxu0 %v232
    %659 = vmatprep.subr.mxu0 0.0
    %660 = vmatpush1.msra.mxu0 %v233
    %661 = vmatprep.subr.mxu0 0.0
    %662 = vmatpush1.msra.mxu0 %v234
    %663 = vmatprep.subr.mxu0 0.0
    %664 = vmatpush1.msra.mxu0 %v235
    %665 = vmatprep.subr.mxu0 0.0
    %666 = vmatpush1.msra.mxu0 %v236
    %667 = vmatprep.subr.mxu0 0.0
    %668 = vmatpush1.msra.mxu0 %v237
    %669 = vmatprep.subr.mxu0 0.0
    %670 = vmatpush1.msra.mxu0 %v238
    %671 = vmatprep.subr.mxu0 0.0
    %672 = vmatpush1.msra.mxu0 %v239
    %673 = vmatprep.subr.mxu0 0.0
    %674 = vmatpush1.msra.mxu0 %v240
    %675 = vmatprep.subr.mxu0 0.0
    %676 = vmatpush1.msra.mxu0 %v241
    %677 = vmatprep.subr.mxu0 0.0
    %678 = vmatpush1.msra.mxu0 %v242
    %679 = vmatprep.subr.mxu0 0.0
    %680 = vmatpush1.msra.mxu0 %v243
    %681 = vmatprep.subr.mxu0 0.0
    %682 = vmatpush1.msra.mxu0 %v244
    %683 = vmatprep.subr.mxu0 0.0
    %684 = vmatpush1.msra.mxu0 0.0
    %685 = vmatprep.subr.mxu0 0.0
    %686 = vmatpush1.msra.mxu0 0.0
    %687 = vmatprep.subr.mxu0 0.0
    %688 = vmatpush1.msra.mxu0 0.0
    %689 = vmatprep.subr.mxu0 0.0
    %690 = vmatpush1.msra.mxu0 0.0
    %691 = vmatprep.subr.mxu0 0.0
    %692 = vmatpush1.msra.mxu0 0.0
    %693 = vmatprep.subr.mxu0 0.0
    %694 = vmatpush1.msra.mxu0 0.0
    %695 = vmatprep.subr.mxu0 0.0
    %696 = vmatpush1.msra.mxu0 0.0
    %697 = vmatprep.subr.mxu0 0.0
    %698 = vmatpush1.msra.mxu0 0.0
    %699 = vmatprep.subr.mxu0 0.0
    %700 = vmatpush1.msra.mxu0 0.0
    %701 = vmatprep.subr.mxu0 0.0
    %702 = vmatpush1.msra.mxu0 0.0
    %703 = vmatprep.subr.mxu0 0.0
    %704 = vmatpush1.msra.mxu0 0.0
    %705 = vmatprep.subr.mxu0 0.0
    %706 = vmatpush1.msra.mxu0 0.0
    %707 = vmatprep.subr.mxu0 0.0
    %708 = vmatpush1.msra.mxu0 0.0
    %709 = vmatprep.subr.mxu0 0.0
    %710 = vmatpush1.msra.mxu0 0.0
    %711 = vmatprep.subr.mxu0 0.0
    %712 = vmatpush1.msra.mxu0 0.0
    %713 = vmatprep.subr.mxu0 0.0
    %714 = vmatpush1.msra.mxu0 0.0
    %715 = vmatprep.mubr.f32.mxu0 0.0
    %716 = vmatmul.mubr.f32.gmra.mrb[0].mxu0 %v169
    %v717 = vpop.f32.mrb[0].mxu0
    %v718 = vadd.f32 0.0, %v717
    %v719 = vpop.f32.mrb[0].mxu0
    %720 = vmatprep.mubr.f32.mxu0 0.0
    %721 = vmatmul.mubr.f32.gmra.mrb[0].mxu0 %v170
    %v722 = vpop.f32.mrb[0].mxu0
    %v723 = vadd.f32 0.0, %v722
    %v724 = vpop.f32.mrb[0].mxu0
    %725 = vmatprep.mubr.f32.mxu0 0.0
    %726 = vmatmul.mubr.f32.gmra.mrb[0].mxu0 %v171
    %v727 = vpop.f32.mrb[0].mxu0
    %v728 = vadd.f32 0.0, %v727
    %v729 = vpop.f32.mrb[0].mxu0
    %730 = vmatprep.mubr.f32.mxu0 0.0
    %731 = vmatmul.mubr.f32.gmra.mrb[0].mxu0 %v172
    %v732 = vpop.f32.mrb[0].mxu0
    %v733 = vadd.f32 0.0, %v732
    %v734 = vpop.f32.mrb[0].mxu0
    %735 = vmatprep.mubr.f32.mxu0 0.0
    %736 = vmatmul.mubr.f32.gmra.mrb[0].mxu0 %v173
    %v737 = vpop.f32.mrb[0].mxu0
    %v738 = vadd.f32 0.0, %v737
    %v739 = vpop.f32.mrb[0].mxu0
    %740 = vmatprep.mubr.f32.mxu0 0.0
    %741 = vmatmul.mubr.f32.gmra.mrb[0].mxu0 %v174
    %v742 = vpop.f32.mrb[0].mxu0
    %v743 = vadd.f32 0.0, %v742
    %v744 = vpop.f32.mrb[0].mxu0
    %745 = vmatprep.mubr.f32.mxu0 0.0
    %746 = vmatmul.mubr.f32.gmra.mrb[0].mxu0 %v175
    %v747 = vpop.f32.mrb[0].mxu0
    %v748 = vadd.f32 0.0, %v747
    %v749 = vpop.f32.mrb[0].mxu0
    %750 = vmatprep.mubr.f32.mxu0 0.0
    %751 = vmatmul.mubr.f32.gmra.mrb[0].mxu0 %v176
    %v752 = vpop.f32.mrb[0].mxu0
    %v753 = vadd.f32 0.0, %v752
    %v754 = vpop.f32.mrb[0].mxu0
    %755 = vdwg.mxu0
    %756 = vmatprep.subr.mxu0 0.0
    %757 = vmatpush1.msra.mxu0 %v213
    %758 = vmatprep.subr.mxu0 0.0
    %759 = vmatpush1.msra.mxu0 %v214
    %760 = vmatprep.subr.mxu0 0.0
    %761 = vmatpush1.msra.mxu0 %v215
    %762 = vmatprep.subr.mxu0 0.0
    %763 = vmatpush1.msra.mxu0 %v216
    %764 = vmatprep.subr.mxu0 0.0
    %765 = vmatpush1.msra.mxu0 %v217
    %766 = vmatprep.subr.mxu0 0.0
    %767 = vmatpush1.msra.mxu0 %v218
    %768 = vmatprep.subr.mxu0 0.0
    %769 = vmatpush1.msra.mxu0 %v219
    %770 = vmatprep.subr.mxu0 0.0
    %771 = vmatpush1.msra.mxu0 %v220
    %772 = vmatprep.subr.mxu0 0.0
    %773 = vmatpush1.msra.mxu0 %v221
    %774 = vmatprep.subr.mxu0 0.0
    %775 = vmatpush1.msra.mxu0 %v222
    %776 = vmatprep.subr.mxu0 0.0
    %777 = vmatpush1.msra.mxu0 %v223
    %778 = vmatprep.subr.mxu0 0.0
    %779 = vmatpush1.msra.mxu0 %v224
    %780 = vmatprep.subr.mxu0 0.0
    %781 = vmatpush1.msra.mxu0 %v225
    %782 = vmatprep.subr.mxu0 0.0
    %783 = vmatpush1.msra.mxu0 %v226
    %784 = vmatprep.subr.mxu0 0.0
    %785 = vmatpush1.msra.mxu0 %v227
    %786 = vmatprep.subr.mxu0 0.0
    %787 = vmatpush1.msra.mxu0 %v228
    %788 = vmatprep.subr.mxu0 0.0
    %789 = vmatpush1.msra.mxu0 0.0
    %790 = vmatprep.subr.mxu0 0.0
    %791 = vmatpush1.msra.mxu0 0.0
    %792 = vmatprep.subr.mxu0 0.0
    %793 = vmatpush1.msra.mxu0 0.0
    %794 = vmatprep.subr.mxu0 0.0
    %795 = vmatpush1.msra.mxu0 0.0
    %796 = vmatprep.subr.mxu0 0.0
    %797 = vmatpush1.msra.mxu0 0.0
    %798 = vmatprep.subr.mxu0 0.0
    %799 = vmatpush1.msra.mxu0 0.0
    %800 = vmatprep.subr.mxu0 0.0
    %801 = vmatpush1.msra.mxu0 0.0
    %802 = vmatprep.subr.mxu0 0.0
    %803 = vmatpush1.msra.mxu0 0.0
    %804 = vmatprep.subr.mxu0 0.0
    %805 = vmatpush1.msra.mxu0 0.0
    %806 = vmatprep.subr.mxu0 0.0
    %807 = vmatpush1.msra.mxu0 0.0
    %808 = vmatprep.subr.mxu0 0.0
    %809 = vmatpush1.msra.mxu0 0.0
    %810 = vmatprep.subr.mxu0 0.0
    %811 = vmatpush1.msra.mxu0 0.0
    %812 = vmatprep.subr.mxu0 0.0
    %813 = vmatpush1.msra.mxu0 0.0
    %814 = vmatprep.subr.mxu0 0.0
    %815 = vmatpush1.msra.mxu0 0.0
    %816 = vmatprep.subr.mxu0 0.0
    %817 = vmatpush1.msra.mxu0 0.0
    %818 = vmatprep.subr.mxu0 0.0
    %819 = vmatpush1.msra.mxu0 0.0
    %820 = vmatprep.mubr.f32.mxu0 0.0
    %821 = vmatmul.mubr.f32.gmra.mrb[0].mxu0 %v613
    %v822 = vpop.f32.mrb[0].mxu0
    %v823 = vadd.f32 %v718, %v822
    %v824 = vpop.f32.mrb[0].mxu0
    %825 = vmatprep.mubr.f32.mxu0 0.0
    %826 = vmatmul.mubr.f32.gmra.mrb[0].mxu0 %v618
    %v827 = vpop.f32.mrb[0].mxu0
    %v828 = vadd.f32 %v723, %v827
    %v829 = vpop.f32.mrb[0].mxu0
    %830 = vmatprep.mubr.f32.mxu0 0.0
    %831 = vmatmul.mubr.f32.gmra.mrb[0].mxu0 %v623
    %v832 = vpop.f32.mrb[0].mxu0
    %v833 = vadd.f32 %v728, %v832
    %v834 = vpop.f32.mrb[0].mxu0
    %835 = vmatprep.mubr.f32.mxu0 0.0
    %836 = vmatmul.mubr.f32.gmra.mrb[0].mxu0 %v628
    %v837 = vpop.f32.mrb[0].mxu0
    %v838 = vadd.f32 %v733, %v837
    %v839 = vpop.f32.mrb[0].mxu0
    %840 = vmatprep.mubr.f32.mxu0 0.0
    %841 = vmatmul.mubr.f32.gmra.mrb[0].mxu0 %v633
    %v842 = vpop.f32.mrb[0].mxu0
    %v843 = vadd.f32 %v738, %v842
    %v844 = vpop.f32.mrb[0].mxu0
    %845 = vmatprep.mubr.f32.mxu0 0.0
    %846 = vmatmul.mubr.f32.gmra.mrb[0].mxu0 %v638
    %v847 = vpop.f32.mrb[0].mxu0
    %v848 = vadd.f32 %v743, %v847
    %v849 = vpop.f32.mrb[0].mxu0
    %850 = vmatprep.mubr.f32.mxu0 0.0
    %851 = vmatmul.mubr.f32.gmra.mrb[0].mxu0 %v643
    %v852 = vpop.f32.mrb[0].mxu0
    %v853 = vadd.f32 %v748, %v852
    %v854 = vpop.f32.mrb[0].mxu0
    %855 = vmatprep.mubr.f32.mxu0 0.0
    %856 = vmatmul.mubr.f32.gmra.mrb[0].mxu0 %v648
    %v857 = vpop.f32.mrb[0].mxu0
    %v858 = vadd.f32 %v753, %v857
    %v859 = vpop.f32.mrb[0].mxu0
    %860 = vdwg.mxu0
    %v862 = vlaneseq
    %v863 = vshrl.u32 %v862, 7
    %v864 = vsub.s32 0, %v863
    %v865 = vrot.slane %v278, %v864
    %v867 = vadd.f32 %v823, %v865
    %v868 = vadd.f32 %v828, %v865
    %v869 = vadd.f32 %v833, %v865
    %v870 = vadd.f32 %v838, %v865
    %v871 = vadd.f32 %v843, %v865
    %v872 = vadd.f32 %v848, %v865
    %v873 = vadd.f32 %v853, %v865
    %v874 = vadd.f32 %v858, %v865
    %v875 = vadd.f32 %v483, %v867
    %v876 = vadd.f32 %v488, %v868
    %v877 = vadd.f32 %v493, %v869
    %v878 = vadd.f32 %v498, %v870
    %v879 = vadd.f32 %v503, %v871
    %v880 = vadd.f32 %v508, %v872
    %v881 = vadd.f32 %v513, %v873
    %v882 = vadd.f32 %v518, %v874
    %v883 = vmul.f32 %v875, 0.5
    %v884 = vmul.f32 %v876, 0.5
    %v885 = vmul.f32 %v877, 0.5
    %v886 = vmul.f32 %v878, 0.5
    %v887 = vmul.f32 %v879, 0.5
    %v888 = vmul.f32 %v880, 0.5
    %v889 = vmul.f32 %v881, 0.5
    %v890 = vmul.f32 %v882, 0.5
    %v892 = vsel %vm391, %v187, 0
    %v895 = vsel %vm391, %v188, 0
    %897 = vmatprep.subr.mxu0 0.0
    %898 = vmatpush1.msra.mxu0 %v169
    %899 = vmatprep.subr.mxu0 0.0
    %900 = vmatpush1.msra.mxu0 %v170
    %901 = vmatprep.subr.mxu0 0.0
    %902 = vmatpush1.msra.mxu0 %v171
    %903 = vmatprep.subr.mxu0 0.0
    %904 = vmatpush1.msra.mxu0 %v172
    %905 = vmatprep.subr.mxu0 0.0
    %906 = vmatpush1.msra.mxu0 %v173
    %907 = vmatprep.subr.mxu0 0.0
    %908 = vmatpush1.msra.mxu0 %v174
    %909 = vmatprep.subr.mxu0 0.0
    %910 = vmatpush1.msra.mxu0 %v175
    %911 = vmatprep.subr.mxu0 0.0
    %912 = vmatpush1.msra.mxu0 %v176
    %913 = vmatprep.subr.mxu0 0.0
    %914 = vmatpush1.msra.mxu0 0.0
    %915 = vmatprep.subr.mxu0 0.0
    %916 = vmatpush1.msra.mxu0 0.0
    %917 = vmatprep.subr.mxu0 0.0
    %918 = vmatpush1.msra.mxu0 0.0
    %919 = vmatprep.subr.mxu0 0.0
    %920 = vmatpush1.msra.mxu0 0.0
    %921 = vmatprep.subr.mxu0 0.0
    %922 = vmatpush1.msra.mxu0 0.0
    %923 = vmatprep.subr.mxu0 0.0
    %924 = vmatpush1.msra.mxu0 0.0
    %925 = vmatprep.subr.mxu0 0.0
    %926 = vmatpush1.msra.mxu0 0.0
    %927 = vmatprep.subr.mxu0 0.0
    %928 = vmatpush1.msra.mxu0 0.0
    %929 = vmatprep.subr.mxu0 0.0
    %930 = vmatpush1.msra.mxu0 0.0
    %931 = vmatprep.subr.mxu0 0.0
    %932 = vmatpush1.msra.mxu0 0.0
    %933 = vmatprep.subr.mxu0 0.0
    %934 = vmatpush1.msra.mxu0 0.0
    %935 = vmatprep.subr.mxu0 0.0
    %936 = vmatpush1.msra.mxu0 0.0
    %937 = vmatprep.subr.mxu0 0.0
    %938 = vmatpush1.msra.mxu0 0.0
    %939 = vmatprep.subr.mxu0 0.0
    %940 = vmatpush1.msra.mxu0 0.0
    %941 = vmatprep.subr.mxu0 0.0
    %942 = vmatpush1.msra.mxu0 0.0
    %943 = vmatprep.subr.mxu0 0.0
    %944 = vmatpush1.msra.mxu0 0.0
    %945 = vmatprep.subr.mxu0 0.0
    %946 = vmatpush1.msra.mxu0 0.0
    %947 = vmatprep.subr.mxu0 0.0
    %948 = vmatpush1.msra.mxu0 0.0
    %949 = vmatprep.subr.mxu0 0.0
    %950 = vmatpush1.msra.mxu0 0.0
    %951 = vmatprep.subr.mxu0 0.0
    %952 = vmatpush1.msra.mxu0 0.0
    %953 = vmatprep.subr.mxu0 0.0
    %954 = vmatpush1.msra.mxu0 0.0
    %955 = vmatprep.subr.mxu0 0.0
    %956 = vmatpush1.msra.mxu0 0.0
    %957 = vmatprep.subr.mxu0 0.0
    %958 = vmatpush1.msra.mxu0 0.0
    %959 = vmatprep.subr.mxu0 0.0
    %960 = vmatpush1.msra.mxu0 0.0
    %961 = vmatprep.mubr.f32.mxu0 0.0
    %962 = vmatmul.mubr.f32.gmra.mrb[0].mxu0 %v892
    %v963 = vpop.f32.mrb[0].mxu0
    %v964 = vadd.f32 0.0, %v963
    %v965 = vpop.f32.mrb[0].mxu0
    %966 = vmatprep.mubr.f32.mxu0 0.0
    %967 = vmatmul.mubr.f32.gmra.mrb[0].mxu0 %v895
    %v968 = vpop.f32.mrb[0].mxu0
    %v969 = vadd.f32 0.0, %v968
    %v970 = vpop.f32.mrb[0].mxu0
    %971 = vdwg.mxu0
    %972 = vmatprep.subr.mxu0 0.0
    %973 = vmatpush1.msra.mxu0 %v261
    %974 = vmatprep.subr.mxu0 0.0
    %975 = vmatpush1.msra.mxu0 %v262
    %976 = vmatprep.subr.mxu0 0.0
    %977 = vmatpush1.msra.mxu0 %v263
    %978 = vmatprep.subr.mxu0 0.0
    %979 = vmatpush1.msra.mxu0 %v264
    %980 = vmatprep.subr.mxu0 0.0
    %981 = vmatpush1.msra.mxu0 %v265
    %982 = vmatprep.subr.mxu0 0.0
    %983 = vmatpush1.msra.mxu0 %v266
    %984 = vmatprep.subr.mxu0 0.0
    %985 = vmatpush1.msra.mxu0 %v267
    %986 = vmatprep.subr.mxu0 0.0
    %987 = vmatpush1.msra.mxu0 %v268
    %988 = vmatprep.subr.mxu0 0.0
    %989 = vmatpush1.msra.mxu0 %v269
    %990 = vmatprep.subr.mxu0 0.0
    %991 = vmatpush1.msra.mxu0 %v270
    %992 = vmatprep.subr.mxu0 0.0
    %993 = vmatpush1.msra.mxu0 %v271
    %994 = vmatprep.subr.mxu0 0.0
    %995 = vmatpush1.msra.mxu0 %v272
    %996 = vmatprep.subr.mxu0 0.0
    %997 = vmatpush1.msra.mxu0 %v273
    %998 = vmatprep.subr.mxu0 0.0
    %999 = vmatpush1.msra.mxu0 %v274
    %1000 = vmatprep.subr.mxu0 0.0
    %1001 = vmatpush1.msra.mxu0 %v275
    %1002 = vmatprep.subr.mxu0 0.0
    %1003 = vmatpush1.msra.mxu0 %v276
    %1004 = vmatprep.subr.mxu0 0.0
    %1005 = vmatpush1.msra.mxu0 0.0
    %1006 = vmatprep.subr.mxu0 0.0
    %1007 = vmatpush1.msra.mxu0 0.0
    %1008 = vmatprep.subr.mxu0 0.0
    %1009 = vmatpush1.msra.mxu0 0.0
    %1010 = vmatprep.subr.mxu0 0.0
    %1011 = vmatpush1.msra.mxu0 0.0
    %1012 = vmatprep.subr.mxu0 0.0
    %1013 = vmatpush1.msra.mxu0 0.0
    %1014 = vmatprep.subr.mxu0 0.0
    %1015 = vmatpush1.msra.mxu0 0.0
    %1016 = vmatprep.subr.mxu0 0.0
    %1017 = vmatpush1.msra.mxu0 0.0
    %1018 = vmatprep.subr.mxu0 0.0
    %1019 = vmatpush1.msra.mxu0 0.0
    %1020 = vmatprep.subr.mxu0 0.0
    %1021 = vmatpush1.msra.mxu0 0.0
    %1022 = vmatprep.subr.mxu0 0.0
    %1023 = vmatpush1.msra.mxu0 0.0
    %1024 = vmatprep.subr.mxu0 0.0
    %1025 = vmatpush1.msra.mxu0 0.0
    %1026 = vmatprep.subr.mxu0 0.0
    %1027 = vmatpush1.msra.mxu0 0.0
    %1028 = vmatprep.subr.mxu0 0.0
    %1029 = vmatpush1.msra.mxu0 0.0
    %1030 = vmatprep.subr.mxu0 0.0
    %1031 = vmatpush1.msra.mxu0 0.0
    %1032 = vmatprep.subr.mxu0 0.0
    %1033 = vmatpush1.msra.mxu0 0.0
    %1034 = vmatprep.subr.mxu0 0.0
    %1035 = vmatpush1.msra.mxu0 0.0
    %1036 = vmatprep.mubr.f32.mxu0 0.0
    %1037 = vmatmul.mubr.f32.gmra.mrb[0].mxu0 %v177
    %v1038 = vpop.f32.mrb[0].mxu0
    %v1039 = vadd.f32 0.0, %v1038
    %v1040 = vpop.f32.mrb[0].mxu0
    %1041 = vmatprep.mubr.f32.mxu0 0.0
    %1042 = vmatmul.mubr.f32.gmra.mrb[0].mxu0 %v178
    %v1043 = vpop.f32.mrb[0].mxu0
    %v1044 = vadd.f32 0.0, %v1043
    %v1045 = vpop.f32.mrb[0].mxu0
    %1046 = vdwg.mxu0
    %1047 = vmatprep.subr.mxu0 0.0
    %1048 = vmatpush1.msra.mxu0 %v245
    %1049 = vmatprep.subr.mxu0 0.0
    %1050 = vmatpush1.msra.mxu0 %v246
    %1051 = vmatprep.subr.mxu0 0.0
    %1052 = vmatpush1.msra.mxu0 %v247
    %1053 = vmatprep.subr.mxu0 0.0
    %1054 = vmatpush1.msra.mxu0 %v248
    %1055 = vmatprep.subr.mxu0 0.0
    %1056 = vmatpush1.msra.mxu0 %v249
    %1057 = vmatprep.subr.mxu0 0.0
    %1058 = vmatpush1.msra.mxu0 %v250
    %1059 = vmatprep.subr.mxu0 0.0
    %1060 = vmatpush1.msra.mxu0 %v251
    %1061 = vmatprep.subr.mxu0 0.0
    %1062 = vmatpush1.msra.mxu0 %v252
    %1063 = vmatprep.subr.mxu0 0.0
    %1064 = vmatpush1.msra.mxu0 %v253
    %1065 = vmatprep.subr.mxu0 0.0
    %1066 = vmatpush1.msra.mxu0 %v254
    %1067 = vmatprep.subr.mxu0 0.0
    %1068 = vmatpush1.msra.mxu0 %v255
    %1069 = vmatprep.subr.mxu0 0.0
    %1070 = vmatpush1.msra.mxu0 %v256
    %1071 = vmatprep.subr.mxu0 0.0
    %1072 = vmatpush1.msra.mxu0 %v257
    %1073 = vmatprep.subr.mxu0 0.0
    %1074 = vmatpush1.msra.mxu0 %v258
    %1075 = vmatprep.subr.mxu0 0.0
    %1076 = vmatpush1.msra.mxu0 %v259
    %1077 = vmatprep.subr.mxu0 0.0
    %1078 = vmatpush1.msra.mxu0 %v260
    %1079 = vmatprep.subr.mxu0 0.0
    %1080 = vmatpush1.msra.mxu0 0.0
    %1081 = vmatprep.subr.mxu0 0.0
    %1082 = vmatpush1.msra.mxu0 0.0
    %1083 = vmatprep.subr.mxu0 0.0
    %1084 = vmatpush1.msra.mxu0 0.0
    %1085 = vmatprep.subr.mxu0 0.0
    %1086 = vmatpush1.msra.mxu0 0.0
    %1087 = vmatprep.subr.mxu0 0.0
    %1088 = vmatpush1.msra.mxu0 0.0
    %1089 = vmatprep.subr.mxu0 0.0
    %1090 = vmatpush1.msra.mxu0 0.0
    %1091 = vmatprep.subr.mxu0 0.0
    %1092 = vmatpush1.msra.mxu0 0.0
    %1093 = vmatprep.subr.mxu0 0.0
    %1094 = vmatpush1.msra.mxu0 0.0
    %1095 = vmatprep.subr.mxu0 0.0
    %1096 = vmatpush1.msra.mxu0 0.0
    %1097 = vmatprep.subr.mxu0 0.0
    %1098 = vmatpush1.msra.mxu0 0.0
    %1099 = vmatprep.subr.mxu0 0.0
    %1100 = vmatpush1.msra.mxu0 0.0
    %1101 = vmatprep.subr.mxu0 0.0
    %1102 = vmatpush1.msra.mxu0 0.0
    %1103 = vmatprep.subr.mxu0 0.0
    %1104 = vmatpush1.msra.mxu0 0.0
    %1105 = vmatprep.subr.mxu0 0.0
    %1106 = vmatpush1.msra.mxu0 0.0
    %1107 = vmatprep.subr.mxu0 0.0
    %1108 = vmatpush1.msra.mxu0 0.0
    %1109 = vmatprep.subr.mxu0 0.0
    %1110 = vmatpush1.msra.mxu0 0.0
    %1111 = vmatprep.mubr.f32.mxu0 0.0
    %1112 = vmatmul.mubr.f32.gmra.mrb[0].mxu0 %v964
    %v1113 = vpop.f32.mrb[0].mxu0
    %v1114 = vadd.f32 %v1039, %v1113
    %v1115 = vpop.f32.mrb[0].mxu0
    %1116 = vmatprep.mubr.f32.mxu0 0.0
    %1117 = vmatmul.mubr.f32.gmra.mrb[0].mxu0 %v969
    %v1118 = vpop.f32.mrb[0].mxu0
    %v1119 = vadd.f32 %v1044, %v1118
    %v1120 = vpop.f32.mrb[0].mxu0
    %1121 = vdwg.mxu0
    %v1123 = vlaneseq
    %v1124 = vshrl.u32 %v1123, 7
    %v1125 = vsub.s32 0, %v1124
    %v1126 = vrot.slane %v279, %v1125
    %v1128 = vadd.f32 %v1114, %v1126
    %v1129 = vadd.f32 %v1119, %v1126
    %v1130 = vmax.f32 %v883, 0.0
    %v1131 = vmax.f32 %v884, 0.0
    %v1132 = vmax.f32 %v885, 0.0
    %v1133 = vmax.f32 %v886, 0.0
    %v1134 = vmax.f32 %v887, 0.0
    %v1135 = vmax.f32 %v888, 0.0
    %v1136 = vmax.f32 %v889, 0.0
    %v1137 = vmax.f32 %v890, 0.0
    %v1138 = vmax.f32 %v1128, 0.0
    %v1139 = vmax.f32 %v1129, 0.0
    %s1140 = scalar_lea.vmem [#allocation5], 128
    %v1141 = vld [vmem:[%s1140] sm:$0xff]
    %v1142 = vld [vmem:[%s1140 + $0x8] sm:$0xff]
    %v1143 = vld [vmem:[%s1140 + $0x10] sm:$0xff]
    %v1144 = vld [vmem:[%s1140 + $0x18] sm:$0xff]
    %v1145 = vld [vmem:[%s1140 + $0x20] sm:$0xff]
    %v1146 = vld [vmem:[%s1140 + $0x28] sm:$0xff]
    %v1147 = vld [vmem:[%s1140 + $0x30] sm:$0xff]
    %v1148 = vld [vmem:[%s1140 + $0x38] sm:$0xff]
    %v1149 = vld [vmem:[%s1140 + $0x40] sm:$0xff]
    %v1150 = vld [vmem:[%s1140 + $0x48] sm:$0xff]
    %v1151 = vld [vmem:[%s1140 + $0x50] sm:$0xff]
    %v1152 = vld [vmem:[%s1140 + $0x58] sm:$0xff]
    %v1153 = vld [vmem:[%s1140 + $0x60] sm:$0xff]
    %v1154 = vld [vmem:[%s1140 + $0x68] sm:$0xff]
    %v1155 = vld [vmem:[%s1140 + $0x70] sm:$0xff]
    %v1156 = vld [vmem:[%s1140 + $0x78] sm:$0xff]
    %s1157 = scalar_lea.vmem [#allocation7], 128
    %v1158 = vld [vmem:[%s1157] sm:$0xff]
    %v1159 = vld [vmem:[%s1157 + $0x8] sm:$0xff]
    %v1160 = vld [vmem:[%s1157 + $0x10] sm:$0xff]
    %v1161 = vld [vmem:[%s1157 + $0x18] sm:$0xff]
    %v1162 = vld [vmem:[%s1157 + $0x20] sm:$0xff]
    %v1163 = vld [vmem:[%s1157 + $0x28] sm:$0xff]
    %v1164 = vld [vmem:[%s1157 + $0x30] sm:$0xff]
    %v1165 = vld [vmem:[%s1157 + $0x38] sm:$0xff]
    %v1166 = vld [vmem:[%s1157 + $0x40] sm:$0xff]
    %v1167 = vld [vmem:[%s1157 + $0x48] sm:$0xff]
    %v1168 = vld [vmem:[%s1157 + $0x50] sm:$0xff]
    %v1169 = vld [vmem:[%s1157 + $0x58] sm:$0xff]
    %v1170 = vld [vmem:[%s1157 + $0x60] sm:$0xff]
    %v1171 = vld [vmem:[%s1157 + $0x68] sm:$0xff]
    %v1172 = vld [vmem:[%s1157 + $0x70] sm:$0xff]
    %v1173 = vld [vmem:[%s1157 + $0x78] sm:$0xff]
    %s1174 = scalar_lea.vmem [#allocation8], 128
    %v1175 = vld [vmem:[%s1174] sm:$0xff]
    %v1176 = vld [vmem:[%s1174 + $0x8] sm:$0xff]
    %v1177 = vld [vmem:[%s1174 + $0x10] sm:$0xff]
    %v1178 = vld [vmem:[%s1174 + $0x18] sm:$0xff]
    %v1179 = vld [vmem:[%s1174 + $0x20] sm:$0xff]
    %v1180 = vld [vmem:[%s1174 + $0x28] sm:$0xff]
    %v1181 = vld [vmem:[%s1174 + $0x30] sm:$0xff]
    %v1182 = vld [vmem:[%s1174 + $0x38] sm:$0xff]
    %v1183 = vld [vmem:[%s1174 + $0x40] sm:$0xff]
    %v1184 = vld [vmem:[%s1174 + $0x48] sm:$0xff]
    %v1185 = vld [vmem:[%s1174 + $0x50] sm:$0xff]
    %v1186 = vld [vmem:[%s1174 + $0x58] sm:$0xff]
    %v1187 = vld [vmem:[%s1174 + $0x60] sm:$0xff]
    %v1188 = vld [vmem:[%s1174 + $0x68] sm:$0xff]
    %v1189 = vld [vmem:[%s1174 + $0x70] sm:$0xff]
    %v1190 = vld [vmem:[%s1174 + $0x78] sm:$0xff]
    %s1191 = scalar_lea.vmem [#allocation10], 128
    %v1192 = vld [vmem:[%s1191] sm:$0xff]
    %v1193 = vld [vmem:[%s1191 + $0x8] sm:$0xff]
    %v1194 = vld [vmem:[%s1191 + $0x10] sm:$0xff]
    %v1195 = vld [vmem:[%s1191 + $0x18] sm:$0xff]
    %v1196 = vld [vmem:[%s1191 + $0x20] sm:$0xff]
    %v1197 = vld [vmem:[%s1191 + $0x28] sm:$0xff]
    %v1198 = vld [vmem:[%s1191 + $0x30] sm:$0xff]
    %v1199 = vld [vmem:[%s1191 + $0x38] sm:$0xff]
    %v1200 = vld [vmem:[%s1191 + $0x40] sm:$0xff]
    %v1201 = vld [vmem:[%s1191 + $0x48] sm:$0xff]
    %v1202 = vld [vmem:[%s1191 + $0x50] sm:$0xff]
    %v1203 = vld [vmem:[%s1191 + $0x58] sm:$0xff]
    %v1204 = vld [vmem:[%s1191 + $0x60] sm:$0xff]
    %v1205 = vld [vmem:[%s1191 + $0x68] sm:$0xff]
    %v1206 = vld [vmem:[%s1191 + $0x70] sm:$0xff]
    %v1207 = vld [vmem:[%s1191 + $0x78] sm:$0xff]
    %s1208 = scalar_lea.vmem [#allocation11], 128
    %v1209 = vld [vmem:[%s1208] sm:$0xff]
    %v1210 = vld [vmem:[%s1208 + $0x8] sm:$0xff]
    %v1211 = vld [vmem:[%s1208 + $0x10] sm:$0xff]
    %v1212 = vld [vmem:[%s1208 + $0x18] sm:$0xff]
    %v1213 = vld [vmem:[%s1208 + $0x20] sm:$0xff]
    %v1214 = vld [vmem:[%s1208 + $0x28] sm:$0xff]
    %v1215 = vld [vmem:[%s1208 + $0x30] sm:$0xff]
    %v1216 = vld [vmem:[%s1208 + $0x38] sm:$0xff]
    %v1217 = vld [vmem:[%s1208 + $0x40] sm:$0xff]
    %v1218 = vld [vmem:[%s1208 + $0x48] sm:$0xff]
    %v1219 = vld [vmem:[%s1208 + $0x50] sm:$0xff]
    %v1220 = vld [vmem:[%s1208 + $0x58] sm:$0xff]
    %v1221 = vld [vmem:[%s1208 + $0x60] sm:$0xff]
    %v1222 = vld [vmem:[%s1208 + $0x68] sm:$0xff]
    %v1223 = vld [vmem:[%s1208 + $0x70] sm:$0xff]
    %v1224 = vld [vmem:[%s1208 + $0x78] sm:$0xff]
    %s1225 = scalar_lea.vmem [#allocation13], 1
    %v1226 = vld [vmem:[%s1225] sm:$0x1]
    %s1227 = scalar_lea.vmem [#allocation14], 1
    %v1228 = vld [vmem:[%s1227] sm:$0x1]
    %s1229 = scalar_lea.vmem [#allocation16], 1
    %v1230 = vld [vmem:[%s1229] sm:$0x1]
    %1231 = vmatprep.subr.mxu0 0.0
    %1232 = vmatpush1.msra.mxu0 %v1141
    %1233 = vmatprep.subr.mxu0 0.0
    %1234 = vmatpush1.msra.mxu0 %v1142
    %1235 = vmatprep.subr.mxu0 0.0
    %1236 = vmatpush1.msra.mxu0 %v1143
    %1237 = vmatprep.subr.mxu0 0.0
    %1238 = vmatpush1.msra.mxu0 %v1144
    %1239 = vmatprep.subr.mxu0 0.0
    %1240 = vmatpush1.msra.mxu0 %v1145
    %1241 = vmatprep.subr.mxu0 0.0
    %1242 = vmatpush1.msra.mxu0 %v1146
    %1243 = vmatprep.subr.mxu0 0.0
    %1244 = vmatpush1.msra.mxu0 %v1147
    %1245 = vmatprep.subr.mxu0 0.0
    %1246 = vmatpush1.msra.mxu0 %v1148
    %1247 = vmatprep.subr.mxu0 0.0
    %1248 = vmatpush1.msra.mxu0 %v1149
    %1249 = vmatprep.subr.mxu0 0.0
    %1250 = vmatpush1.msra.mxu0 %v1150
    %1251 = vmatprep.subr.mxu0 0.0
    %1252 = vmatpush1.msra.mxu0 %v1151
    %1253 = vmatprep.subr.mxu0 0.0
    %1254 = vmatpush1.msra.mxu0 %v1152
    %1255 = vmatprep.subr.mxu0 0.0
    %1256 = vmatpush1.msra.mxu0 %v1153
    %1257 = vmatprep.subr.mxu0 0.0
    %1258 = vmatpush1.msra.mxu0 %v1154
    %1259 = vmatprep.subr.mxu0 0.0
    %1260 = vmatpush1.msra.mxu0 %v1155
    %1261 = vmatprep.subr.mxu0 0.0
    %1262 = vmatpush1.msra.mxu0 %v1156
    %1263 = vmatprep.subr.mxu0 0.0
    %1264 = vmatpush1.msra.mxu0 0.0
    %1265 = vmatprep.subr.mxu0 0.0
    %1266 = vmatpush1.msra.mxu0 0.0
    %1267 = vmatprep.subr.mxu0 0.0
    %1268 = vmatpush1.msra.mxu0 0.0
    %1269 = vmatprep.subr.mxu0 0.0
    %1270 = vmatpush1.msra.mxu0 0.0
    %1271 = vmatprep.subr.mxu0 0.0
    %1272 = vmatpush1.msra.mxu0 0.0
    %1273 = vmatprep.subr.mxu0 0.0
    %1274 = vmatpush1.msra.mxu0 0.0
    %1275 = vmatprep.subr.mxu0 0.0
    %1276 = vmatpush1.msra.mxu0 0.0
    %1277 = vmatprep.subr.mxu0 0.0
    %1278 = vmatpush1.msra.mxu0 0.0
    %1279 = vmatprep.subr.mxu0 0.0
    %1280 = vmatpush1.msra.mxu0 0.0
    %1281 = vmatprep.subr.mxu0 0.0
    %1282 = vmatpush1.msra.mxu0 0.0
    %1283 = vmatprep.subr.mxu0 0.0
    %1284 = vmatpush1.msra.mxu0 0.0
    %1285 = vmatprep.subr.mxu0 0.0
    %1286 = vmatpush1.msra.mxu0 0.0
    %1287 = vmatprep.subr.mxu0 0.0
    %1288 = vmatpush1.msra.mxu0 0.0
    %1289 = vmatprep.subr.mxu0 0.0
    %1290 = vmatpush1.msra.mxu0 0.0
    %1291 = vmatprep.subr.mxu0 0.0
    %1292 = vmatpush1.msra.mxu0 0.0
    %1293 = vmatprep.subr.mxu0 0.0
    %1294 = vmatpush1.msra.mxu0 0.0
    %1295 = vmatprep.mubr.f32.mxu0 0.0
    %1296 = vmatmul.mubr.f32.gmra.mrb[0].mxu0 %v1130
    %v1297 = vpop.f32.mrb[0].mxu0
    %v1298 = vadd.f32 0.0, %v1297
    %v1299 = vpop.f32.mrb[0].mxu0
    %1300 = vmatprep.mubr.f32.mxu0 0.0
    %1301 = vmatmul.mubr.f32.gmra.mrb[0].mxu0 %v1131
    %v1302 = vpop.f32.mrb[0].mxu0
    %v1303 = vadd.f32 0.0, %v1302
    %v1304 = vpop.f32.mrb[0].mxu0
    %1305 = vmatprep.mubr.f32.mxu0 0.0
    %1306 = vmatmul.mubr.f32.gmra.mrb[0].mxu0 %v1132
    %v1307 = vpop.f32.mrb[0].mxu0
    %v1308 = vadd.f32 0.0, %v1307
    %v1309 = vpop.f32.mrb[0].mxu0
    %1310 = vmatprep.mubr.f32.mxu0 0.0
    %1311 = vmatmul.mubr.f32.gmra.mrb[0].mxu0 %v1133
    %v1312 = vpop.f32.mrb[0].mxu0
    %v1313 = vadd.f32 0.0, %v1312
    %v1314 = vpop.f32.mrb[0].mxu0
    %1315 = vmatprep.mubr.f32.mxu0 0.0
    %1316 = vmatmul.mubr.f32.gmra.mrb[0].mxu0 %v1134
    %v1317 = vpop.f32.mrb[0].mxu0
    %v1318 = vadd.f32 0.0, %v1317
    %v1319 = vpop.f32.mrb[0].mxu0
    %1320 = vmatprep.mubr.f32.mxu0 0.0
    %1321 = vmatmul.mubr.f32.gmra.mrb[0].mxu0 %v1135
    %v1322 = vpop.f32.mrb[0].mxu0
    %v1323 = vadd.f32 0.0, %v1322
    %v1324 = vpop.f32.mrb[0].mxu0
    %1325 = vmatprep.mubr.f32.mxu0 0.0
    %1326 = vmatmul.mubr.f32.gmra.mrb[0].mxu0 %v1136
    %v1327 = vpop.f32.mrb[0].mxu0
    %v1328 = vadd.f32 0.0, %v1327
    %v1329 = vpop.f32.mrb[0].mxu0
    %1330 = vmatprep.mubr.f32.mxu0 0.0
    %1331 = vmatmul.mubr.f32.gmra.mrb[0].mxu0 %v1137
    %v1332 = vpop.f32.mrb[0].mxu0
    %v1333 = vadd.f32 0.0, %v1332
    %v1334 = vpop.f32.mrb[0].mxu0
    %1335 = vdwg.mxu0
    %v1337 = vlaneseq
    %v1338 = vshrl.u32 %v1337, 7
    %v1339 = vsub.s32 0, %v1338
    %v1340 = vrot.slane %v1226, %v1339
    %1342 = vmatprep.subr.mxu0 0.0
    %1343 = vmatpush1.msra.mxu0 %v1298
    %1344 = vmatprep.subr.mxu0 0.0
    %1345 = vmatpush1.msra.mxu0 %v1303
    %1346 = vmatprep.subr.mxu0 0.0
    %1347 = vmatpush1.msra.mxu0 %v1308
    %1348 = vmatprep.subr.mxu0 0.0
    %1349 = vmatpush1.msra.mxu0 %v1313
    %1350 = vmatprep.subr.mxu0 0.0
    %1351 = vmatpush1.msra.mxu0 %v1318
    %1352 = vmatprep.subr.mxu0 0.0
    %1353 = vmatpush1.msra.mxu0 %v1323
    %1354 = vmatprep.subr.mxu0 0.0
    %1355 = vmatpush1.msra.mxu0 %v1328
    %1356 = vmatprep.subr.mxu0 0.0
    %1357 = vmatpush1.msra.mxu0 %v1333
    %1358 = vmatprep.subr.mxu0 0.0
    %1359 = vmatpush1.msra.mxu0 0.0
    %1360 = vmatprep.subr.mxu0 0.0
    %1361 = vmatpush1.msra.mxu0 0.0
    %1362 = vmatprep.subr.mxu0 0.0
    %1363 = vmatpush1.msra.mxu0 0.0
    %1364 = vmatprep.subr.mxu0 0.0
    %1365 = vmatpush1.msra.mxu0 0.0
    %1366 = vmatprep.subr.mxu0 0.0
    %1367 = vmatpush1.msra.mxu0 0.0
    %1368 = vmatprep.subr.mxu0 0.0
    %1369 = vmatpush1.msra.mxu0 0.0
    %1370 = vmatprep.subr.mxu0 0.0
    %1371 = vmatpush1.msra.mxu0 0.0
    %1372 = vmatprep.subr.mxu0 0.0
    %1373 = vmatpush1.msra.mxu0 0.0
    %1374 = vmatprep.subr.mxu0 0.0
    %1375 = vmatpush1.msra.mxu0 0.0
    %1376 = vmatprep.subr.mxu0 0.0
    %1377 = vmatpush1.msra.mxu0 0.0
    %1378 = vmatprep.subr.mxu0 0.0
    %1379 = vmatpush1.msra.mxu0 0.0
    %1380 = vmatprep.subr.mxu0 0.0
    %1381 = vmatpush1.msra.mxu0 0.0
    %1382 = vmatprep.subr.mxu0 0.0
    %1383 = vmatpush1.msra.mxu0 0.0
    %1384 = vmatprep.subr.mxu0 0.0
    %1385 = vmatpush1.msra.mxu0 0.0
    %1386 = vmatprep.subr.mxu0 0.0
    %1387 = vmatpush1.msra.mxu0 0.0
    %1388 = vmatprep.subr.mxu0 0.0
    %1389 = vmatpush1.msra.mxu0 0.0
    %1390 = vmatprep.subr.mxu0 0.0
    %1391 = vmatpush1.msra.mxu0 0.0
    %1392 = vmatprep.subr.mxu0 0.0
    %1393 = vmatpush1.msra.mxu0 0.0
    %1394 = vmatprep.subr.mxu0 0.0
    %1395 = vmatpush1.msra.mxu0 0.0
    %1396 = vmatprep.subr.mxu0 0.0
    %1397 = vmatpush1.msra.mxu0 0.0
    %1398 = vmatprep.subr.mxu0 0.0
    %1399 = vmatpush1.msra.mxu0 0.0
    %1400 = vmatprep.subr.mxu0 0.0
    %1401 = vmatpush1.msra.mxu0 0.0
    %1402 = vmatprep.subr.mxu0 0.0
    %1403 = vmatpush1.msra.mxu0 0.0
    %1404 = vmatprep.subr.mxu0 0.0
    %1405 = vmatpush1.msra.mxu0 0.0
    %1406 = vmatprep.mubr.f32.mxu0 0.0
    %1407 = vmatmul.mubr.f32.gmra.mrb[0].mxu0 %v393
    %v1408 = vpop.f32.mrb[0].mxu0
    %v1409 = vadd.f32 %v1340, %v1408
    %v1410 = vpop.f32.mrb[0].mxu0
    %1411 = vmatprep.mubr.f32.mxu0 0.0
    %1412 = vmatmul.mubr.f32.gmra.mrb[0].mxu0 %v396
    %v1413 = vpop.f32.mrb[0].mxu0
    %v1414 = vadd.f32 %v1340, %v1413
    %v1415 = vpop.f32.mrb[0].mxu0
    %1416 = vmatprep.mubr.f32.mxu0 0.0
    %1417 = vmatmul.mubr.f32.gmra.mrb[0].mxu0 %v399
    %v1418 = vpop.f32.mrb[0].mxu0
    %v1419 = vadd.f32 %v1340, %v1418
    %v1420 = vpop.f32.mrb[0].mxu0
    %1421 = vmatprep.mubr.f32.mxu0 0.0
    %1422 = vmatmul.mubr.f32.gmra.mrb[0].mxu0 %v402
    %v1423 = vpop.f32.mrb[0].mxu0
    %v1424 = vadd.f32 %v1340, %v1423
    %v1425 = vpop.f32.mrb[0].mxu0
    %1426 = vmatprep.mubr.f32.mxu0 0.0
    %1427 = vmatmul.mubr.f32.gmra.mrb[0].mxu0 %v405
    %v1428 = vpop.f32.mrb[0].mxu0
    %v1429 = vadd.f32 %v1340, %v1428
    %v1430 = vpop.f32.mrb[0].mxu0
    %1431 = vmatprep.mubr.f32.mxu0 0.0
    %1432 = vmatmul.mubr.f32.gmra.mrb[0].mxu0 %v408
    %v1433 = vpop.f32.mrb[0].mxu0
    %v1434 = vadd.f32 %v1340, %v1433
    %v1435 = vpop.f32.mrb[0].mxu0
    %1436 = vmatprep.mubr.f32.mxu0 0.0
    %1437 = vmatmul.mubr.f32.gmra.mrb[0].mxu0 %v411
    %v1438 = vpop.f32.mrb[0].mxu0
    %v1439 = vadd.f32 %v1340, %v1438
    %v1440 = vpop.f32.mrb[0].mxu0
    %1441 = vmatprep.mubr.f32.mxu0 0.0
    %1442 = vmatmul.mubr.f32.gmra.mrb[0].mxu0 %v414
    %v1443 = vpop.f32.mrb[0].mxu0
    %v1444 = vadd.f32 %v1340, %v1443
    %v1445 = vpop.f32.mrb[0].mxu0
    %1446 = vdwg.mxu0
    %1447 = vmatprep.subr.mxu0 0.0
    %1448 = vmatpush1.msra.mxu0 %v1138
    %1449 = vmatprep.subr.mxu0 0.0
    %1450 = vmatpush1.msra.mxu0 %v1139
    %1451 = vmatprep.subr.mxu0 0.0
    %1452 = vmatpush1.msra.mxu0 0.0
    %1453 = vmatprep.subr.mxu0 0.0
    %1454 = vmatpush1.msra.mxu0 0.0
    %1455 = vmatprep.subr.mxu0 0.0
    %1456 = vmatpush1.msra.mxu0 0.0
    %1457 = vmatprep.subr.mxu0 0.0
    %1458 = vmatpush1.msra.mxu0 0.0
    %1459 = vmatprep.subr.mxu0 0.0
    %1460 = vmatpush1.msra.mxu0 0.0
    %1461 = vmatprep.subr.mxu0 0.0
    %1462 = vmatpush1.msra.mxu0 0.0
    %1463 = vmatprep.subr.mxu0 0.0
    %1464 = vmatpush1.msra.mxu0 0.0
    %1465 = vmatprep.subr.mxu0 0.0
    %1466 = vmatpush1.msra.mxu0 0.0
    %1467 = vmatprep.subr.mxu0 0.0
    %1468 = vmatpush1.msra.mxu0 0.0
    %1469 = vmatprep.subr.mxu0 0.0
    %1470 = vmatpush1.msra.mxu0 0.0
    %1471 = vmatprep.subr.mxu0 0.0
    %1472 = vmatpush1.msra.mxu0 0.0
    %1473 = vmatprep.subr.mxu0 0.0
    %1474 = vmatpush1.msra.mxu0 0.0
    %1475 = vmatprep.subr.mxu0 0.0
    %1476 = vmatpush1.msra.mxu0 0.0
    %1477 = vmatprep.subr.mxu0 0.0
    %1478 = vmatpush1.msra.mxu0 0.0
    %1479 = vmatprep.subr.mxu0 0.0
    %1480 = vmatpush1.msra.mxu0 0.0
    %1481 = vmatprep.subr.mxu0 0.0
    %1482 = vmatpush1.msra.mxu0 0.0
    %1483 = vmatprep.subr.mxu0 0.0
    %1484 = vmatpush1.msra.mxu0 0.0
    %1485 = vmatprep.subr.mxu0 0.0
    %1486 = vmatpush1.msra.mxu0 0.0
    %1487 = vmatprep.subr.mxu0 0.0
    %1488 = vmatpush1.msra.mxu0 0.0
    %1489 = vmatprep.subr.mxu0 0.0
    %1490 = vmatpush1.msra.mxu0 0.0
    %1491 = vmatprep.subr.mxu0 0.0
    %1492 = vmatpush1.msra.mxu0 0.0
    %1493 = vmatprep.subr.mxu0 0.0
    %1494 = vmatpush1.msra.mxu0 0.0
    %1495 = vmatprep.subr.mxu0 0.0
    %1496 = vmatpush1.msra.mxu0 0.0
    %1497 = vmatprep.subr.mxu0 0.0
    %1498 = vmatpush1.msra.mxu0 0.0
    %1499 = vmatprep.subr.mxu0 0.0
    %1500 = vmatpush1.msra.mxu0 0.0
    %1501 = vmatprep.subr.mxu0 0.0
    %1502 = vmatpush1.msra.mxu0 0.0
    %1503 = vmatprep.subr.mxu0 0.0
    %1504 = vmatpush1.msra.mxu0 0.0
    %1505 = vmatprep.subr.mxu0 0.0
    %1506 = vmatpush1.msra.mxu0 0.0
    %1507 = vmatprep.subr.mxu0 0.0
    %1508 = vmatpush1.msra.mxu0 0.0
    %1509 = vmatprep.subr.mxu0 0.0
    %1510 = vmatpush1.msra.mxu0 0.0
    %1511 = vmatprep.mubr.f32.mxu0 0.0
    %1512 = vmatmul.mubr.f32.gmra.mrb[0].mxu0 %v523
    %v1513 = vpop.f32.mrb[0].mxu0
    %v1514 = vadd.f32 0.0, %v1513
    %v1515 = vpop.f32.mrb[0].mxu0
    %1516 = vmatprep.mubr.f32.mxu0 0.0
    %1517 = vmatmul.mubr.f32.gmra.mrb[0].mxu0 %v526
    %v1518 = vpop.f32.mrb[0].mxu0
    %v1519 = vadd.f32 0.0, %v1518
    %v1520 = vpop.f32.mrb[0].mxu0
    %1521 = vmatprep.mubr.f32.mxu0 0.0
    %1522 = vmatmul.mubr.f32.gmra.mrb[0].mxu0 %v529
    %v1523 = vpop.f32.mrb[0].mxu0
    %v1524 = vadd.f32 0.0, %v1523
    %v1525 = vpop.f32.mrb[0].mxu0
    %1526 = vmatprep.mubr.f32.mxu0 0.0
    %1527 = vmatmul.mubr.f32.gmra.mrb[0].mxu0 %v532
    %v1528 = vpop.f32.mrb[0].mxu0
    %v1529 = vadd.f32 0.0, %v1528
    %v1530 = vpop.f32.mrb[0].mxu0
    %1531 = vmatprep.mubr.f32.mxu0 0.0
    %1532 = vmatmul.mubr.f32.gmra.mrb[0].mxu0 %v535
    %v1533 = vpop.f32.mrb[0].mxu0
    %v1534 = vadd.f32 0.0, %v1533
    %v1535 = vpop.f32.mrb[0].mxu0
    %1536 = vmatprep.mubr.f32.mxu0 0.0
    %1537 = vmatmul.mubr.f32.gmra.mrb[0].mxu0 %v538
    %v1538 = vpop.f32.mrb[0].mxu0
    %v1539 = vadd.f32 0.0, %v1538
    %v1540 = vpop.f32.mrb[0].mxu0
    %1541 = vmatprep.mubr.f32.mxu0 0.0
    %1542 = vmatmul.mubr.f32.gmra.mrb[0].mxu0 %v541
    %v1543 = vpop.f32.mrb[0].mxu0
    %v1544 = vadd.f32 0.0, %v1543
    %v1545 = vpop.f32.mrb[0].mxu0
    %1546 = vmatprep.mubr.f32.mxu0 0.0
    %1547 = vmatmul.mubr.f32.gmra.mrb[0].mxu0 %v544
    %v1548 = vpop.f32.mrb[0].mxu0
    %v1549 = vadd.f32 0.0, %v1548
    %v1550 = vpop.f32.mrb[0].mxu0
    %1551 = vdwg.mxu0
    %1552 = vmatprep.subr.mxu0 0.0
    %1553 = vmatpush1.msra.mxu0 %v1175
    %1554 = vmatprep.subr.mxu0 0.0
    %1555 = vmatpush1.msra.mxu0 %v1176
    %1556 = vmatprep.subr.mxu0 0.0
    %1557 = vmatpush1.msra.mxu0 %v1177
    %1558 = vmatprep.subr.mxu0 0.0
    %1559 = vmatpush1.msra.mxu0 %v1178
    %1560 = vmatprep.subr.mxu0 0.0
    %1561 = vmatpush1.msra.mxu0 %v1179
    %1562 = vmatprep.subr.mxu0 0.0
    %1563 = vmatpush1.msra.mxu0 %v1180
    %1564 = vmatprep.subr.mxu0 0.0
    %1565 = vmatpush1.msra.mxu0 %v1181
    %1566 = vmatprep.subr.mxu0 0.0
    %1567 = vmatpush1.msra.mxu0 %v1182
    %1568 = vmatprep.subr.mxu0 0.0
    %1569 = vmatpush1.msra.mxu0 %v1183
    %1570 = vmatprep.subr.mxu0 0.0
    %1571 = vmatpush1.msra.mxu0 %v1184
    %1572 = vmatprep.subr.mxu0 0.0
    %1573 = vmatpush1.msra.mxu0 %v1185
    %1574 = vmatprep.subr.mxu0 0.0
    %1575 = vmatpush1.msra.mxu0 %v1186
    %1576 = vmatprep.subr.mxu0 0.0
    %1577 = vmatpush1.msra.mxu0 %v1187
    %1578 = vmatprep.subr.mxu0 0.0
    %1579 = vmatpush1.msra.mxu0 %v1188
    %1580 = vmatprep.subr.mxu0 0.0
    %1581 = vmatpush1.msra.mxu0 %v1189
    %1582 = vmatprep.subr.mxu0 0.0
    %1583 = vmatpush1.msra.mxu0 %v1190
    %1584 = vmatprep.subr.mxu0 0.0
    %1585 = vmatpush1.msra.mxu0 0.0
    %1586 = vmatprep.subr.mxu0 0.0
    %1587 = vmatpush1.msra.mxu0 0.0
    %1588 = vmatprep.subr.mxu0 0.0
    %1589 = vmatpush1.msra.mxu0 0.0
    %1590 = vmatprep.subr.mxu0 0.0
    %1591 = vmatpush1.msra.mxu0 0.0
    %1592 = vmatprep.subr.mxu0 0.0
    %1593 = vmatpush1.msra.mxu0 0.0
    %1594 = vmatprep.subr.mxu0 0.0
    %1595 = vmatpush1.msra.mxu0 0.0
    %1596 = vmatprep.subr.mxu0 0.0
    %1597 = vmatpush1.msra.mxu0 0.0
    %1598 = vmatprep.subr.mxu0 0.0
    %1599 = vmatpush1.msra.mxu0 0.0
    %1600 = vmatprep.subr.mxu0 0.0
    %1601 = vmatpush1.msra.mxu0 0.0
    %1602 = vmatprep.subr.mxu0 0.0
    %1603 = vmatpush1.msra.mxu0 0.0
    %1604 = vmatprep.subr.mxu0 0.0
    %1605 = vmatpush1.msra.mxu0 0.0
    %1606 = vmatprep.subr.mxu0 0.0
    %1607 = vmatpush1.msra.mxu0 0.0
    %1608 = vmatprep.subr.mxu0 0.0
    %1609 = vmatpush1.msra.mxu0 0.0
    %1610 = vmatprep.subr.mxu0 0.0
    %1611 = vmatpush1.msra.mxu0 0.0
    %1612 = vmatprep.subr.mxu0 0.0
    %1613 = vmatpush1.msra.mxu0 0.0
    %1614 = vmatprep.subr.mxu0 0.0
    %1615 = vmatpush1.msra.mxu0 0.0
    %1616 = vmatprep.mubr.f32.mxu0 0.0
    %1617 = vmatmul.mubr.f32.gmra.mrb[0].mxu0 %v1130
    %v1618 = vpop.f32.mrb[0].mxu0
    %v1619 = vadd.f32 0.0, %v1618
    %v1620 = vpop.f32.mrb[0].mxu0
    %1621 = vmatprep.mubr.f32.mxu0 0.0
    %1622 = vmatmul.mubr.f32.gmra.mrb[0].mxu0 %v1131
    %v1623 = vpop.f32.mrb[0].mxu0
    %v1624 = vadd.f32 0.0, %v1623
    %v1625 = vpop.f32.mrb[0].mxu0
    %1626 = vmatprep.mubr.f32.mxu0 0.0
    %1627 = vmatmul.mubr.f32.gmra.mrb[0].mxu0 %v1132
    %v1628 = vpop.f32.mrb[0].mxu0
    %v1629 = vadd.f32 0.0, %v1628
    %v1630 = vpop.f32.mrb[0].mxu0
    %1631 = vmatprep.mubr.f32.mxu0 0.0
    %1632 = vmatmul.mubr.f32.gmra.mrb[0].mxu0 %v1133
    %v1633 = vpop.f32.mrb[0].mxu0
    %v1634 = vadd.f32 0.0, %v1633
    %v1635 = vpop.f32.mrb[0].mxu0
    %1636 = vmatprep.mubr.f32.mxu0 0.0
    %1637 = vmatmul.mubr.f32.gmra.mrb[0].mxu0 %v1134
    %v1638 = vpop.f32.mrb[0].mxu0
    %v1639 = vadd.f32 0.0, %v1638
    %v1640 = vpop.f32.mrb[0].mxu0
    %1641 = vmatprep.mubr.f32.mxu0 0.0
    %1642 = vmatmul.mubr.f32.gmra.mrb[0].mxu0 %v1135
    %v1643 = vpop.f32.mrb[0].mxu0
    %v1644 = vadd.f32 0.0, %v1643
    %v1645 = vpop.f32.mrb[0].mxu0
    %1646 = vmatprep.mubr.f32.mxu0 0.0
    %1647 = vmatmul.mubr.f32.gmra.mrb[0].mxu0 %v1136
    %v1648 = vpop.f32.mrb[0].mxu0
    %v1649 = vadd.f32 0.0, %v1648
    %v1650 = vpop.f32.mrb[0].mxu0
    %1651 = vmatprep.mubr.f32.mxu0 0.0
    %1652 = vmatmul.mubr.f32.gmra.mrb[0].mxu0 %v1137
    %v1653 = vpop.f32.mrb[0].mxu0
    %v1654 = vadd.f32 0.0, %v1653
    %v1655 = vpop.f32.mrb[0].mxu0
    %1656 = vdwg.mxu0
    %1657 = vmatprep.subr.mxu0 0.0
    %1658 = vmatpush1.msra.mxu0 %v1158
    %1659 = vmatprep.subr.mxu0 0.0
    %1660 = vmatpush1.msra.mxu0 %v1159
    %1661 = vmatprep.subr.mxu0 0.0
    %1662 = vmatpush1.msra.mxu0 %v1160
    %1663 = vmatprep.subr.mxu0 0.0
    %1664 = vmatpush1.msra.mxu0 %v1161
    %1665 = vmatprep.subr.mxu0 0.0
    %1666 = vmatpush1.msra.mxu0 %v1162
    %1667 = vmatprep.subr.mxu0 0.0
    %1668 = vmatpush1.msra.mxu0 %v1163
    %1669 = vmatprep.subr.mxu0 0.0
    %1670 = vmatpush1.msra.mxu0 %v1164
    %1671 = vmatprep.subr.mxu0 0.0
    %1672 = vmatpush1.msra.mxu0 %v1165
    %1673 = vmatprep.subr.mxu0 0.0
    %1674 = vmatpush1.msra.mxu0 %v1166
    %1675 = vmatprep.subr.mxu0 0.0
    %1676 = vmatpush1.msra.mxu0 %v1167
    %1677 = vmatprep.subr.mxu0 0.0
    %1678 = vmatpush1.msra.mxu0 %v1168
    %1679 = vmatprep.subr.mxu0 0.0
    %1680 = vmatpush1.msra.mxu0 %v1169
    %1681 = vmatprep.subr.mxu0 0.0
    %1682 = vmatpush1.msra.mxu0 %v1170
    %1683 = vmatprep.subr.mxu0 0.0
    %1684 = vmatpush1.msra.mxu0 %v1171
    %1685 = vmatprep.subr.mxu0 0.0
    %1686 = vmatpush1.msra.mxu0 %v1172
    %1687 = vmatprep.subr.mxu0 0.0
    %1688 = vmatpush1.msra.mxu0 %v1173
    %1689 = vmatprep.subr.mxu0 0.0
    %1690 = vmatpush1.msra.mxu0 0.0
    %1691 = vmatprep.subr.mxu0 0.0
    %1692 = vmatpush1.msra.mxu0 0.0
    %1693 = vmatprep.subr.mxu0 0.0
    %1694 = vmatpush1.msra.mxu0 0.0
    %1695 = vmatprep.subr.mxu0 0.0
    %1696 = vmatpush1.msra.mxu0 0.0
    %1697 = vmatprep.subr.mxu0 0.0
    %1698 = vmatpush1.msra.mxu0 0.0
    %1699 = vmatprep.subr.mxu0 0.0
    %1700 = vmatpush1.msra.mxu0 0.0
    %1701 = vmatprep.subr.mxu0 0.0
    %1702 = vmatpush1.msra.mxu0 0.0
    %1703 = vmatprep.subr.mxu0 0.0
    %1704 = vmatpush1.msra.mxu0 0.0
    %1705 = vmatprep.subr.mxu0 0.0
    %1706 = vmatpush1.msra.mxu0 0.0
    %1707 = vmatprep.subr.mxu0 0.0
    %1708 = vmatpush1.msra.mxu0 0.0
    %1709 = vmatprep.subr.mxu0 0.0
    %1710 = vmatpush1.msra.mxu0 0.0
    %1711 = vmatprep.subr.mxu0 0.0
    %1712 = vmatpush1.msra.mxu0 0.0
    %1713 = vmatprep.subr.mxu0 0.0
    %1714 = vmatpush1.msra.mxu0 0.0
    %1715 = vmatprep.subr.mxu0 0.0
    %1716 = vmatpush1.msra.mxu0 0.0
    %1717 = vmatprep.subr.mxu0 0.0
    %1718 = vmatpush1.msra.mxu0 0.0
    %1719 = vmatprep.subr.mxu0 0.0
    %1720 = vmatpush1.msra.mxu0 0.0
    %1721 = vmatprep.mubr.f32.mxu0 0.0
    %1722 = vmatmul.mubr.f32.gmra.mrb[0].mxu0 %v1514
    %v1723 = vpop.f32.mrb[0].mxu0
    %v1724 = vadd.f32 %v1619, %v1723
    %v1725 = vpop.f32.mrb[0].mxu0
    %1726 = vmatprep.mubr.f32.mxu0 0.0
    %1727 = vmatmul.mubr.f32.gmra.mrb[0].mxu0 %v1519
    %v1728 = vpop.f32.mrb[0].mxu0
    %v1729 = vadd.f32 %v1624, %v1728
    %v1730 = vpop.f32.mrb[0].mxu0
    %1731 = vmatprep.mubr.f32.mxu0 0.0
    %1732 = vmatmul.mubr.f32.gmra.mrb[0].mxu0 %v1524
    %v1733 = vpop.f32.mrb[0].mxu0
    %v1734 = vadd.f32 %v1629, %v1733
    %v1735 = vpop.f32.mrb[0].mxu0
    %1736 = vmatprep.mubr.f32.mxu0 0.0
    %1737 = vmatmul.mubr.f32.gmra.mrb[0].mxu0 %v1529
    %v1738 = vpop.f32.mrb[0].mxu0
    %v1739 = vadd.f32 %v1634, %v1738
    %v1740 = vpop.f32.mrb[0].mxu0
    %1741 = vmatprep.mubr.f32.mxu0 0.0
    %1742 = vmatmul.mubr.f32.gmra.mrb[0].mxu0 %v1534
    %v1743 = vpop.f32.mrb[0].mxu0
    %v1744 = vadd.f32 %v1639, %v1743
    %v1745 = vpop.f32.mrb[0].mxu0
    %1746 = vmatprep.mubr.f32.mxu0 0.0
    %1747 = vmatmul.mubr.f32.gmra.mrb[0].mxu0 %v1539
    %v1748 = vpop.f32.mrb[0].mxu0
    %v1749 = vadd.f32 %v1644, %v1748
    %v1750 = vpop.f32.mrb[0].mxu0
    %1751 = vmatprep.mubr.f32.mxu0 0.0
    %1752 = vmatmul.mubr.f32.gmra.mrb[0].mxu0 %v1544
    %v1753 = vpop.f32.mrb[0].mxu0
    %v1754 = vadd.f32 %v1649, %v1753
    %v1755 = vpop.f32.mrb[0].mxu0
    %1756 = vmatprep.mubr.f32.mxu0 0.0
    %1757 = vmatmul.mubr.f32.gmra.mrb[0].mxu0 %v1549
    %v1758 = vpop.f32.mrb[0].mxu0
    %v1759 = vadd.f32 %v1654, %v1758
    %v1760 = vpop.f32.mrb[0].mxu0
    %1761 = vdwg.mxu0
    %v1763 = vlaneseq
    %v1764 = vshrl.u32 %v1763, 7
    %v1765 = vsub.s32 0, %v1764
    %v1766 = vrot.slane %v1228, %v1765
    %v1768 = vadd.f32 %v1724, %v1766
    %v1769 = vadd.f32 %v1729, %v1766
    %v1770 = vadd.f32 %v1734, %v1766
    %v1771 = vadd.f32 %v1739, %v1766
    %v1772 = vadd.f32 %v1744, %v1766
    %v1773 = vadd.f32 %v1749, %v1766
    %v1774 = vadd.f32 %v1754, %v1766
    %v1775 = vadd.f32 %v1759, %v1766
    %v1776 = vadd.f32 %v1409, %v1768
    %v1777 = vadd.f32 %v1414, %v1769
    %v1778 = vadd.f32 %v1419, %v1770
    %v1779 = vadd.f32 %v1424, %v1771
    %v1780 = vadd.f32 %v1429, %v1772
    %v1781 = vadd.f32 %v1434, %v1773
    %v1782 = vadd.f32 %v1439, %v1774
    %v1783 = vadd.f32 %v1444, %v1775
    %v1784 = vmul.f32 %v1776, 0.5
    %v1785 = vmul.f32 %v1777, 0.5
    %v1786 = vmul.f32 %v1778, 0.5
    %v1787 = vmul.f32 %v1779, 0.5
    %v1788 = vmul.f32 %v1780, 0.5
    %v1789 = vmul.f32 %v1781, 0.5
    %v1790 = vmul.f32 %v1782, 0.5
    %v1791 = vmul.f32 %v1783, 0.5
    %1792 = vmatprep.subr.mxu0 0.0
    %1793 = vmatpush1.msra.mxu0 %v1130
    %1794 = vmatprep.subr.mxu0 0.0
    %1795 = vmatpush1.msra.mxu0 %v1131
    %1796 = vmatprep.subr.mxu0 0.0
    %1797 = vmatpush1.msra.mxu0 %v1132
    %1798 = vmatprep.subr.mxu0 0.0
    %1799 = vmatpush1.msra.mxu0 %v1133
    %1800 = vmatprep.subr.mxu0 0.0
    %1801 = vmatpush1.msra.mxu0 %v1134
    %1802 = vmatprep.subr.mxu0 0.0
    %1803 = vmatpush1.msra.mxu0 %v1135
    %1804 = vmatprep.subr.mxu0 0.0
    %1805 = vmatpush1.msra.mxu0 %v1136
    %1806 = vmatprep.subr.mxu0 0.0
    %1807 = vmatpush1.msra.mxu0 %v1137
    %1808 = vmatprep.subr.mxu0 0.0
    %1809 = vmatpush1.msra.mxu0 0.0
    %1810 = vmatprep.subr.mxu0 0.0
    %1811 = vmatpush1.msra.mxu0 0.0
    %1812 = vmatprep.subr.mxu0 0.0
    %1813 = vmatpush1.msra.mxu0 0.0
    %1814 = vmatprep.subr.mxu0 0.0
    %1815 = vmatpush1.msra.mxu0 0.0
    %1816 = vmatprep.subr.mxu0 0.0
    %1817 = vmatpush1.msra.mxu0 0.0
    %1818 = vmatprep.subr.mxu0 0.0
    %1819 = vmatpush1.msra.mxu0 0.0
    %1820 = vmatprep.subr.mxu0 0.0
    %1821 = vmatpush1.msra.mxu0 0.0
    %1822 = vmatprep.subr.mxu0 0.0
    %1823 = vmatpush1.msra.mxu0 0.0
    %1824 = vmatprep.subr.mxu0 0.0
    %1825 = vmatpush1.msra.mxu0 0.0
    %1826 = vmatprep.subr.mxu0 0.0
    %1827 = vmatpush1.msra.mxu0 0.0
    %1828 = vmatprep.subr.mxu0 0.0
    %1829 = vmatpush1.msra.mxu0 0.0
    %1830 = vmatprep.subr.mxu0 0.0
    %1831 = vmatpush1.msra.mxu0 0.0
    %1832 = vmatprep.subr.mxu0 0.0
    %1833 = vmatpush1.msra.mxu0 0.0
    %1834 = vmatprep.subr.mxu0 0.0
    %1835 = vmatpush1.msra.mxu0 0.0
    %1836 = vmatprep.subr.mxu0 0.0
    %1837 = vmatpush1.msra.mxu0 0.0
    %1838 = vmatprep.subr.mxu0 0.0
    %1839 = vmatpush1.msra.mxu0 0.0
    %1840 = vmatprep.subr.mxu0 0.0
    %1841 = vmatpush1.msra.mxu0 0.0
    %1842 = vmatprep.subr.mxu0 0.0
    %1843 = vmatpush1.msra.mxu0 0.0
    %1844 = vmatprep.subr.mxu0 0.0
    %1845 = vmatpush1.msra.mxu0 0.0
    %1846 = vmatprep.subr.mxu0 0.0
    %1847 = vmatpush1.msra.mxu0 0.0
    %1848 = vmatprep.subr.mxu0 0.0
    %1849 = vmatpush1.msra.mxu0 0.0
    %1850 = vmatprep.subr.mxu0 0.0
    %1851 = vmatpush1.msra.mxu0 0.0
    %1852 = vmatprep.subr.mxu0 0.0
    %1853 = vmatpush1.msra.mxu0 0.0
    %1854 = vmatprep.subr.mxu0 0.0
    %1855 = vmatpush1.msra.mxu0 0.0
    %1856 = vmatprep.mubr.f32.mxu0 0.0
    %1857 = vmatmul.mubr.f32.gmra.mrb[0].mxu0 %v892
    %v1858 = vpop.f32.mrb[0].mxu0
    %v1859 = vadd.f32 0.0, %v1858
    %v1860 = vpop.f32.mrb[0].mxu0
    %1861 = vmatprep.mubr.f32.mxu0 0.0
    %1862 = vmatmul.mubr.f32.gmra.mrb[0].mxu0 %v895
    %v1863 = vpop.f32.mrb[0].mxu0
    %v1864 = vadd.f32 0.0, %v1863
    %v1865 = vpop.f32.mrb[0].mxu0
    %1866 = vdwg.mxu0
    %1867 = vmatprep.subr.mxu0 0.0
    %1868 = vmatpush1.msra.mxu0 %v1209
    %1869 = vmatprep.subr.mxu0 0.0
    %1870 = vmatpush1.msra.mxu0 %v1210
    %1871 = vmatprep.subr.mxu0 0.0
    %1872 = vmatpush1.msra.mxu0 %v1211
    %1873 = vmatprep.subr.mxu0 0.0
    %1874 = vmatpush1.msra.mxu0 %v1212
    %1875 = vmatprep.subr.mxu0 0.0
    %1876 = vmatpush1.msra.mxu0 %v1213
    %1877 = vmatprep.subr.mxu0 0.0
    %1878 = vmatpush1.msra.mxu0 %v1214
    %1879 = vmatprep.subr.mxu0 0.0
    %1880 = vmatpush1.msra.mxu0 %v1215
    %1881 = vmatprep.subr.mxu0 0.0
    %1882 = vmatpush1.msra.mxu0 %v1216
    %1883 = vmatprep.subr.mxu0 0.0
    %1884 = vmatpush1.msra.mxu0 %v1217
    %1885 = vmatprep.subr.mxu0 0.0
    %1886 = vmatpush1.msra.mxu0 %v1218
    %1887 = vmatprep.subr.mxu0 0.0
    %1888 = vmatpush1.msra.mxu0 %v1219
    %1889 = vmatprep.subr.mxu0 0.0
    %1890 = vmatpush1.msra.mxu0 %v1220
    %1891 = vmatprep.subr.mxu0 0.0
    %1892 = vmatpush1.msra.mxu0 %v1221
    %1893 = vmatprep.subr.mxu0 0.0
    %1894 = vmatpush1.msra.mxu0 %v1222
    %1895 = vmatprep.subr.mxu0 0.0
    %1896 = vmatpush1.msra.mxu0 %v1223
    %1897 = vmatprep.subr.mxu0 0.0
    %1898 = vmatpush1.msra.mxu0 %v1224
    %1899 = vmatprep.subr.mxu0 0.0
    %1900 = vmatpush1.msra.mxu0 0.0
    %1901 = vmatprep.subr.mxu0 0.0
    %1902 = vmatpush1.msra.mxu0 0.0
    %1903 = vmatprep.subr.mxu0 0.0
    %1904 = vmatpush1.msra.mxu0 0.0
    %1905 = vmatprep.subr.mxu0 0.0
    %1906 = vmatpush1.msra.mxu0 0.0
    %1907 = vmatprep.subr.mxu0 0.0
    %1908 = vmatpush1.msra.mxu0 0.0
    %1909 = vmatprep.subr.mxu0 0.0
    %1910 = vmatpush1.msra.mxu0 0.0
    %1911 = vmatprep.subr.mxu0 0.0
    %1912 = vmatpush1.msra.mxu0 0.0
    %1913 = vmatprep.subr.mxu0 0.0
    %1914 = vmatpush1.msra.mxu0 0.0
    %1915 = vmatprep.subr.mxu0 0.0
    %1916 = vmatpush1.msra.mxu0 0.0
    %1917 = vmatprep.subr.mxu0 0.0
    %1918 = vmatpush1.msra.mxu0 0.0
    %1919 = vmatprep.subr.mxu0 0.0
    %1920 = vmatpush1.msra.mxu0 0.0
    %1921 = vmatprep.subr.mxu0 0.0
    %1922 = vmatpush1.msra.mxu0 0.0
    %1923 = vmatprep.subr.mxu0 0.0
    %1924 = vmatpush1.msra.mxu0 0.0
    %1925 = vmatprep.subr.mxu0 0.0
    %1926 = vmatpush1.msra.mxu0 0.0
    %1927 = vmatprep.subr.mxu0 0.0
    %1928 = vmatpush1.msra.mxu0 0.0
    %1929 = vmatprep.subr.mxu0 0.0
    %1930 = vmatpush1.msra.mxu0 0.0
    %1931 = vmatprep.mubr.f32.mxu0 0.0
    %1932 = vmatmul.mubr.f32.gmra.mrb[0].mxu0 %v1138
    %v1933 = vpop.f32.mrb[0].mxu0
    %v1934 = vadd.f32 0.0, %v1933
    %v1935 = vpop.f32.mrb[0].mxu0
    %1936 = vmatprep.mubr.f32.mxu0 0.0
    %1937 = vmatmul.mubr.f32.gmra.mrb[0].mxu0 %v1139
    %v1938 = vpop.f32.mrb[0].mxu0
    %v1939 = vadd.f32 0.0, %v1938
    %v1940 = vpop.f32.mrb[0].mxu0
    %1941 = vdwg.mxu0
    %1942 = vmatprep.subr.mxu0 0.0
    %1943 = vmatpush1.msra.mxu0 %v1192
    %1944 = vmatprep.subr.mxu0 0.0
    %1945 = vmatpush1.msra.mxu0 %v1193
    %1946 = vmatprep.subr.mxu0 0.0
    %1947 = vmatpush1.msra.mxu0 %v1194
    %1948 = vmatprep.subr.mxu0 0.0
    %1949 = vmatpush1.msra.mxu0 %v1195
    %1950 = vmatprep.subr.mxu0 0.0
    %1951 = vmatpush1.msra.mxu0 %v1196
    %1952 = vmatprep.subr.mxu0 0.0
    %1953 = vmatpush1.msra.mxu0 %v1197
    %1954 = vmatprep.subr.mxu0 0.0
    %1955 = vmatpush1.msra.mxu0 %v1198
    %1956 = vmatprep.subr.mxu0 0.0
    %1957 = vmatpush1.msra.mxu0 %v1199
    %1958 = vmatprep.subr.mxu0 0.0
    %1959 = vmatpush1.msra.mxu0 %v1200
    %1960 = vmatprep.subr.mxu0 0.0
    %1961 = vmatpush1.msra.mxu0 %v1201
    %1962 = vmatprep.subr.mxu0 0.0
    %1963 = vmatpush1.msra.mxu0 %v1202
    %1964 = vmatprep.subr.mxu0 0.0
    %1965 = vmatpush1.msra.mxu0 %v1203
    %1966 = vmatprep.subr.mxu0 0.0
    %1967 = vmatpush1.msra.mxu0 %v1204
    %1968 = vmatprep.subr.mxu0 0.0
    %1969 = vmatpush1.msra.mxu0 %v1205
    %1970 = vmatprep.subr.mxu0 0.0
    %1971 = vmatpush1.msra.mxu0 %v1206
    %1972 = vmatprep.subr.mxu0 0.0
    %1973 = vmatpush1.msra.mxu0 %v1207
    %1974 = vmatprep.subr.mxu0 0.0
    %1975 = vmatpush1.msra.mxu0 0.0
    %1976 = vmatprep.subr.mxu0 0.0
    %1977 = vmatpush1.msra.mxu0 0.0
    %1978 = vmatprep.subr.mxu0 0.0
    %1979 = vmatpush1.msra.mxu0 0.0
    %1980 = vmatprep.subr.mxu0 0.0
    %1981 = vmatpush1.msra.mxu0 0.0
    %1982 = vmatprep.subr.mxu0 0.0
    %1983 = vmatpush1.msra.mxu0 0.0
    %1984 = vmatprep.subr.mxu0 0.0
    %1985 = vmatpush1.msra.mxu0 0.0
    %1986 = vmatprep.subr.mxu0 0.0
    %1987 = vmatpush1.msra.mxu0 0.0
    %1988 = vmatprep.subr.mxu0 0.0
    %1989 = vmatpush1.msra.mxu0 0.0
    %1990 = vmatprep.subr.mxu0 0.0
    %1991 = vmatpush1.msra.mxu0 0.0
    %1992 = vmatprep.subr.mxu0 0.0
    %1993 = vmatpush1.msra.mxu0 0.0
    %1994 = vmatprep.subr.mxu0 0.0
    %1995 = vmatpush1.msra.mxu0 0.0
    %1996 = vmatprep.subr.mxu0 0.0
    %1997 = vmatpush1.msra.mxu0 0.0
    %1998 = vmatprep.subr.mxu0 0.0
    %1999 = vmatpush1.msra.mxu0 0.0
    %2000 = vmatprep.subr.mxu0 0.0
    %2001 = vmatpush1.msra.mxu0 0.0
    %2002 = vmatprep.subr.mxu0 0.0
    %2003 = vmatpush1.msra.mxu0 0.0
    %2004 = vmatprep.subr.mxu0 0.0
    %2005 = vmatpush1.msra.mxu0 0.0
    %2006 = vmatprep.mubr.f32.mxu0 0.0
    %2007 = vmatmul.mubr.f32.gmra.mrb[0].mxu0 %v1859
    %v2008 = vpop.f32.mrb[0].mxu0
    %v2009 = vadd.f32 %v1934, %v2008
    %v2010 = vpop.f32.mrb[0].mxu0
    %2011 = vmatprep.mubr.f32.mxu0 0.0
    %2012 = vmatmul.mubr.f32.gmra.mrb[0].mxu0 %v1864
    %v2013 = vpop.f32.mrb[0].mxu0
    %v2014 = vadd.f32 %v1939, %v2013
    %v2015 = vpop.f32.mrb[0].mxu0
    %2016 = vdwg.mxu0
    %v2018 = vlaneseq
    %v2019 = vshrl.u32 %v2018, 7
    %v2020 = vsub.s32 0, %v2019
    %v2021 = vrot.slane %v1230, %v2020
    %v2023 = vadd.f32 %v2009, %v2021
    %v2024 = vadd.f32 %v2014, %v2021
    %v2025 = vmax.f32 %v1784, 0.0
    %v2026 = vmax.f32 %v1785, 0.0
    %v2027 = vmax.f32 %v1786, 0.0
    %v2028 = vmax.f32 %v1787, 0.0
    %v2029 = vmax.f32 %v1788, 0.0
    %v2030 = vmax.f32 %v1789, 0.0
    %v2031 = vmax.f32 %v1790, 0.0
    %v2032 = vmax.f32 %v1791, 0.0
    %v2033 = vmax.f32 %v2023, 0.0
    %v2034 = vmax.f32 %v2024, 0.0
    %s2035 = scalar_lea.vmem [#allocation5], 256
    %v2036 = vld [vmem:[%s2035] sm:$0xff]
    %v2037 = vld [vmem:[%s2035 + $0x8] sm:$0xff]
    %v2038 = vld [vmem:[%s2035 + $0x10] sm:$0xff]
    %v2039 = vld [vmem:[%s2035 + $0x18] sm:$0xff]
    %v2040 = vld [vmem:[%s2035 + $0x20] sm:$0xff]
    %v2041 = vld [vmem:[%s2035 + $0x28] sm:$0xff]
    %v2042 = vld [vmem:[%s2035 + $0x30] sm:$0xff]
    %v2043 = vld [vmem:[%s2035 + $0x38] sm:$0xff]
    %v2044 = vld [vmem:[%s2035 + $0x40] sm:$0xff]
    %v2045 = vld [vmem:[%s2035 + $0x48] sm:$0xff]
    %v2046 = vld [vmem:[%s2035 + $0x50] sm:$0xff]
    %v2047 = vld [vmem:[%s2035 + $0x58] sm:$0xff]
    %v2048 = vld [vmem:[%s2035 + $0x60] sm:$0xff]
    %v2049 = vld [vmem:[%s2035 + $0x68] sm:$0xff]
    %v2050 = vld [vmem:[%s2035 + $0x70] sm:$0xff]
    %v2051 = vld [vmem:[%s2035 + $0x78] sm:$0xff]
    %s2052 = scalar_lea.vmem [#allocation7], 256
    %v2053 = vld [vmem:[%s2052] sm:$0xff]
    %v2054 = vld [vmem:[%s2052 + $0x8] sm:$0xff]
    %v2055 = vld [vmem:[%s2052 + $0x10] sm:$0xff]
    %v2056 = vld [vmem:[%s2052 + $0x18] sm:$0xff]
    %v2057 = vld [vmem:[%s2052 + $0x20] sm:$0xff]
    %v2058 = vld [vmem:[%s2052 + $0x28] sm:$0xff]
    %v2059 = vld [vmem:[%s2052 + $0x30] sm:$0xff]
    %v2060 = vld [vmem:[%s2052 + $0x38] sm:$0xff]
    %v2061 = vld [vmem:[%s2052 + $0x40] sm:$0xff]
    %v2062 = vld [vmem:[%s2052 + $0x48] sm:$0xff]
    %v2063 = vld [vmem:[%s2052 + $0x50] sm:$0xff]
    %v2064 = vld [vmem:[%s2052 + $0x58] sm:$0xff]
    %v2065 = vld [vmem:[%s2052 + $0x60] sm:$0xff]
    %v2066 = vld [vmem:[%s2052 + $0x68] sm:$0xff]
    %v2067 = vld [vmem:[%s2052 + $0x70] sm:$0xff]
    %v2068 = vld [vmem:[%s2052 + $0x78] sm:$0xff]
    %s2069 = scalar_lea.vmem [#allocation8], 256
    %v2070 = vld [vmem:[%s2069] sm:$0xff]
    %v2071 = vld [vmem:[%s2069 + $0x8] sm:$0xff]
    %v2072 = vld [vmem:[%s2069 + $0x10] sm:$0xff]
    %v2073 = vld [vmem:[%s2069 + $0x18] sm:$0xff]
    %v2074 = vld [vmem:[%s2069 + $0x20] sm:$0xff]
    %v2075 = vld [vmem:[%s2069 + $0x28] sm:$0xff]
    %v2076 = vld [vmem:[%s2069 + $0x30] sm:$0xff]
    %v2077 = vld [vmem:[%s2069 + $0x38] sm:$0xff]
    %v2078 = vld [vmem:[%s2069 + $0x40] sm:$0xff]
    %v2079 = vld [vmem:[%s2069 + $0x48] sm:$0xff]
    %v2080 = vld [vmem:[%s2069 + $0x50] sm:$0xff]
    %v2081 = vld [vmem:[%s2069 + $0x58] sm:$0xff]
    %v2082 = vld [vmem:[%s2069 + $0x60] sm:$0xff]
    %v2083 = vld [vmem:[%s2069 + $0x68] sm:$0xff]
    %v2084 = vld [vmem:[%s2069 + $0x70] sm:$0xff]
    %v2085 = vld [vmem:[%s2069 + $0x78] sm:$0xff]
    %s2086 = scalar_lea.vmem [#allocation10], 256
    %v2087 = vld [vmem:[%s2086] sm:$0xff]
    %v2088 = vld [vmem:[%s2086 + $0x8] sm:$0xff]
    %v2089 = vld [vmem:[%s2086 + $0x10] sm:$0xff]
    %v2090 = vld [vmem:[%s2086 + $0x18] sm:$0xff]
    %v2091 = vld [vmem:[%s2086 + $0x20] sm:$0xff]
    %v2092 = vld [vmem:[%s2086 + $0x28] sm:$0xff]
    %v2093 = vld [vmem:[%s2086 + $0x30] sm:$0xff]
    %v2094 = vld [vmem:[%s2086 + $0x38] sm:$0xff]
    %v2095 = vld [vmem:[%s2086 + $0x40] sm:$0xff]
    %v2096 = vld [vmem:[%s2086 + $0x48] sm:$0xff]
    %v2097 = vld [vmem:[%s2086 + $0x50] sm:$0xff]
    %v2098 = vld [vmem:[%s2086 + $0x58] sm:$0xff]
    %v2099 = vld [vmem:[%s2086 + $0x60] sm:$0xff]
    %v2100 = vld [vmem:[%s2086 + $0x68] sm:$0xff]
    %v2101 = vld [vmem:[%s2086 + $0x70] sm:$0xff]
    %v2102 = vld [vmem:[%s2086 + $0x78] sm:$0xff]
    %s2103 = scalar_lea.vmem [#allocation11], 256
    %v2104 = vld [vmem:[%s2103] sm:$0xff]
    %v2105 = vld [vmem:[%s2103 + $0x8] sm:$0xff]
    %v2106 = vld [vmem:[%s2103 + $0x10] sm:$0xff]
    %v2107 = vld [vmem:[%s2103 + $0x18] sm:$0xff]
    %v2108 = vld [vmem:[%s2103 + $0x20] sm:$0xff]
    %v2109 = vld [vmem:[%s2103 + $0x28] sm:$0xff]
    %v2110 = vld [vmem:[%s2103 + $0x30] sm:$0xff]
    %v2111 = vld [vmem:[%s2103 + $0x38] sm:$0xff]
    %v2112 = vld [vmem:[%s2103 + $0x40] sm:$0xff]
    %v2113 = vld [vmem:[%s2103 + $0x48] sm:$0xff]
    %v2114 = vld [vmem:[%s2103 + $0x50] sm:$0xff]
    %v2115 = vld [vmem:[%s2103 + $0x58] sm:$0xff]
    %v2116 = vld [vmem:[%s2103 + $0x60] sm:$0xff]
    %v2117 = vld [vmem:[%s2103 + $0x68] sm:$0xff]
    %v2118 = vld [vmem:[%s2103 + $0x70] sm:$0xff]
    %v2119 = vld [vmem:[%s2103 + $0x78] sm:$0xff]
    %s2120 = scalar_lea.vmem [#allocation13], 2
    %v2121 = vld [vmem:[%s2120] sm:$0x1]
    %s2122 = scalar_lea.vmem [#allocation14], 2
    %v2123 = vld [vmem:[%s2122] sm:$0x1]
    %s2124 = scalar_lea.vmem [#allocation16], 2
    %v2125 = vld [vmem:[%s2124] sm:$0x1]
    %2126 = vmatprep.subr.mxu0 0.0
    %2127 = vmatpush1.msra.mxu0 %v2036
    %2128 = vmatprep.subr.mxu0 0.0
    %2129 = vmatpush1.msra.mxu0 %v2037
    %2130 = vmatprep.subr.mxu0 0.0
    %2131 = vmatpush1.msra.mxu0 %v2038
    %2132 = vmatprep.subr.mxu0 0.0
    %2133 = vmatpush1.msra.mxu0 %v2039
    %2134 = vmatprep.subr.mxu0 0.0
    %2135 = vmatpush1.msra.mxu0 %v2040
    %2136 = vmatprep.subr.mxu0 0.0
    %2137 = vmatpush1.msra.mxu0 %v2041
    %2138 = vmatprep.subr.mxu0 0.0
    %2139 = vmatpush1.msra.mxu0 %v2042
    %2140 = vmatprep.subr.mxu0 0.0
    %2141 = vmatpush1.msra.mxu0 %v2043
    %2142 = vmatprep.subr.mxu0 0.0
    %2143 = vmatpush1.msra.mxu0 %v2044
    %2144 = vmatprep.subr.mxu0 0.0
    %2145 = vmatpush1.msra.mxu0 %v2045
    %2146 = vmatprep.subr.mxu0 0.0
    %2147 = vmatpush1.msra.mxu0 %v2046
    %2148 = vmatprep.subr.mxu0 0.0
    %2149 = vmatpush1.msra.mxu0 %v2047
    %2150 = vmatprep.subr.mxu0 0.0
    %2151 = vmatpush1.msra.mxu0 %v2048
    %2152 = vmatprep.subr.mxu0 0.0
    %2153 = vmatpush1.msra.mxu0 %v2049
    %2154 = vmatprep.subr.mxu0 0.0
    %2155 = vmatpush1.msra.mxu0 %v2050
    %2156 = vmatprep.subr.mxu0 0.0
    %2157 = vmatpush1.msra.mxu0 %v2051
    %2158 = vmatprep.subr.mxu0 0.0
    %2159 = vmatpush1.msra.mxu0 0.0
    %2160 = vmatprep.subr.mxu0 0.0
    %2161 = vmatpush1.msra.mxu0 0.0
    %2162 = vmatprep.subr.mxu0 0.0
    %2163 = vmatpush1.msra.mxu0 0.0
    %2164 = vmatprep.subr.mxu0 0.0
    %2165 = vmatpush1.msra.mxu0 0.0
    %2166 = vmatprep.subr.mxu0 0.0
    %2167 = vmatpush1.msra.mxu0 0.0
    %2168 = vmatprep.subr.mxu0 0.0
    %2169 = vmatpush1.msra.mxu0 0.0
    %2170 = vmatprep.subr.mxu0 0.0
    %2171 = vmatpush1.msra.mxu0 0.0
    %2172 = vmatprep.subr.mxu0 0.0
    %2173 = vmatpush1.msra.mxu0 0.0
    %2174 = vmatprep.subr.mxu0 0.0
    %2175 = vmatpush1.msra.mxu0 0.0
    %2176 = vmatprep.subr.mxu0 0.0
    %2177 = vmatpush1.msra.mxu0 0.0
    %2178 = vmatprep.subr.mxu0 0.0
    %2179 = vmatpush1.msra.mxu0 0.0
    %2180 = vmatprep.subr.mxu0 0.0
    %2181 = vmatpush1.msra.mxu0 0.0
    %2182 = vmatprep.subr.mxu0 0.0
    %2183 = vmatpush1.msra.mxu0 0.0
    %2184 = vmatprep.subr.mxu0 0.0
    %2185 = vmatpush1.msra.mxu0 0.0
    %2186 = vmatprep.subr.mxu0 0.0
    %2187 = vmatpush1.msra.mxu0 0.0
    %2188 = vmatprep.subr.mxu0 0.0
    %2189 = vmatpush1.msra.mxu0 0.0
    %2190 = vmatprep.mubr.f32.mxu0 0.0
    %2191 = vmatmul.mubr.f32.gmra.mrb[0].mxu0 %v2025
    %v2192 = vpop.f32.mrb[0].mxu0
    %v2193 = vadd.f32 0.0, %v2192
    %v2194 = vpop.f32.mrb[0].mxu0
    %2195 = vmatprep.mubr.f32.mxu0 0.0
    %2196 = vmatmul.mubr.f32.gmra.mrb[0].mxu0 %v2026
    %v2197 = vpop.f32.mrb[0].mxu0
    %v2198 = vadd.f32 0.0, %v2197
    %v2199 = vpop.f32.mrb[0].mxu0
    %2200 = vmatprep.mubr.f32.mxu0 0.0
    %2201 = vmatmul.mubr.f32.gmra.mrb[0].mxu0 %v2027
    %v2202 = vpop.f32.mrb[0].mxu0
    %v2203 = vadd.f32 0.0, %v2202
    %v2204 = vpop.f32.mrb[0].mxu0
    %2205 = vmatprep.mubr.f32.mxu0 0.0
    %2206 = vmatmul.mubr.f32.gmra.mrb[0].mxu0 %v2028
    %v2207 = vpop.f32.mrb[0].mxu0
    %v2208 = vadd.f32 0.0, %v2207
    %v2209 = vpop.f32.mrb[0].mxu0
    %2210 = vmatprep.mubr.f32.mxu0 0.0
    %2211 = vmatmul.mubr.f32.gmra.mrb[0].mxu0 %v2029
    %v2212 = vpop.f32.mrb[0].mxu0
    %v2213 = vadd.f32 0.0, %v2212
    %v2214 = vpop.f32.mrb[0].mxu0
    %2215 = vmatprep.mubr.f32.mxu0 0.0
    %2216 = vmatmul.mubr.f32.gmra.mrb[0].mxu0 %v2030
    %v2217 = vpop.f32.mrb[0].mxu0
    %v2218 = vadd.f32 0.0, %v2217
    %v2219 = vpop.f32.mrb[0].mxu0
    %2220 = vmatprep.mubr.f32.mxu0 0.0
    %2221 = vmatmul.mubr.f32.gmra.mrb[0].mxu0 %v2031
    %v2222 = vpop.f32.mrb[0].mxu0
    %v2223 = vadd.f32 0.0, %v2222
    %v2224 = vpop.f32.mrb[0].mxu0
    %2225 = vmatprep.mubr.f32.mxu0 0.0
    %2226 = vmatmul.mubr.f32.gmra.mrb[0].mxu0 %v2032
    %v2227 = vpop.f32.mrb[0].mxu0
    %v2228 = vadd.f32 0.0, %v2227
    %v2229 = vpop.f32.mrb[0].mxu0
    %2230 = vdwg.mxu0
    %v2232 = vlaneseq
    %v2233 = vshrl.u32 %v2232, 7
    %v2234 = vsub.s32 0, %v2233
    %v2235 = vrot.slane %v2121, %v2234
    %2237 = vmatprep.subr.mxu0 0.0
    %2238 = vmatpush1.msra.mxu0 %v2193
    %2239 = vmatprep.subr.mxu0 0.0
    %2240 = vmatpush1.msra.mxu0 %v2198
    %2241 = vmatprep.subr.mxu0 0.0
    %2242 = vmatpush1.msra.mxu0 %v2203
    %2243 = vmatprep.subr.mxu0 0.0
    %2244 = vmatpush1.msra.mxu0 %v2208
    %2245 = vmatprep.subr.mxu0 0.0
    %2246 = vmatpush1.msra.mxu0 %v2213
    %2247 = vmatprep.subr.mxu0 0.0
    %2248 = vmatpush1.msra.mxu0 %v2218
    %2249 = vmatprep.subr.mxu0 0.0
    %2250 = vmatpush1.msra.mxu0 %v2223
    %2251 = vmatprep.subr.mxu0 0.0
    %2252 = vmatpush1.msra.mxu0 %v2228
    %2253 = vmatprep.subr.mxu0 0.0
    %2254 = vmatpush1.msra.mxu0 0.0
    %2255 = vmatprep.subr.mxu0 0.0
    %2256 = vmatpush1.msra.mxu0 0.0
    %2257 = vmatprep.subr.mxu0 0.0
    %2258 = vmatpush1.msra.mxu0 0.0
    %2259 = vmatprep.subr.mxu0 0.0
    %2260 = vmatpush1.msra.mxu0 0.0
    %2261 = vmatprep.subr.mxu0 0.0
    %2262 = vmatpush1.msra.mxu0 0.0
    %2263 = vmatprep.subr.mxu0 0.0
    %2264 = vmatpush1.msra.mxu0 0.0
    %2265 = vmatprep.subr.mxu0 0.0
    %2266 = vmatpush1.msra.mxu0 0.0
    %2267 = vmatprep.subr.mxu0 0.0
    %2268 = vmatpush1.msra.mxu0 0.0
    %2269 = vmatprep.subr.mxu0 0.0
    %2270 = vmatpush1.msra.mxu0 0.0
    %2271 = vmatprep.subr.mxu0 0.0
    %2272 = vmatpush1.msra.mxu0 0.0
    %2273 = vmatprep.subr.mxu0 0.0
    %2274 = vmatpush1.msra.mxu0 0.0
    %2275 = vmatprep.subr.mxu0 0.0
    %2276 = vmatpush1.msra.mxu0 0.0
    %2277 = vmatprep.subr.mxu0 0.0
    %2278 = vmatpush1.msra.mxu0 0.0
    %2279 = vmatprep.subr.mxu0 0.0
    %2280 = vmatpush1.msra.mxu0 0.0
    %2281 = vmatprep.subr.mxu0 0.0
    %2282 = vmatpush1.msra.mxu0 0.0
    %2283 = vmatprep.subr.mxu0 0.0
    %2284 = vmatpush1.msra.mxu0 0.0
    %2285 = vmatprep.subr.mxu0 0.0
    %2286 = vmatpush1.msra.mxu0 0.0
    %2287 = vmatprep.subr.mxu0 0.0
    %2288 = vmatpush1.msra.mxu0 0.0
    %2289 = vmatprep.subr.mxu0 0.0
    %2290 = vmatpush1.msra.mxu0 0.0
    %2291 = vmatprep.subr.mxu0 0.0
    %2292 = vmatpush1.msra.mxu0 0.0
    %2293 = vmatprep.subr.mxu0 0.0
    %2294 = vmatpush1.msra.mxu0 0.0
    %2295 = vmatprep.subr.mxu0 0.0
    %2296 = vmatpush1.msra.mxu0 0.0
    %2297 = vmatprep.subr.mxu0 0.0
    %2298 = vmatpush1.msra.mxu0 0.0
    %2299 = vmatprep.subr.mxu0 0.0
    %2300 = vmatpush1.msra.mxu0 0.0
    %2301 = vmatprep.mubr.f32.mxu0 0.0
    %2302 = vmatmul.mubr.f32.gmra.mrb[0].mxu0 %v393
    %v2303 = vpop.f32.mrb[0].mxu0
    %v2304 = vadd.f32 %v2235, %v2303
    %v2305 = vpop.f32.mrb[0].mxu0
    %2306 = vmatprep.mubr.f32.mxu0 0.0
    %2307 = vmatmul.mubr.f32.gmra.mrb[0].mxu0 %v396
    %v2308 = vpop.f32.mrb[0].mxu0
    %v2309 = vadd.f32 %v2235, %v2308
    %v2310 = vpop.f32.mrb[0].mxu0
    %2311 = vmatprep.mubr.f32.mxu0 0.0
    %2312 = vmatmul.mubr.f32.gmra.mrb[0].mxu0 %v399
    %v2313 = vpop.f32.mrb[0].mxu0
    %v2314 = vadd.f32 %v2235, %v2313
    %v2315 = vpop.f32.mrb[0].mxu0
    %2316 = vmatprep.mubr.f32.mxu0 0.0
    %2317 = vmatmul.mubr.f32.gmra.mrb[0].mxu0 %v402
    %v2318 = vpop.f32.mrb[0].mxu0
    %v2319 = vadd.f32 %v2235, %v2318
    %v2320 = vpop.f32.mrb[0].mxu0
    %2321 = vmatprep.mubr.f32.mxu0 0.0
    %2322 = vmatmul.mubr.f32.gmra.mrb[0].mxu0 %v405
    %v2323 = vpop.f32.mrb[0].mxu0
    %v2324 = vadd.f32 %v2235, %v2323
    %v2325 = vpop.f32.mrb[0].mxu0
    %2326 = vmatprep.mubr.f32.mxu0 0.0
    %2327 = vmatmul.mubr.f32.gmra.mrb[0].mxu0 %v408
    %v2328 = vpop.f32.mrb[0].mxu0
    %v2329 = vadd.f32 %v2235, %v2328
    %v2330 = vpop.f32.mrb[0].mxu0
    %2331 = vmatprep.mubr.f32.mxu0 0.0
    %2332 = vmatmul.mubr.f32.gmra.mrb[0].mxu0 %v411
    %v2333 = vpop.f32.mrb[0].mxu0
    %v2334 = vadd.f32 %v2235, %v2333
    %v2335 = vpop.f32.mrb[0].mxu0
    %2336 = vmatprep.mubr.f32.mxu0 0.0
    %2337 = vmatmul.mubr.f32.gmra.mrb[0].mxu0 %v414
    %v2338 = vpop.f32.mrb[0].mxu0
    %v2339 = vadd.f32 %v2235, %v2338
    %v2340 = vpop.f32.mrb[0].mxu0
    %2341 = vdwg.mxu0
    %2342 = vmatprep.subr.mxu0 0.0
    %2343 = vmatpush1.msra.mxu0 %v2033
    %2344 = vmatprep.subr.mxu0 0.0
    %2345 = vmatpush1.msra.mxu0 %v2034
    %2346 = vmatprep.subr.mxu0 0.0
    %2347 = vmatpush1.msra.mxu0 0.0
    %2348 = vmatprep.subr.mxu0 0.0
    %2349 = vmatpush1.msra.mxu0 0.0
    %2350 = vmatprep.subr.mxu0 0.0
    %2351 = vmatpush1.msra.mxu0 0.0
    %2352 = vmatprep.subr.mxu0 0.0
    %2353 = vmatpush1.msra.mxu0 0.0
    %2354 = vmatprep.subr.mxu0 0.0
    %2355 = vmatpush1.msra.mxu0 0.0
    %2356 = vmatprep.subr.mxu0 0.0
    %2357 = vmatpush1.msra.mxu0 0.0
    %2358 = vmatprep.subr.mxu0 0.0
    %2359 = vmatpush1.msra.mxu0 0.0
    %2360 = vmatprep.subr.mxu0 0.0
    %2361 = vmatpush1.msra.mxu0 0.0
    %2362 = vmatprep.subr.mxu0 0.0
    %2363 = vmatpush1.msra.mxu0 0.0
    %2364 = vmatprep.subr.mxu0 0.0
    %2365 = vmatpush1.msra.mxu0 0.0
    %2366 = vmatprep.subr.mxu0 0.0
    %2367 = vmatpush1.msra.mxu0 0.0
    %2368 = vmatprep.subr.mxu0 0.0
    %2369 = vmatpush1.msra.mxu0 0.0
    %2370 = vmatprep.subr.mxu0 0.0
    %2371 = vmatpush1.msra.mxu0 0.0
    %2372 = vmatprep.subr.mxu0 0.0
    %2373 = vmatpush1.msra.mxu0 0.0
    %2374 = vmatprep.subr.mxu0 0.0
    %2375 = vmatpush1.msra.mxu0 0.0
    %2376 = vmatprep.subr.mxu0 0.0
    %2377 = vmatpush1.msra.mxu0 0.0
    %2378 = vmatprep.subr.mxu0 0.0
    %2379 = vmatpush1.msra.mxu0 0.0
    %2380 = vmatprep.subr.mxu0 0.0
    %2381 = vmatpush1.msra.mxu0 0.0
    %2382 = vmatprep.subr.mxu0 0.0
    %2383 = vmatpush1.msra.mxu0 0.0
    %2384 = vmatprep.subr.mxu0 0.0
    %2385 = vmatpush1.msra.mxu0 0.0
    %2386 = vmatprep.subr.mxu0 0.0
    %2387 = vmatpush1.msra.mxu0 0.0
    %2388 = vmatprep.subr.mxu0 0.0
    %2389 = vmatpush1.msra.mxu0 0.0
    %2390 = vmatprep.subr.mxu0 0.0
    %2391 = vmatpush1.msra.mxu0 0.0
    %2392 = vmatprep.subr.mxu0 0.0
    %2393 = vmatpush1.msra.mxu0 0.0
    %2394 = vmatprep.subr.mxu0 0.0
    %2395 = vmatpush1.msra.mxu0 0.0
    %2396 = vmatprep.subr.mxu0 0.0
    %2397 = vmatpush1.msra.mxu0 0.0
    %2398 = vmatprep.subr.mxu0 0.0
    %2399 = vmatpush1.msra.mxu0 0.0
    %2400 = vmatprep.subr.mxu0 0.0
    %2401 = vmatpush1.msra.mxu0 0.0
    %2402 = vmatprep.subr.mxu0 0.0
    %2403 = vmatpush1.msra.mxu0 0.0
    %2404 = vmatprep.subr.mxu0 0.0
    %2405 = vmatpush1.msra.mxu0 0.0
    %2406 = vmatprep.mubr.f32.mxu0 0.0
    %2407 = vmatmul.mubr.f32.gmra.mrb[0].mxu0 %v523
    %v2408 = vpop.f32.mrb[0].mxu0
    %v2409 = vadd.f32 0.0, %v2408
    %v2410 = vpop.f32.mrb[0].mxu0
    %2411 = vmatprep.mubr.f32.mxu0 0.0
    %2412 = vmatmul.mubr.f32.gmra.mrb[0].mxu0 %v526
    %v2413 = vpop.f32.mrb[0].mxu0
    %v2414 = vadd.f32 0.0, %v2413
    %v2415 = vpop.f32.mrb[0].mxu0
    %2416 = vmatprep.mubr.f32.mxu0 0.0
    %2417 = vmatmul.mubr.f32.gmra.mrb[0].mxu0 %v529
    %v2418 = vpop.f32.mrb[0].mxu0
    %v2419 = vadd.f32 0.0, %v2418
    %v2420 = vpop.f32.mrb[0].mxu0
    %2421 = vmatprep.mubr.f32.mxu0 0.0
    %2422 = vmatmul.mubr.f32.gmra.mrb[0].mxu0 %v532
    %v2423 = vpop.f32.mrb[0].mxu0
    %v2424 = vadd.f32 0.0, %v2423
    %v2425 = vpop.f32.mrb[0].mxu0
    %2426 = vmatprep.mubr.f32.mxu0 0.0
    %2427 = vmatmul.mubr.f32.gmra.mrb[0].mxu0 %v535
    %v2428 = vpop.f32.mrb[0].mxu0
    %v2429 = vadd.f32 0.0, %v2428
    %v2430 = vpop.f32.mrb[0].mxu0
    %2431 = vmatprep.mubr.f32.mxu0 0.0
    %2432 = vmatmul.mubr.f32.gmra.mrb[0].mxu0 %v538
    %v2433 = vpop.f32.mrb[0].mxu0
    %v2434 = vadd.f32 0.0, %v2433
    %v2435 = vpop.f32.mrb[0].mxu0
    %2436 = vmatprep.mubr.f32.mxu0 0.0
    %2437 = vmatmul.mubr.f32.gmra.mrb[0].mxu0 %v541
    %v2438 = vpop.f32.mrb[0].mxu0
    %v2439 = vadd.f32 0.0, %v2438
    %v2440 = vpop.f32.mrb[0].mxu0
    %2441 = vmatprep.mubr.f32.mxu0 0.0
    %2442 = vmatmul.mubr.f32.gmra.mrb[0].mxu0 %v544
    %v2443 = vpop.f32.mrb[0].mxu0
    %v2444 = vadd.f32 0.0, %v2443
    %v2445 = vpop.f32.mrb[0].mxu0
    %2446 = vdwg.mxu0
    %2447 = vmatprep.subr.mxu0 0.0
    %2448 = vmatpush1.msra.mxu0 %v2070
    %2449 = vmatprep.subr.mxu0 0.0
    %2450 = vmatpush1.msra.mxu0 %v2071
    %2451 = vmatprep.subr.mxu0 0.0
    %2452 = vmatpush1.msra.mxu0 %v2072
    %2453 = vmatprep.subr.mxu0 0.0
    %2454 = vmatpush1.msra.mxu0 %v2073
    %2455 = vmatprep.subr.mxu0 0.0
    %2456 = vmatpush1.msra.mxu0 %v2074
    %2457 = vmatprep.subr.mxu0 0.0
    %2458 = vmatpush1.msra.mxu0 %v2075
    %2459 = vmatprep.subr.mxu0 0.0
    %2460 = vmatpush1.msra.mxu0 %v2076
    %2461 = vmatprep.subr.mxu0 0.0
    %2462 = vmatpush1.msra.mxu0 %v2077
    %2463 = vmatprep.subr.mxu0 0.0
    %2464 = vmatpush1.msra.mxu0 %v2078
    %2465 = vmatprep.subr.mxu0 0.0
    %2466 = vmatpush1.msra.mxu0 %v2079
    %2467 = vmatprep.subr.mxu0 0.0
    %2468 = vmatpush1.msra.mxu0 %v2080
    %2469 = vmatprep.subr.mxu0 0.0
    %2470 = vmatpush1.msra.mxu0 %v2081
    %2471 = vmatprep.subr.mxu0 0.0
    %2472 = vmatpush1.msra.mxu0 %v2082
    %2473 = vmatprep.subr.mxu0 0.0
    %2474 = vmatpush1.msra.mxu0 %v2083
    %2475 = vmatprep.subr.mxu0 0.0
    %2476 = vmatpush1.msra.mxu0 %v2084
    %2477 = vmatprep.subr.mxu0 0.0
    %2478 = vmatpush1.msra.mxu0 %v2085
    %2479 = vmatprep.subr.mxu0 0.0
    %2480 = vmatpush1.msra.mxu0 0.0
    %2481 = vmatprep.subr.mxu0 0.0
    %2482 = vmatpush1.msra.mxu0 0.0
    %2483 = vmatprep.subr.mxu0 0.0
    %2484 = vmatpush1.msra.mxu0 0.0
    %2485 = vmatprep.subr.mxu0 0.0
    %2486 = vmatpush1.msra.mxu0 0.0
    %2487 = vmatprep.subr.mxu0 0.0
    %2488 = vmatpush1.msra.mxu0 0.0
    %2489 = vmatprep.subr.mxu0 0.0
    %2490 = vmatpush1.msra.mxu0 0.0
    %2491 = vmatprep.subr.mxu0 0.0
    %2492 = vmatpush1.msra.mxu0 0.0
    %2493 = vmatprep.subr.mxu0 0.0
    %2494 = vmatpush1.msra.mxu0 0.0
    %2495 = vmatprep.subr.mxu0 0.0
    %2496 = vmatpush1.msra.mxu0 0.0
    %2497 = vmatprep.subr.mxu0 0.0
    %2498 = vmatpush1.msra.mxu0 0.0
    %2499 = vmatprep.subr.mxu0 0.0
    %2500 = vmatpush1.msra.mxu0 0.0
    %2501 = vmatprep.subr.mxu0 0.0
    %2502 = vmatpush1.msra.mxu0 0.0
    %2503 = vmatprep.subr.mxu0 0.0
    %2504 = vmatpush1.msra.mxu0 0.0
    %2505 = vmatprep.subr.mxu0 0.0
    %2506 = vmatpush1.msra.mxu0 0.0
    %2507 = vmatprep.subr.mxu0 0.0
    %2508 = vmatpush1.msra.mxu0 0.0
    %2509 = vmatprep.subr.mxu0 0.0
    %2510 = vmatpush1.msra.mxu0 0.0
    %2511 = vmatprep.mubr.f32.mxu0 0.0
    %2512 = vmatmul.mubr.f32.gmra.mrb[0].mxu0 %v2025
    %v2513 = vpop.f32.mrb[0].mxu0
    %v2514 = vadd.f32 0.0, %v2513
    %v2515 = vpop.f32.mrb[0].mxu0
    %2516 = vmatprep.mubr.f32.mxu0 0.0
    %2517 = vmatmul.mubr.f32.gmra.mrb[0].mxu0 %v2026
    %v2518 = vpop.f32.mrb[0].mxu0
    %v2519 = vadd.f32 0.0, %v2518
    %v2520 = vpop.f32.mrb[0].mxu0
    %2521 = vmatprep.mubr.f32.mxu0 0.0
    %2522 = vmatmul.mubr.f32.gmra.mrb[0].mxu0 %v2027
    %v2523 = vpop.f32.mrb[0].mxu0
    %v2524 = vadd.f32 0.0, %v2523
    %v2525 = vpop.f32.mrb[0].mxu0
    %2526 = vmatprep.mubr.f32.mxu0 0.0
    %2527 = vmatmul.mubr.f32.gmra.mrb[0].mxu0 %v2028
    %v2528 = vpop.f32.mrb[0].mxu0
    %v2529 = vadd.f32 0.0, %v2528
    %v2530 = vpop.f32.mrb[0].mxu0
    %2531 = vmatprep.mubr.f32.mxu0 0.0
    %2532 = vmatmul.mubr.f32.gmra.mrb[0].mxu0 %v2029
    %v2533 = vpop.f32.mrb[0].mxu0
    %v2534 = vadd.f32 0.0, %v2533
    %v2535 = vpop.f32.mrb[0].mxu0
    %2536 = vmatprep.mubr.f32.mxu0 0.0
    %2537 = vmatmul.mubr.f32.gmra.mrb[0].mxu0 %v2030
    %v2538 = vpop.f32.mrb[0].mxu0
    %v2539 = vadd.f32 0.0, %v2538
    %v2540 = vpop.f32.mrb[0].mxu0
    %2541 = vmatprep.mubr.f32.mxu0 0.0
    %2542 = vmatmul.mubr.f32.gmra.mrb[0].mxu0 %v2031
    %v2543 = vpop.f32.mrb[0].mxu0
    %v2544 = vadd.f32 0.0, %v2543
    %v2545 = vpop.f32.mrb[0].mxu0
    %2546 = vmatprep.mubr.f32.mxu0 0.0
    %2547 = vmatmul.mubr.f32.gmra.mrb[0].mxu0 %v2032
    %v2548 = vpop.f32.mrb[0].mxu0
    %v2549 = vadd.f32 0.0, %v2548
    %v2550 = vpop.f32.mrb[0].mxu0
    %2551 = vdwg.mxu0
    %2552 = vmatprep.subr.mxu0 0.0
    %2553 = vmatpush1.msra.mxu0 %v2053
    %2554 = vmatprep.subr.mxu0 0.0
    %2555 = vmatpush1.msra.mxu0 %v2054
    %2556 = vmatprep.subr.mxu0 0.0
    %2557 = vmatpush1.msra.mxu0 %v2055
    %2558 = vmatprep.subr.mxu0 0.0
    %2559 = vmatpush1.msra.mxu0 %v2056
    %2560 = vmatprep.subr.mxu0 0.0
    %2561 = vmatpush1.msra.mxu0 %v2057
    %2562 = vmatprep.subr.mxu0 0.0
    %2563 = vmatpush1.msra.mxu0 %v2058
    %2564 = vmatprep.subr.mxu0 0.0
    %2565 = vmatpush1.msra.mxu0 %v2059
    %2566 = vmatprep.subr.mxu0 0.0
    %2567 = vmatpush1.msra.mxu0 %v2060
    %2568 = vmatprep.subr.mxu0 0.0
    %2569 = vmatpush1.msra.mxu0 %v2061
    %2570 = vmatprep.subr.mxu0 0.0
    %2571 = vmatpush1.msra.mxu0 %v2062
    %2572 = vmatprep.subr.mxu0 0.0
    %2573 = vmatpush1.msra.mxu0 %v2063
    %2574 = vmatprep.subr.mxu0 0.0
    %2575 = vmatpush1.msra.mxu0 %v2064
    %2576 = vmatprep.subr.mxu0 0.0
    %2577 = vmatpush1.msra.mxu0 %v2065
    %2578 = vmatprep.subr.mxu0 0.0
    %2579 = vmatpush1.msra.mxu0 %v2066
    %2580 = vmatprep.subr.mxu0 0.0
    %2581 = vmatpush1.msra.mxu0 %v2067
    %2582 = vmatprep.subr.mxu0 0.0
    %2583 = vmatpush1.msra.mxu0 %v2068
    %2584 = vmatprep.subr.mxu0 0.0
    %2585 = vmatpush1.msra.mxu0 0.0
    %2586 = vmatprep.subr.mxu0 0.0
    %2587 = vmatpush1.msra.mxu0 0.0
    %2588 = vmatprep.subr.mxu0 0.0
    %2589 = vmatpush1.msra.mxu0 0.0
    %2590 = vmatprep.subr.mxu0 0.0
    %2591 = vmatpush1.msra.mxu0 0.0
    %2592 = vmatprep.subr.mxu0 0.0
    %2593 = vmatpush1.msra.mxu0 0.0
    %2594 = vmatprep.subr.mxu0 0.0
    %2595 = vmatpush1.msra.mxu0 0.0
    %2596 = vmatprep.subr.mxu0 0.0
    %2597 = vmatpush1.msra.mxu0 0.0
    %2598 = vmatprep.subr.mxu0 0.0
    %2599 = vmatpush1.msra.mxu0 0.0
    %2600 = vmatprep.subr.mxu0 0.0
    %2601 = vmatpush1.msra.mxu0 0.0
    %2602 = vmatprep.subr.mxu0 0.0
    %2603 = vmatpush1.msra.mxu0 0.0
    %2604 = vmatprep.subr.mxu0 0.0
    %2605 = vmatpush1.msra.mxu0 0.0
    %2606 = vmatprep.subr.mxu0 0.0
    %2607 = vmatpush1.msra.mxu0 0.0
    %2608 = vmatprep.subr.mxu0 0.0
    %2609 = vmatpush1.msra.mxu0 0.0
    %2610 = vmatprep.subr.mxu0 0.0
    %2611 = vmatpush1.msra.mxu0 0.0
    %2612 = vmatprep.subr.mxu0 0.0
    %2613 = vmatpush1.msra.mxu0 0.0
    %2614 = vmatprep.subr.mxu0 0.0
    %2615 = vmatpush1.msra.mxu0 0.0
    %2616 = vmatprep.mubr.f32.mxu0 0.0
    %2617 = vmatmul.mubr.f32.gmra.mrb[0].mxu0 %v2409
    %v2618 = vpop.f32.mrb[0].mxu0
    %v2619 = vadd.f32 %v2514, %v2618
    %v2620 = vpop.f32.mrb[0].mxu0
    %2621 = vmatprep.mubr.f32.mxu0 0.0
    %2622 = vmatmul.mubr.f32.gmra.mrb[0].mxu0 %v2414
    %v2623 = vpop.f32.mrb[0].mxu0
    %v2624 = vadd.f32 %v2519, %v2623
    %v2625 = vpop.f32.mrb[0].mxu0
    %2626 = vmatprep.mubr.f32.mxu0 0.0
    %2627 = vmatmul.mubr.f32.gmra.mrb[0].mxu0 %v2419
    %v2628 = vpop.f32.mrb[0].mxu0
    %v2629 = vadd.f32 %v2524, %v2628
    %v2630 = vpop.f32.mrb[0].mxu0
    %2631 = vmatprep.mubr.f32.mxu0 0.0
    %2632 = vmatmul.mubr.f32.gmra.mrb[0].mxu0 %v2424
    %v2633 = vpop.f32.mrb[0].mxu0
    %v2634 = vadd.f32 %v2529, %v2633
    %v2635 = vpop.f32.mrb[0].mxu0
    %2636 = vmatprep.mubr.f32.mxu0 0.0
    %2637 = vmatmul.mubr.f32.gmra.mrb[0].mxu0 %v2429
    %v2638 = vpop.f32.mrb[0].mxu0
    %v2639 = vadd.f32 %v2534, %v2638
    %v2640 = vpop.f32.mrb[0].mxu0
    %2641 = vmatprep.mubr.f32.mxu0 0.0
    %2642 = vmatmul.mubr.f32.gmra.mrb[0].mxu0 %v2434
    %v2643 = vpop.f32.mrb[0].mxu0
    %v2644 = vadd.f32 %v2539, %v2643
    %v2645 = vpop.f32.mrb[0].mxu0
    %2646 = vmatprep.mubr.f32.mxu0 0.0
    %2647 = vmatmul.mubr.f32.gmra.mrb[0].mxu0 %v2439
    %v2648 = vpop.f32.mrb[0].mxu0
    %v2649 = vadd.f32 %v2544, %v2648
    %v2650 = vpop.f32.mrb[0].mxu0
    %2651 = vmatprep.mubr.f32.mxu0 0.0
    %2652 = vmatmul.mubr.f32.gmra.mrb[0].mxu0 %v2444
    %v2653 = vpop.f32.mrb[0].mxu0
    %v2654 = vadd.f32 %v2549, %v2653
    %v2655 = vpop.f32.mrb[0].mxu0
    %2656 = vdwg.mxu0
    %v2658 = vlaneseq
    %v2659 = vshrl.u32 %v2658, 7
    %v2660 = vsub.s32 0, %v2659
    %v2661 = vrot.slane %v2123, %v2660
    %v2663 = vadd.f32 %v2619, %v2661
    %v2664 = vadd.f32 %v2624, %v2661
    %v2665 = vadd.f32 %v2629, %v2661
    %v2666 = vadd.f32 %v2634, %v2661
    %v2667 = vadd.f32 %v2639, %v2661
    %v2668 = vadd.f32 %v2644, %v2661
    %v2669 = vadd.f32 %v2649, %v2661
    %v2670 = vadd.f32 %v2654, %v2661
    %v2671 = vadd.f32 %v2304, %v2663
    %v2672 = vadd.f32 %v2309, %v2664
    %v2673 = vadd.f32 %v2314, %v2665
    %v2674 = vadd.f32 %v2319, %v2666
    %v2675 = vadd.f32 %v2324, %v2667
    %v2676 = vadd.f32 %v2329, %v2668
    %v2677 = vadd.f32 %v2334, %v2669
    %v2678 = vadd.f32 %v2339, %v2670
    %v2679 = vmul.f32 %v2671, 0.5
    %v2680 = vmul.f32 %v2672, 0.5
    %v2681 = vmul.f32 %v2673, 0.5
    %v2682 = vmul.f32 %v2674, 0.5
    %v2683 = vmul.f32 %v2675, 0.5
    %v2684 = vmul.f32 %v2676, 0.5
    %v2685 = vmul.f32 %v2677, 0.5
    %v2686 = vmul.f32 %v2678, 0.5
    %2687 = vmatprep.subr.mxu0 0.0
    %2688 = vmatpush1.msra.mxu0 %v2025
    %2689 = vmatprep.subr.mxu0 0.0
    %2690 = vmatpush1.msra.mxu0 %v2026
    %2691 = vmatprep.subr.mxu0 0.0
    %2692 = vmatpush1.msra.mxu0 %v2027
    %2693 = vmatprep.subr.mxu0 0.0
    %2694 = vmatpush1.msra.mxu0 %v2028
    %2695 = vmatprep.subr.mxu0 0.0
    %2696 = vmatpush1.msra.mxu0 %v2029
    %2697 = vmatprep.subr.mxu0 0.0
    %2698 = vmatpush1.msra.mxu0 %v2030
    %2699 = vmatprep.subr.mxu0 0.0
    %2700 = vmatpush1.msra.mxu0 %v2031
    %2701 = vmatprep.subr.mxu0 0.0
    %2702 = vmatpush1.msra.mxu0 %v2032
    %2703 = vmatprep.subr.mxu0 0.0
    %2704 = vmatpush1.msra.mxu0 0.0
    %2705 = vmatprep.subr.mxu0 0.0
    %2706 = vmatpush1.msra.mxu0 0.0
    %2707 = vmatprep.subr.mxu0 0.0
    %2708 = vmatpush1.msra.mxu0 0.0
    %2709 = vmatprep.subr.mxu0 0.0
    %2710 = vmatpush1.msra.mxu0 0.0
    %2711 = vmatprep.subr.mxu0 0.0
    %2712 = vmatpush1.msra.mxu0 0.0
    %2713 = vmatprep.subr.mxu0 0.0
    %2714 = vmatpush1.msra.mxu0 0.0
    %2715 = vmatprep.subr.mxu0 0.0
    %2716 = vmatpush1.msra.mxu0 0.0
    %2717 = vmatprep.subr.mxu0 0.0
    %2718 = vmatpush1.msra.mxu0 0.0
    %2719 = vmatprep.subr.mxu0 0.0
    %2720 = vmatpush1.msra.mxu0 0.0
    %2721 = vmatprep.subr.mxu0 0.0
    %2722 = vmatpush1.msra.mxu0 0.0
    %2723 = vmatprep.subr.mxu0 0.0
    %2724 = vmatpush1.msra.mxu0 0.0
    %2725 = vmatprep.subr.mxu0 0.0
    %2726 = vmatpush1.msra.mxu0 0.0
    %2727 = vmatprep.subr.mxu0 0.0
    %2728 = vmatpush1.msra.mxu0 0.0
    %2729 = vmatprep.subr.mxu0 0.0
    %2730 = vmatpush1.msra.mxu0 0.0
    %2731 = vmatprep.subr.mxu0 0.0
    %2732 = vmatpush1.msra.mxu0 0.0
    %2733 = vmatprep.subr.mxu0 0.0
    %2734 = vmatpush1.msra.mxu0 0.0
    %2735 = vmatprep.subr.mxu0 0.0
    %2736 = vmatpush1.msra.mxu0 0.0
    %2737 = vmatprep.subr.mxu0 0.0
    %2738 = vmatpush1.msra.mxu0 0.0
    %2739 = vmatprep.subr.mxu0 0.0
    %2740 = vmatpush1.msra.mxu0 0.0
    %2741 = vmatprep.subr.mxu0 0.0
    %2742 = vmatpush1.msra.mxu0 0.0
    %2743 = vmatprep.subr.mxu0 0.0
    %2744 = vmatpush1.msra.mxu0 0.0
    %2745 = vmatprep.subr.mxu0 0.0
    %2746 = vmatpush1.msra.mxu0 0.0
    %2747 = vmatprep.subr.mxu0 0.0
    %2748 = vmatpush1.msra.mxu0 0.0
    %2749 = vmatprep.subr.mxu0 0.0
    %2750 = vmatpush1.msra.mxu0 0.0
    %2751 = vmatprep.mubr.f32.mxu0 0.0
    %2752 = vmatmul.mubr.f32.gmra.mrb[0].mxu0 %v892
    %v2753 = vpop.f32.mrb[0].mxu0
    %v2754 = vadd.f32 0.0, %v2753
    %v2755 = vpop.f32.mrb[0].mxu0
    %2756 = vmatprep.mubr.f32.mxu0 0.0
    %2757 = vmatmul.mubr.f32.gmra.mrb[0].mxu0 %v895
    %v2758 = vpop.f32.mrb[0].mxu0
    %v2759 = vadd.f32 0.0, %v2758
    %v2760 = vpop.f32.mrb[0].mxu0
    %2761 = vdwg.mxu0
    %2762 = vmatprep.subr.mxu0 0.0
    %2763 = vmatpush1.msra.mxu0 %v2104
    %2764 = vmatprep.subr.mxu0 0.0
    %2765 = vmatpush1.msra.mxu0 %v2105
    %2766 = vmatprep.subr.mxu0 0.0
    %2767 = vmatpush1.msra.mxu0 %v2106
    %2768 = vmatprep.subr.mxu0 0.0
    %2769 = vmatpush1.msra.mxu0 %v2107
    %2770 = vmatprep.subr.mxu0 0.0
    %2771 = vmatpush1.msra.mxu0 %v2108
    %2772 = vmatprep.subr.mxu0 0.0
    %2773 = vmatpush1.msra.mxu0 %v2109
    %2774 = vmatprep.subr.mxu0 0.0
    %2775 = vmatpush1.msra.mxu0 %v2110
    %2776 = vmatprep.subr.mxu0 0.0
    %2777 = vmatpush1.msra.mxu0 %v2111
    %2778 = vmatprep.subr.mxu0 0.0
    %2779 = vmatpush1.msra.mxu0 %v2112
    %2780 = vmatprep.subr.mxu0 0.0
    %2781 = vmatpush1.msra.mxu0 %v2113
    %2782 = vmatprep.subr.mxu0 0.0
    %2783 = vmatpush1.msra.mxu0 %v2114
    %2784 = vmatprep.subr.mxu0 0.0
    %2785 = vmatpush1.msra.mxu0 %v2115
    %2786 = vmatprep.subr.mxu0 0.0
    %2787 = vmatpush1.msra.mxu0 %v2116
    %2788 = vmatprep.subr.mxu0 0.0
    %2789 = vmatpush1.msra.mxu0 %v2117
    %2790 = vmatprep.subr.mxu0 0.0
    %2791 = vmatpush1.msra.mxu0 %v2118
    %2792 = vmatprep.subr.mxu0 0.0
    %2793 = vmatpush1.msra.mxu0 %v2119
    %2794 = vmatprep.subr.mxu0 0.0
    %2795 = vmatpush1.msra.mxu0 0.0
    %2796 = vmatprep.subr.mxu0 0.0
    %2797 = vmatpush1.msra.mxu0 0.0
    %2798 = vmatprep.subr.mxu0 0.0
    %2799 = vmatpush1.msra.mxu0 0.0
    %2800 = vmatprep.subr.mxu0 0.0
    %2801 = vmatpush1.msra.mxu0 0.0
    %2802 = vmatprep.subr.mxu0 0.0
    %2803 = vmatpush1.msra.mxu0 0.0
    %2804 = vmatprep.subr.mxu0 0.0
    %2805 = vmatpush1.msra.mxu0 0.0
    %2806 = vmatprep.subr.mxu0 0.0
    %2807 = vmatpush1.msra.mxu0 0.0
    %2808 = vmatprep.subr.mxu0 0.0
    %2809 = vmatpush1.msra.mxu0 0.0
    %2810 = vmatprep.subr.mxu0 0.0
    %2811 = vmatpush1.msra.mxu0 0.0
    %2812 = vmatprep.subr.mxu0 0.0
    %2813 = vmatpush1.msra.mxu0 0.0
    %2814 = vmatprep.subr.mxu0 0.0
    %2815 = vmatpush1.msra.mxu0 0.0
    %2816 = vmatprep.subr.mxu0 0.0
    %2817 = vmatpush1.msra.mxu0 0.0
    %2818 = vmatprep.subr.mxu0 0.0
    %2819 = vmatpush1.msra.mxu0 0.0
    %2820 = vmatprep.subr.mxu0 0.0
    %2821 = vmatpush1.msra.mxu0 0.0
    %2822 = vmatprep.subr.mxu0 0.0
    %2823 = vmatpush1.msra.mxu0 0.0
    %2824 = vmatprep.subr.mxu0 0.0
    %2825 = vmatpush1.msra.mxu0 0.0
    %2826 = vmatprep.mubr.f32.mxu0 0.0
    %2827 = vmatmul.mubr.f32.gmra.mrb[0].mxu0 %v2033
    %v2828 = vpop.f32.mrb[0].mxu0
    %v2829 = vadd.f32 0.0, %v2828
    %v2830 = vpop.f32.mrb[0].mxu0
    %2831 = vmatprep.mubr.f32.mxu0 0.0
    %2832 = vmatmul.mubr.f32.gmra.mrb[0].mxu0 %v2034
    %v2833 = vpop.f32.mrb[0].mxu0
    %v2834 = vadd.f32 0.0, %v2833
    %v2835 = vpop.f32.mrb[0].mxu0
    %2836 = vdwg.mxu0
    %2837 = vmatprep.subr.mxu0 0.0
    %2838 = vmatpush1.msra.mxu0 %v2087
    %2839 = vmatprep.subr.mxu0 0.0
    %2840 = vmatpush1.msra.mxu0 %v2088
    %2841 = vmatprep.subr.mxu0 0.0
    %2842 = vmatpush1.msra.mxu0 %v2089
    %2843 = vmatprep.subr.mxu0 0.0
    %2844 = vmatpush1.msra.mxu0 %v2090
    %2845 = vmatprep.subr.mxu0 0.0
    %2846 = vmatpush1.msra.mxu0 %v2091
    %2847 = vmatprep.subr.mxu0 0.0
    %2848 = vmatpush1.msra.mxu0 %v2092
    %2849 = vmatprep.subr.mxu0 0.0
    %2850 = vmatpush1.msra.mxu0 %v2093
    %2851 = vmatprep.subr.mxu0 0.0
    %2852 = vmatpush1.msra.mxu0 %v2094
    %2853 = vmatprep.subr.mxu0 0.0
    %2854 = vmatpush1.msra.mxu0 %v2095
    %2855 = vmatprep.subr.mxu0 0.0
    %2856 = vmatpush1.msra.mxu0 %v2096
    %2857 = vmatprep.subr.mxu0 0.0
    %2858 = vmatpush1.msra.mxu0 %v2097
    %2859 = vmatprep.subr.mxu0 0.0
    %2860 = vmatpush1.msra.mxu0 %v2098
    %2861 = vmatprep.subr.mxu0 0.0
    %2862 = vmatpush1.msra.mxu0 %v2099
    %2863 = vmatprep.subr.mxu0 0.0
    %2864 = vmatpush1.msra.mxu0 %v2100
    %2865 = vmatprep.subr.mxu0 0.0
    %2866 = vmatpush1.msra.mxu0 %v2101
    %2867 = vmatprep.subr.mxu0 0.0
    %2868 = vmatpush1.msra.mxu0 %v2102
    %2869 = vmatprep.subr.mxu0 0.0
    %2870 = vmatpush1.msra.mxu0 0.0
    %2871 = vmatprep.subr.mxu0 0.0
    %2872 = vmatpush1.msra.mxu0 0.0
    %2873 = vmatprep.subr.mxu0 0.0
    %2874 = vmatpush1.msra.mxu0 0.0
    %2875 = vmatprep.subr.mxu0 0.0
    %2876 = vmatpush1.msra.mxu0 0.0
    %2877 = vmatprep.subr.mxu0 0.0
    %2878 = vmatpush1.msra.mxu0 0.0
    %2879 = vmatprep.subr.mxu0 0.0
    %2880 = vmatpush1.msra.mxu0 0.0
    %2881 = vmatprep.subr.mxu0 0.0
    %2882 = vmatpush1.msra.mxu0 0.0
    %2883 = vmatprep.subr.mxu0 0.0
    %2884 = vmatpush1.msra.mxu0 0.0
    %2885 = vmatprep.subr.mxu0 0.0
    %2886 = vmatpush1.msra.mxu0 0.0
    %2887 = vmatprep.subr.mxu0 0.0
    %2888 = vmatpush1.msra.mxu0 0.0
    %2889 = vmatprep.subr.mxu0 0.0
    %2890 = vmatpush1.msra.mxu0 0.0
    %2891 = vmatprep.subr.mxu0 0.0
    %2892 = vmatpush1.msra.mxu0 0.0
    %2893 = vmatprep.subr.mxu0 0.0
    %2894 = vmatpush1.msra.mxu0 0.0
    %2895 = vmatprep.subr.mxu0 0.0
    %2896 = vmatpush1.msra.mxu0 0.0
    %2897 = vmatprep.subr.mxu0 0.0
    %2898 = vmatpush1.msra.mxu0 0.0
    %2899 = vmatprep.subr.mxu0 0.0
    %2900 = vmatpush1.msra.mxu0 0.0
    %2901 = vmatprep.mubr.f32.mxu0 0.0
    %2902 = vmatmul.mubr.f32.gmra.mrb[0].mxu0 %v2754
    %v2903 = vpop.f32.mrb[0].mxu0
    %v2904 = vadd.f32 %v2829, %v2903
    %v2905 = vpop.f32.mrb[0].mxu0
    %2906 = vmatprep.mubr.f32.mxu0 0.0
    %2907 = vmatmul.mubr.f32.gmra.mrb[0].mxu0 %v2759
    %v2908 = vpop.f32.mrb[0].mxu0
    %v2909 = vadd.f32 %v2834, %v2908
    %v2910 = vpop.f32.mrb[0].mxu0
    %2911 = vdwg.mxu0
    %v2913 = vlaneseq
    %v2914 = vshrl.u32 %v2913, 7
    %v2915 = vsub.s32 0, %v2914
    %v2916 = vrot.slane %v2125, %v2915
    %v2918 = vadd.f32 %v2904, %v2916
    %v2919 = vadd.f32 %v2909, %v2916
    %2920 = vst [vmem:[%s13] sm:$0xff] %v2679
    %2921 = vst [vmem:[%s13 + $0x8] sm:$0xff] %v2680
    %2922 = vst [vmem:[%s13 + $0x10] sm:$0xff] %v2681
    %2923 = vst [vmem:[%s13 + $0x18] sm:$0xff] %v2682
    %2924 = vst [vmem:[%s13 + $0x20] sm:$0xff] %v2683
    %2925 = vst [vmem:[%s13 + $0x28] sm:$0xff] %v2684
    %2926 = vst [vmem:[%s13 + $0x30] sm:$0xff] %v2685
    %2927 = vst [vmem:[%s13 + $0x38] sm:$0xff] %v2686
    %2928 = vst [vmem:[#allocation17] sm:$0xff] %v2918
    %2929 = vst [vmem:[#allocation17 + $0x8] sm:$0xff] %v2919
    // Predicated region
    $region90: #{fused_forward.1} parent=1 // pred_check
      _
    $region91: #{fused_forward.1} parent=1 // pred_check_branch
      %2931 = sbr.rel (0) target = $region93
    $region92: #{fused_forward.1} parent=1 // pred_region
      _
    $region93: #{fused_forward.1} parent=1 // pred_fallthru
      _
    // Predicated region
    $region94: #{fused_forward.1} parent=1 // pred_check
      _
    $region95: #{fused_forward.1} parent=1 // pred_check_branch
      %2933 = sbr.rel (0) target = $region97
    $region96: #{fused_forward.1} parent=1 // pred_region
      %s2935 = ssub.s32 256, 256
      %2936 = vsyncadd [#allocation4], %s2935
      %s2937 = sshll.u32 [#allocation17], 4
      %s2938 = int_to_ptr.vmem [resolvable:$true] %s2937
      %2943 = dma.vmem_to_hbm [thread:$0]  %s2938, 256, %s14, [#allocation4], 128, 128, 8
    $region97: #{fused_forward.1} parent=1 // pred_fallthru
      _
    // Predicated region
    $region98: #{fused_forward.1} parent=1 // pred_check
      _
    $region99: #{fused_forward.1} parent=1 // pred_check_branch
      %2945 = sbr.rel (0) target = $region101
    $region100: #{fused_forward.1} parent=1 // pred_region
      _
    $region101: #{fused_forward.1} parent=1 // pred_fallthru
      _
    // Predicated region
    $region102: #{fused_forward.1} parent=1 // pred_check
      _
    $region103: #{fused_forward.1} parent=1 // pred_check_branch
      %2947 = sbr.rel (0) target = $region105
    $region104: #{fused_forward.1} parent=1 // pred_region
      %2948 = dma.done [#allocation4], 256
    $region105: #{fused_forward.1} parent=1 // pred_fallthru
      _
    %2949 = vsyncpa [#allocation3], 1
    %2950 = vsyncpa [#allocation6], 1
    %2951 = vsyncpa [#allocation9], 1
    %2952 = vsyncpa [#allocation12], 1
    %2953 = vsyncpa [#allocation15], 1
    %2954 = vsyncpa [#allocation4], 1

</llo_original>
